<compile_context>
chip_gen: v7x
topology: tpu7x:2x2x1
jax: 0.10.0
libtpu: 0.0.40
codegen_flags: <defaults>
</compile_context>

<pallas_src>
import jax
import jax.numpy as jnp
from jax import lax
from jax.experimental import pallas as pl
from jax.experimental.pallas import tpu as pltpu

LANE = 128


def _ceil_to(n, m):
    return ((n + m - 1) // m) * m


# ------------------------- fused Down kernel (per image) -------------------------

def _down_fused_kernel(x_ref, w1_ref, b1_ref, w2_ref, b2_ref, o_ref,
                       xpad_ref, mid_ref):
    # x_ref:  (1, H, W, Cp)      input tile, channels lane-padded, f32
    # w1_ref: (9, Cp, Mp)        conv1 taps, BN1 scale folded in, bf16
    # b1_ref: (1, Mp)            BN1 folded bias, f32
    # w2_ref: (9, Mp, Op)        conv2 taps, BN2 scale folded in, bf16
    # b2_ref: (1, Op)            BN2 folded bias, f32
    # o_ref:  (1, Hh, Wh, Op)    output tile (lane-dense, Op = mult of 128)
    # xpad_ref: VMEM (Hh+2, Wh+2, Cp) f32   zero-haloed pooled input
    # mid_ref:  VMEM (Hh+2, Wh+2, Mp) f32   zero-haloed conv1 output
    _, H, W, Cp = x_ref.shape
    _, Hh, Wh, Op = o_ref.shape
    Mp = mid_ref.shape[-1]

    # ---- 2x2 max pool (VPU only, lane dim untouched) ----
    x = x_ref[0].reshape(Hh, 2, Wh, 2, Cp)
    pooled = jnp.max(jnp.max(x, axis=3), axis=1)          # (Hh, Wh, Cp) f32

    # ---- conv1 (3x3, pad=1) + BN1(folded) + ReLU ----
    xpad_ref[...] = jnp.zeros_like(xpad_ref)               # zero halo
    xpad_ref[1:Hh + 1, 1:Wh + 1, :] = pooled
    acc = None
    for dy in range(3):
        for dx in range(3):
            patch = xpad_ref[dy:dy + Hh, dx:dx + Wh, :].astype(jnp.bfloat16)
            d = jnp.dot(patch.reshape(Hh * Wh, Cp), w1_ref[dy * 3 + dx],
                        preferred_element_type=jnp.float32)
            acc = d if acc is None else acc + d
    y1 = jnp.maximum(acc + b1_ref[0], 0.0)                 # (Hh*Wh, Mp) f32

    # ---- conv2 (3x3, pad=1) + BN2(folded) + ReLU ----
    mid_ref[...] = jnp.zeros_like(mid_ref)                 # zero halo
    mid_ref[1:Hh + 1, 1:Wh + 1, :] = y1.reshape(Hh, Wh, Mp)
    acc2 = None
    for dy in range(3):
        for dx in range(3):
            patch = mid_ref[dy:dy + Hh, dx:dx + Wh, :].astype(jnp.bfloat16)
            d = jnp.dot(patch.reshape(Hh * Wh, Mp), w2_ref[dy * 3 + dx],
                        preferred_element_type=jnp.float32)
            acc2 = d if acc2 is None else acc2 + d
    y2 = jnp.maximum(acc2 + b2_ref[0], 0.0)                # (Hh*Wh, Op) f32

    o_ref[0] = y2.reshape(Hh, Wh, Op).astype(o_ref.dtype)


# --------------------------------- wrapper --------------------------------------

def _fold_bn_and_pack(w, scale, bias, cin_p, cout_p):
    # w: (3, 3, Cin, Cout) HWIO; scale/bias: (Cout,) folded eval-mode BN.
    kh, kw, cin, cout = w.shape
    wf = w.astype(jnp.float32) * scale.astype(jnp.float32)[None, None, None, :]
    wf = jnp.pad(wf, ((0, 0), (0, 0), (0, cin_p - cin), (0, cout_p - cout)))
    w9 = wf.reshape(kh * kw, cin_p, cout_p).astype(jnp.bfloat16)
    b = jnp.pad(bias.astype(jnp.float32), (0, cout_p - cout)).reshape(1, cout_p)
    return w9, b


def down_forward(x_nchw, w1, scale1, bias1, w2, scale2, bias2):
    # x: (N, Cin, H, W); w: (3, 3, Cin, Cout) HWIO; scale/bias: (Cout,)
    N, Cin, H, W = x_nchw.shape
    Cmid = w1.shape[-1]
    Cout = w2.shape[-1]
    assert H % 2 == 0 and W % 2 == 0, "MaxPool2d(2) requires even H, W"
    Hh, Wh = H // 2, W // 2

    Cp = _ceil_to(Cin, LANE)
    Mp = _ceil_to(Cmid, LANE)
    Op = _ceil_to(Cout, LANE)

    # NCHW -> NHWC (channels last = lane dim) + lane padding of channels.
    # TODO(synk): in an end-to-end NHWC model these boundary transposes/pads
    #             would be dropped entirely.
    x = jnp.transpose(x_nchw, (0, 2, 3, 1))
    x = jnp.pad(x, ((0, 0), (0, 0), (0, 0), (0, Cp - Cin)))

    w1p, b1p = _fold_bn_and_pack(w1, scale1, bias1, Cp, Mp)
    w2p, b2p = _fold_bn_and_pack(w2, scale2, bias2, Mp, Op)

    out = pl.pallas_call(
        _down_fused_kernel,
        out_shape=jax.ShapeDtypeStruct((N, Hh, Wh, Op), x.dtype),
        grid=(N,),
        in_specs=[
            pl.BlockSpec((1, H, W, Cp), lambda n: (n, 0, 0, 0)),
            pl.BlockSpec((9, Cp, Mp), lambda n: (0, 0, 0)),
            pl.BlockSpec((1, Mp), lambda n: (0, 0)),
            pl.BlockSpec((9, Mp, Op), lambda n: (0, 0, 0)),
            pl.BlockSpec((1, Op), lambda n: (0, 0)),
        ],
        out_specs=pl.BlockSpec((1, Hh, Wh, Op), lambda n: (n, 0, 0, 0)),
        scratch_shapes=[
            pltpu.VMEM((Hh + 2, Wh + 2, Cp), jnp.float32),
            pltpu.VMEM((Hh + 2, Wh + 2, Mp), jnp.float32),
        ],
        compiler_params=pltpu.CompilerParams(
            dimension_semantics=("parallel",),
        ),
    )(x, w1p, b1p, w2p, b2p)

    out = out[..., :Cout]                       # drop channel lane padding
    return jnp.transpose(out, (0, 3, 1, 2))     # NHWC -> NCHW


# ------------------------------- pure-JAX reference ------------------------------

def ref_forward(x_nchw, w1, scale1, bias1, w2, scale2, bias2):
    x = jnp.transpose(x_nchw, (0, 2, 3, 1))
    x = lax.reduce_window(x, -jnp.inf, lax.max, (1, 2, 2, 1), (1, 2, 2, 1), "VALID")

    def conv_bn_relu(y, w, s, b):
        y = lax.conv_general_dilated(
            y, w, (1, 1), "SAME",
            dimension_numbers=("NHWC", "HWIO", "NHWC"),
            precision=lax.Precision.HIGHEST)
        return jnp.maximum(y * s + b, 0.0)

    x = conv_bn_relu(x, w1, scale1, bias1)
    x = conv_bn_relu(x, w2, scale2, bias2)
    return jnp.transpose(x, (0, 3, 1, 2))


# --------------------------------------- main ------------------------------------

if __name__ == "__main__":
    N, Cin, H, W = 2, 4, 16, 16        # x: NCHW
    Cout = 8
    Cmid = Cout                        # DoubleConv: mid_channels = out_channels
    eps = 1e-5

    key = jax.random.PRNGKey(0)
    k_x, k_w1, k_w2 = jax.random.split(key, 3)
    x = jax.random.normal(k_x, (N, Cin, H, W), jnp.float32)

    # Conv weights in HWIO layout (PyTorch OIHW weight transposed to (3,3,I,O)).
    w1 = 0.1 * jax.random.normal(k_w1, (3, 3, Cin, Cmid), jnp.float32)
    w2 = 0.1 * jax.random.normal(k_w2, (3, 3, Cmid, Cout), jnp.float32)

    # Deterministic eval-mode BN parameters folded to scale/bias.
    def bn_fold(c):
        gamma = 1.0 + 0.1 * jnp.arange(c, dtype=jnp.float32) / c
        beta = 0.05 * jnp.arange(c, dtype=jnp.float32)
        mean = 0.01 * jnp.arange(c, dtype=jnp.float32)
        var = 1.0 + 0.02 * jnp.arange(c, dtype=jnp.float32)
        scale = gamma / jnp.sqrt(var + eps)
        bias = beta - mean * scale
        return scale, bias

    scale1, bias1 = bn_fold(Cmid)
    scale2, bias2 = bn_fold(Cout)

    out = down_forward(x, w1, scale1, bias1, w2, scale2, bias2)
    out = jax.block_until_ready(out)

    ref = ref_forward(x, w1, scale1, bias1, w2, scale2, bias2)
    assert out.shape == (N, Cout, H // 2, W // 2), out.shape
    max_err = float(jnp.max(jnp.abs(out - ref)))
    assert jnp.allclose(out, ref, atol=2e-2, rtol=2e-2), max_err

    print("KERNEL_OK")
</pallas_src>

<mosaic_0001>
module attributes {stable_mosaic.version = 11 : i64} {
  func.func @_down_fused_kernel(%arg0: i32, %arg1: memref<1x16x16x128xf32, #tpu.memory_space<vmem>>, %arg2: memref<9x128x128xbf16, #tpu.memory_space<vmem>>, %arg3: memref<1x128xf32, #tpu.memory_space<vmem>>, %arg4: memref<9x128x128xbf16, #tpu.memory_space<vmem>>, %arg5: memref<1x128xf32, #tpu.memory_space<vmem>>, %arg6: memref<1x8x8x128xf32, #tpu.memory_space<vmem>>, %arg7: memref<10x10x128xf32, #tpu.memory_space<vmem>>, %arg8: memref<10x10x128xf32, #tpu.memory_space<vmem>>) attributes {dimension_semantics = [#tpu.dimension_semantics<parallel>], iteration_bounds = array<i64: 2>, scalar_prefetch = 0 : i64, scratch_operands = 2 : i64, tpu.core_type = #tpu.core_type<tc>, window_params = [{transform_indices = @transform_0, window_bounds = array<i64: 1, 16, 16, 128>}, {pipeline_mode = #tpu.pipeline_mode<synchronous>, transform_indices = @transform_1, window_bounds = array<i64: 9, 128, 128>}, {pipeline_mode = #tpu.pipeline_mode<synchronous>, transform_indices = @transform_2, window_bounds = array<i64: 1, 128>}, {pipeline_mode = #tpu.pipeline_mode<synchronous>, transform_indices = @transform_3, window_bounds = array<i64: 9, 128, 128>}, {pipeline_mode = #tpu.pipeline_mode<synchronous>, transform_indices = @transform_4, window_bounds = array<i64: 1, 128>}, {transform_indices = @transform_5, window_bounds = array<i64: 1, 8, 8, 128>}]} {
    %c0 = arith.constant 0 : index
    %c0_0 = arith.constant 0 : index
    %c0_1 = arith.constant 0 : index
    %c0_2 = arith.constant 0 : index
    %0 = vector.load %arg1[%c0, %c0_0, %c0_1, %c0_2] : memref<1x16x16x128xf32, #tpu.memory_space<vmem>>, vector<1x16x16x128xf32>
    %1 = vector.shape_cast %0 : vector<1x16x16x128xf32> to vector<16x16x128xf32>
    %2 = vector.shape_cast %1 : vector<16x16x128xf32> to vector<8x2x8x2x128xf32>
    %cst = arith.constant dense<0xFF800000> : vector<8x2x8x128xf32>
    %3 = vector.multi_reduction <maximumf>, %2, %cst [3] : vector<8x2x8x2x128xf32> to vector<8x2x8x128xf32>
    %cst_3 = arith.constant dense<0xFF800000> : vector<8x8x128xf32>
    %4 = vector.multi_reduction <maximumf>, %3, %cst_3 [1] : vector<8x2x8x128xf32> to vector<8x8x128xf32>
    %cst_4 = arith.constant 0.000000e+00 : f32
    %5 = vector.broadcast %cst_4 : f32 to vector<10x10x128xf32>
    %c0_5 = arith.constant 0 : index
    %c0_6 = arith.constant 0 : index
    %c0_7 = arith.constant 0 : index
    %6 = vector.load %arg7[%c0_5, %c0_6, %c0_7] : memref<10x10x128xf32, #tpu.memory_space<vmem>>, vector<10x10x128xf32>
    tpu.vector_store %arg7[%c0_5, %c0_6, %c0_7], %5 {strides = array<i32>} : memref<10x10x128xf32, #tpu.memory_space<vmem>>, vector<10x10x128xf32>,
    %c1 = arith.constant 1 : index
    %c1_8 = arith.constant 1 : index
    %c0_9 = arith.constant 0 : index
    %7 = vector.load %arg7[%c1, %c1_8, %c0_9] : memref<10x10x128xf32, #tpu.memory_space<vmem>>, vector<8x8x128xf32>
    tpu.vector_store %arg7[%c1, %c1_8, %c0_9], %4 {strides = array<i32>} : memref<10x10x128xf32, #tpu.memory_space<vmem>>, vector<8x8x128xf32>,
    %c0_10 = arith.constant 0 : index
    %c0_11 = arith.constant 0 : index
    %c0_12 = arith.constant 0 : index
    %8 = vector.load %arg7[%c0_10, %c0_11, %c0_12] : memref<10x10x128xf32, #tpu.memory_space<vmem>>, vector<8x8x128xf32>
    %9 = arith.truncf %8 : vector<8x8x128xf32> to vector<8x8x128xbf16>
    %10 = vector.shape_cast %9 : vector<8x8x128xbf16> to vector<64x128xbf16>
    %c0_13 = arith.constant 0 : index
    %c0_14 = arith.constant 0 : index
    %c0_15 = arith.constant 0 : index
    %11 = vector.load %arg2[%c0_13, %c0_14, %c0_15] : memref<9x128x128xbf16, #tpu.memory_space<vmem>>, vector<1x128x128xbf16>
    %12 = vector.shape_cast %11 : vector<1x128x128xbf16> to vector<128x128xbf16>
    %cst_16 = arith.constant dense<0.000000e+00> : vector<64x128xf32>
    %13 = tpu.matmul %10, %12, %cst_16 {dimension_numbers = #tpu.dot_dimension_numbers<[1], [0], [0], [1], [0, 0, 1, 1], [], []>} : vector<64x128xbf16>, vector<128x128xbf16>, vector<64x128xf32> -> vector<64x128xf32>
    %c0_17 = arith.constant 0 : index
    %c1_18 = arith.constant 1 : index
    %c0_19 = arith.constant 0 : index
    %14 = vector.load %arg7[%c0_17, %c1_18, %c0_19] : memref<10x10x128xf32, #tpu.memory_space<vmem>>, vector<8x8x128xf32>
    %15 = arith.truncf %14 : vector<8x8x128xf32> to vector<8x8x128xbf16>
    %16 = vector.shape_cast %15 : vector<8x8x128xbf16> to vector<64x128xbf16>
    %c1_20 = arith.constant 1 : index
    %c0_21 = arith.constant 0 : index
    %c0_22 = arith.constant 0 : index
    %17 = vector.load %arg2[%c1_20, %c0_21, %c0_22] : memref<9x128x128xbf16, #tpu.memory_space<vmem>>, vector<1x128x128xbf16>
    %18 = vector.shape_cast %17 : vector<1x128x128xbf16> to vector<128x128xbf16>
    %cst_23 = arith.constant dense<0.000000e+00> : vector<64x128xf32>
    %19 = tpu.matmul %16, %18, %cst_23 {dimension_numbers = #tpu.dot_dimension_numbers<[1], [0], [0], [1], [0, 0, 1, 1], [], []>} : vector<64x128xbf16>, vector<128x128xbf16>, vector<64x128xf32> -> vector<64x128xf32>
    %20 = arith.addf %13, %19 : vector<64x128xf32>
    %c0_24 = arith.constant 0 : index
    %c2 = arith.constant 2 : index
    %c0_25 = arith.constant 0 : index
    %21 = vector.load %arg7[%c0_24, %c2, %c0_25] : memref<10x10x128xf32, #tpu.memory_space<vmem>>, vector<8x8x128xf32>
    %22 = arith.truncf %21 : vector<8x8x128xf32> to vector<8x8x128xbf16>
    %23 = vector.shape_cast %22 : vector<8x8x128xbf16> to vector<64x128xbf16>
    %c2_26 = arith.constant 2 : index
    %c0_27 = arith.constant 0 : index
    %c0_28 = arith.constant 0 : index
    %24 = vector.load %arg2[%c2_26, %c0_27, %c0_28] : memref<9x128x128xbf16, #tpu.memory_space<vmem>>, vector<1x128x128xbf16>
    %25 = vector.shape_cast %24 : vector<1x128x128xbf16> to vector<128x128xbf16>
    %cst_29 = arith.constant dense<0.000000e+00> : vector<64x128xf32>
    %26 = tpu.matmul %23, %25, %cst_29 {dimension_numbers = #tpu.dot_dimension_numbers<[1], [0], [0], [1], [0, 0, 1, 1], [], []>} : vector<64x128xbf16>, vector<128x128xbf16>, vector<64x128xf32> -> vector<64x128xf32>
    %27 = arith.addf %20, %26 : vector<64x128xf32>
    %c1_30 = arith.constant 1 : index
    %c0_31 = arith.constant 0 : index
    %c0_32 = arith.constant 0 : index
    %28 = vector.load %arg7[%c1_30, %c0_31, %c0_32] : memref<10x10x128xf32, #tpu.memory_space<vmem>>, vector<8x8x128xf32>
    %29 = arith.truncf %28 : vector<8x8x128xf32> to vector<8x8x128xbf16>
    %30 = vector.shape_cast %29 : vector<8x8x128xbf16> to vector<64x128xbf16>
    %c3 = arith.constant 3 : index
    %c0_33 = arith.constant 0 : index
    %c0_34 = arith.constant 0 : index
    %31 = vector.load %arg2[%c3, %c0_33, %c0_34] : memref<9x128x128xbf16, #tpu.memory_space<vmem>>, vector<1x128x128xbf16>
    %32 = vector.shape_cast %31 : vector<1x128x128xbf16> to vector<128x128xbf16>
    %cst_35 = arith.constant dense<0.000000e+00> : vector<64x128xf32>
    %33 = tpu.matmul %30, %32, %cst_35 {dimension_numbers = #tpu.dot_dimension_numbers<[1], [0], [0], [1], [0, 0, 1, 1], [], []>} : vector<64x128xbf16>, vector<128x128xbf16>, vector<64x128xf32> -> vector<64x128xf32>
    %34 = arith.addf %27, %33 : vector<64x128xf32>
    %c1_36 = arith.constant 1 : index
    %c1_37 = arith.constant 1 : index
    %c0_38 = arith.constant 0 : index
    %35 = vector.load %arg7[%c1_36, %c1_37, %c0_38] : memref<10x10x128xf32, #tpu.memory_space<vmem>>, vector<8x8x128xf32>
    %36 = arith.truncf %35 : vector<8x8x128xf32> to vector<8x8x128xbf16>
    %37 = vector.shape_cast %36 : vector<8x8x128xbf16> to vector<64x128xbf16>
    %c4 = arith.constant 4 : index
    %c0_39 = arith.constant 0 : index
    %c0_40 = arith.constant 0 : index
    %38 = vector.load %arg2[%c4, %c0_39, %c0_40] : memref<9x128x128xbf16, #tpu.memory_space<vmem>>, vector<1x128x128xbf16>
    %39 = vector.shape_cast %38 : vector<1x128x128xbf16> to vector<128x128xbf16>
    %cst_41 = arith.constant dense<0.000000e+00> : vector<64x128xf32>
    %40 = tpu.matmul %37, %39, %cst_41 {dimension_numbers = #tpu.dot_dimension_numbers<[1], [0], [0], [1], [0, 0, 1, 1], [], []>} : vector<64x128xbf16>, vector<128x128xbf16>, vector<64x128xf32> -> vector<64x128xf32>
    %41 = arith.addf %34, %40 : vector<64x128xf32>
    %c1_42 = arith.constant 1 : index
    %c2_43 = arith.constant 2 : index
    %c0_44 = arith.constant 0 : index
    %42 = vector.load %arg7[%c1_42, %c2_43, %c0_44] : memref<10x10x128xf32, #tpu.memory_space<vmem>>, vector<8x8x128xf32>
    %43 = arith.truncf %42 : vector<8x8x128xf32> to vector<8x8x128xbf16>
    %44 = vector.shape_cast %43 : vector<8x8x128xbf16> to vector<64x128xbf16>
    %c5 = arith.constant 5 : index
    %c0_45 = arith.constant 0 : index
    %c0_46 = arith.constant 0 : index
    %45 = vector.load %arg2[%c5, %c0_45, %c0_46] : memref<9x128x128xbf16, #tpu.memory_space<vmem>>, vector<1x128x128xbf16>
    %46 = vector.shape_cast %45 : vector<1x128x128xbf16> to vector<128x128xbf16>
    %cst_47 = arith.constant dense<0.000000e+00> : vector<64x128xf32>
    %47 = tpu.matmul %44, %46, %cst_47 {dimension_numbers = #tpu.dot_dimension_numbers<[1], [0], [0], [1], [0, 0, 1, 1], [], []>} : vector<64x128xbf16>, vector<128x128xbf16>, vector<64x128xf32> -> vector<64x128xf32>
    %48 = arith.addf %41, %47 : vector<64x128xf32>
    %c2_48 = arith.constant 2 : index
    %c0_49 = arith.constant 0 : index
    %c0_50 = arith.constant 0 : index
    %49 = vector.load %arg7[%c2_48, %c0_49, %c0_50] : memref<10x10x128xf32, #tpu.memory_space<vmem>>, vector<8x8x128xf32>
    %50 = arith.truncf %49 : vector<8x8x128xf32> to vector<8x8x128xbf16>
    %51 = vector.shape_cast %50 : vector<8x8x128xbf16> to vector<64x128xbf16>
    %c6 = arith.constant 6 : index
    %c0_51 = arith.constant 0 : index
    %c0_52 = arith.constant 0 : index
    %52 = vector.load %arg2[%c6, %c0_51, %c0_52] : memref<9x128x128xbf16, #tpu.memory_space<vmem>>, vector<1x128x128xbf16>
    %53 = vector.shape_cast %52 : vector<1x128x128xbf16> to vector<128x128xbf16>
    %cst_53 = arith.constant dense<0.000000e+00> : vector<64x128xf32>
    %54 = tpu.matmul %51, %53, %cst_53 {dimension_numbers = #tpu.dot_dimension_numbers<[1], [0], [0], [1], [0, 0, 1, 1], [], []>} : vector<64x128xbf16>, vector<128x128xbf16>, vector<64x128xf32> -> vector<64x128xf32>
    %55 = arith.addf %48, %54 : vector<64x128xf32>
    %c2_54 = arith.constant 2 : index
    %c1_55 = arith.constant 1 : index
    %c0_56 = arith.constant 0 : index
    %56 = vector.load %arg7[%c2_54, %c1_55, %c0_56] : memref<10x10x128xf32, #tpu.memory_space<vmem>>, vector<8x8x128xf32>
    %57 = arith.truncf %56 : vector<8x8x128xf32> to vector<8x8x128xbf16>
    %58 = vector.shape_cast %57 : vector<8x8x128xbf16> to vector<64x128xbf16>
    %c7 = arith.constant 7 : index
    %c0_57 = arith.constant 0 : index
    %c0_58 = arith.constant 0 : index
    %59 = vector.load %arg2[%c7, %c0_57, %c0_58] : memref<9x128x128xbf16, #tpu.memory_space<vmem>>, vector<1x128x128xbf16>
    %60 = vector.shape_cast %59 : vector<1x128x128xbf16> to vector<128x128xbf16>
    %cst_59 = arith.constant dense<0.000000e+00> : vector<64x128xf32>
    %61 = tpu.matmul %58, %60, %cst_59 {dimension_numbers = #tpu.dot_dimension_numbers<[1], [0], [0], [1], [0, 0, 1, 1], [], []>} : vector<64x128xbf16>, vector<128x128xbf16>, vector<64x128xf32> -> vector<64x128xf32>
    %62 = arith.addf %55, %61 : vector<64x128xf32>
    %c2_60 = arith.constant 2 : index
    %c2_61 = arith.constant 2 : index
    %c0_62 = arith.constant 0 : index
    %63 = vector.load %arg7[%c2_60, %c2_61, %c0_62] : memref<10x10x128xf32, #tpu.memory_space<vmem>>, vector<8x8x128xf32>
    %64 = arith.truncf %63 : vector<8x8x128xf32> to vector<8x8x128xbf16>
    %65 = vector.shape_cast %64 : vector<8x8x128xbf16> to vector<64x128xbf16>
    %c8 = arith.constant 8 : index
    %c0_63 = arith.constant 0 : index
    %c0_64 = arith.constant 0 : index
    %66 = vector.load %arg2[%c8, %c0_63, %c0_64] : memref<9x128x128xbf16, #tpu.memory_space<vmem>>, vector<1x128x128xbf16>
    %67 = vector.shape_cast %66 : vector<1x128x128xbf16> to vector<128x128xbf16>
    %cst_65 = arith.constant dense<0.000000e+00> : vector<64x128xf32>
    %68 = tpu.matmul %65, %67, %cst_65 {dimension_numbers = #tpu.dot_dimension_numbers<[1], [0], [0], [1], [0, 0, 1, 1], [], []>} : vector<64x128xbf16>, vector<128x128xbf16>, vector<64x128xf32> -> vector<64x128xf32>
    %69 = arith.addf %62, %68 : vector<64x128xf32>
    %c0_66 = arith.constant 0 : index
    %c0_67 = arith.constant 0 : index
    %70 = vector.load %arg3[%c0_66, %c0_67] : memref<1x128xf32, #tpu.memory_space<vmem>>, vector<1x128xf32>
    %71 = vector.shape_cast %70 : vector<1x128xf32> to vector<128xf32>
    %72 = vector.shape_cast %71 : vector<128xf32> to vector<1x128xf32>
    %73 = vector.broadcast %72 : vector<1x128xf32> to vector<64x128xf32>
    %74 = arith.addf %69, %73 : vector<64x128xf32>
    %cst_68 = arith.constant 0.000000e+00 : f32
    %75 = vector.broadcast %cst_68 : f32 to vector<64x128xf32>
    %76 = arith.maximumf %74, %75 : vector<64x128xf32>
    %cst_69 = arith.constant 0.000000e+00 : f32
    %77 = vector.broadcast %cst_69 : f32 to vector<10x10x128xf32>
    %c0_70 = arith.constant 0 : index
    %c0_71 = arith.constant 0 : index
    %c0_72 = arith.constant 0 : index
    %78 = vector.load %arg8[%c0_70, %c0_71, %c0_72] : memref<10x10x128xf32, #tpu.memory_space<vmem>>, vector<10x10x128xf32>
    tpu.vector_store %arg8[%c0_70, %c0_71, %c0_72], %77 {strides = array<i32>} : memref<10x10x128xf32, #tpu.memory_space<vmem>>, vector<10x10x128xf32>,
    %79 = vector.shape_cast %76 : vector<64x128xf32> to vector<8x8x128xf32>
    %c1_73 = arith.constant 1 : index
    %c1_74 = arith.constant 1 : index
    %c0_75 = arith.constant 0 : index
    %80 = vector.load %arg8[%c1_73, %c1_74, %c0_75] : memref<10x10x128xf32, #tpu.memory_space<vmem>>, vector<8x8x128xf32>
    tpu.vector_store %arg8[%c1_73, %c1_74, %c0_75], %79 {strides = array<i32>} : memref<10x10x128xf32, #tpu.memory_space<vmem>>, vector<8x8x128xf32>,
    %c0_76 = arith.constant 0 : index
    %c0_77 = arith.constant 0 : index
    %c0_78 = arith.constant 0 : index
    %81 = vector.load %arg8[%c0_76, %c0_77, %c0_78] : memref<10x10x128xf32, #tpu.memory_space<vmem>>, vector<8x8x128xf32>
    %82 = arith.truncf %81 : vector<8x8x128xf32> to vector<8x8x128xbf16>
    %83 = vector.shape_cast %82 : vector<8x8x128xbf16> to vector<64x128xbf16>
    %c0_79 = arith.constant 0 : index
    %c0_80 = arith.constant 0 : index
    %c0_81 = arith.constant 0 : index
    %84 = vector.load %arg4[%c0_79, %c0_80, %c0_81] : memref<9x128x128xbf16, #tpu.memory_space<vmem>>, vector<1x128x128xbf16>
    %85 = vector.shape_cast %84 : vector<1x128x128xbf16> to vector<128x128xbf16>
    %cst_82 = arith.constant dense<0.000000e+00> : vector<64x128xf32>
    %86 = tpu.matmul %83, %85, %cst_82 {dimension_numbers = #tpu.dot_dimension_numbers<[1], [0], [0], [1], [0, 0, 1, 1], [], []>} : vector<64x128xbf16>, vector<128x128xbf16>, vector<64x128xf32> -> vector<64x128xf32>
    %c0_83 = arith.constant 0 : index
    %c1_84 = arith.constant 1 : index
    %c0_85 = arith.constant 0 : index
    %87 = vector.load %arg8[%c0_83, %c1_84, %c0_85] : memref<10x10x128xf32, #tpu.memory_space<vmem>>, vector<8x8x128xf32>
    %88 = arith.truncf %87 : vector<8x8x128xf32> to vector<8x8x128xbf16>
    %89 = vector.shape_cast %88 : vector<8x8x128xbf16> to vector<64x128xbf16>
    %c1_86 = arith.constant 1 : index
    %c0_87 = arith.constant 0 : index
    %c0_88 = arith.constant 0 : index
    %90 = vector.load %arg4[%c1_86, %c0_87, %c0_88] : memref<9x128x128xbf16, #tpu.memory_space<vmem>>, vector<1x128x128xbf16>
    %91 = vector.shape_cast %90 : vector<1x128x128xbf16> to vector<128x128xbf16>
    %cst_89 = arith.constant dense<0.000000e+00> : vector<64x128xf32>
    %92 = tpu.matmul %89, %91, %cst_89 {dimension_numbers = #tpu.dot_dimension_numbers<[1], [0], [0], [1], [0, 0, 1, 1], [], []>} : vector<64x128xbf16>, vector<128x128xbf16>, vector<64x128xf32> -> vector<64x128xf32>
    %93 = arith.addf %86, %92 : vector<64x128xf32>
    %c0_90 = arith.constant 0 : index
    %c2_91 = arith.constant 2 : index
    %c0_92 = arith.constant 0 : index
    %94 = vector.load %arg8[%c0_90, %c2_91, %c0_92] : memref<10x10x128xf32, #tpu.memory_space<vmem>>, vector<8x8x128xf32>
    %95 = arith.truncf %94 : vector<8x8x128xf32> to vector<8x8x128xbf16>
    %96 = vector.shape_cast %95 : vector<8x8x128xbf16> to vector<64x128xbf16>
    %c2_93 = arith.constant 2 : index
    %c0_94 = arith.constant 0 : index
    %c0_95 = arith.constant 0 : index
    %97 = vector.load %arg4[%c2_93, %c0_94, %c0_95] : memref<9x128x128xbf16, #tpu.memory_space<vmem>>, vector<1x128x128xbf16>
    %98 = vector.shape_cast %97 : vector<1x128x128xbf16> to vector<128x128xbf16>
    %cst_96 = arith.constant dense<0.000000e+00> : vector<64x128xf32>
    %99 = tpu.matmul %96, %98, %cst_96 {dimension_numbers = #tpu.dot_dimension_numbers<[1], [0], [0], [1], [0, 0, 1, 1], [], []>} : vector<64x128xbf16>, vector<128x128xbf16>, vector<64x128xf32> -> vector<64x128xf32>
    %100 = arith.addf %93, %99 : vector<64x128xf32>
    %c1_97 = arith.constant 1 : index
    %c0_98 = arith.constant 0 : index
    %c0_99 = arith.constant 0 : index
    %101 = vector.load %arg8[%c1_97, %c0_98, %c0_99] : memref<10x10x128xf32, #tpu.memory_space<vmem>>, vector<8x8x128xf32>
    %102 = arith.truncf %101 : vector<8x8x128xf32> to vector<8x8x128xbf16>
    %103 = vector.shape_cast %102 : vector<8x8x128xbf16> to vector<64x128xbf16>
    %c3_100 = arith.constant 3 : index
    %c0_101 = arith.constant 0 : index
    %c0_102 = arith.constant 0 : index
    %104 = vector.load %arg4[%c3_100, %c0_101, %c0_102] : memref<9x128x128xbf16, #tpu.memory_space<vmem>>, vector<1x128x128xbf16>
    %105 = vector.shape_cast %104 : vector<1x128x128xbf16> to vector<128x128xbf16>
    %cst_103 = arith.constant dense<0.000000e+00> : vector<64x128xf32>
    %106 = tpu.matmul %103, %105, %cst_103 {dimension_numbers = #tpu.dot_dimension_numbers<[1], [0], [0], [1], [0, 0, 1, 1], [], []>} : vector<64x128xbf16>, vector<128x128xbf16>, vector<64x128xf32> -> vector<64x128xf32>
    %107 = arith.addf %100, %106 : vector<64x128xf32>
    %c1_104 = arith.constant 1 : index
    %c1_105 = arith.constant 1 : index
    %c0_106 = arith.constant 0 : index
    %108 = vector.load %arg8[%c1_104, %c1_105, %c0_106] : memref<10x10x128xf32, #tpu.memory_space<vmem>>, vector<8x8x128xf32>
    %109 = arith.truncf %108 : vector<8x8x128xf32> to vector<8x8x128xbf16>
    %110 = vector.shape_cast %109 : vector<8x8x128xbf16> to vector<64x128xbf16>
    %c4_107 = arith.constant 4 : index
    %c0_108 = arith.constant 0 : index
    %c0_109 = arith.constant 0 : index
    %111 = vector.load %arg4[%c4_107, %c0_108, %c0_109] : memref<9x128x128xbf16, #tpu.memory_space<vmem>>, vector<1x128x128xbf16>
    %112 = vector.shape_cast %111 : vector<1x128x128xbf16> to vector<128x128xbf16>
    %cst_110 = arith.constant dense<0.000000e+00> : vector<64x128xf32>
    %113 = tpu.matmul %110, %112, %cst_110 {dimension_numbers = #tpu.dot_dimension_numbers<[1], [0], [0], [1], [0, 0, 1, 1], [], []>} : vector<64x128xbf16>, vector<128x128xbf16>, vector<64x128xf32> -> vector<64x128xf32>
    %114 = arith.addf %107, %113 : vector<64x128xf32>
    %c1_111 = arith.constant 1 : index
    %c2_112 = arith.constant 2 : index
    %c0_113 = arith.constant 0 : index
    %115 = vector.load %arg8[%c1_111, %c2_112, %c0_113] : memref<10x10x128xf32, #tpu.memory_space<vmem>>, vector<8x8x128xf32>
    %116 = arith.truncf %115 : vector<8x8x128xf32> to vector<8x8x128xbf16>
    %117 = vector.shape_cast %116 : vector<8x8x128xbf16> to vector<64x128xbf16>
    %c5_114 = arith.constant 5 : index
    %c0_115 = arith.constant 0 : index
    %c0_116 = arith.constant 0 : index
    %118 = vector.load %arg4[%c5_114, %c0_115, %c0_116] : memref<9x128x128xbf16, #tpu.memory_space<vmem>>, vector<1x128x128xbf16>
    %119 = vector.shape_cast %118 : vector<1x128x128xbf16> to vector<128x128xbf16>
    %cst_117 = arith.constant dense<0.000000e+00> : vector<64x128xf32>
    %120 = tpu.matmul %117, %119, %cst_117 {dimension_numbers = #tpu.dot_dimension_numbers<[1], [0], [0], [1], [0, 0, 1, 1], [], []>} : vector<64x128xbf16>, vector<128x128xbf16>, vector<64x128xf32> -> vector<64x128xf32>
    %121 = arith.addf %114, %120 : vector<64x128xf32>
    %c2_118 = arith.constant 2 : index
    %c0_119 = arith.constant 0 : index
    %c0_120 = arith.constant 0 : index
    %122 = vector.load %arg8[%c2_118, %c0_119, %c0_120] : memref<10x10x128xf32, #tpu.memory_space<vmem>>, vector<8x8x128xf32>
    %123 = arith.truncf %122 : vector<8x8x128xf32> to vector<8x8x128xbf16>
    %124 = vector.shape_cast %123 : vector<8x8x128xbf16> to vector<64x128xbf16>
    %c6_121 = arith.constant 6 : index
    %c0_122 = arith.constant 0 : index
    %c0_123 = arith.constant 0 : index
    %125 = vector.load %arg4[%c6_121, %c0_122, %c0_123] : memref<9x128x128xbf16, #tpu.memory_space<vmem>>, vector<1x128x128xbf16>
    %126 = vector.shape_cast %125 : vector<1x128x128xbf16> to vector<128x128xbf16>
    %cst_124 = arith.constant dense<0.000000e+00> : vector<64x128xf32>
    %127 = tpu.matmul %124, %126, %cst_124 {dimension_numbers = #tpu.dot_dimension_numbers<[1], [0], [0], [1], [0, 0, 1, 1], [], []>} : vector<64x128xbf16>, vector<128x128xbf16>, vector<64x128xf32> -> vector<64x128xf32>
    %128 = arith.addf %121, %127 : vector<64x128xf32>
    %c2_125 = arith.constant 2 : index
    %c1_126 = arith.constant 1 : index
    %c0_127 = arith.constant 0 : index
    %129 = vector.load %arg8[%c2_125, %c1_126, %c0_127] : memref<10x10x128xf32, #tpu.memory_space<vmem>>, vector<8x8x128xf32>
    %130 = arith.truncf %129 : vector<8x8x128xf32> to vector<8x8x128xbf16>
    %131 = vector.shape_cast %130 : vector<8x8x128xbf16> to vector<64x128xbf16>
    %c7_128 = arith.constant 7 : index
    %c0_129 = arith.constant 0 : index
    %c0_130 = arith.constant 0 : index
    %132 = vector.load %arg4[%c7_128, %c0_129, %c0_130] : memref<9x128x128xbf16, #tpu.memory_space<vmem>>, vector<1x128x128xbf16>
    %133 = vector.shape_cast %132 : vector<1x128x128xbf16> to vector<128x128xbf16>
    %cst_131 = arith.constant dense<0.000000e+00> : vector<64x128xf32>
    %134 = tpu.matmul %131, %133, %cst_131 {dimension_numbers = #tpu.dot_dimension_numbers<[1], [0], [0], [1], [0, 0, 1, 1], [], []>} : vector<64x128xbf16>, vector<128x128xbf16>, vector<64x128xf32> -> vector<64x128xf32>
    %135 = arith.addf %128, %134 : vector<64x128xf32>
    %c2_132 = arith.constant 2 : index
    %c2_133 = arith.constant 2 : index
    %c0_134 = arith.constant 0 : index
    %136 = vector.load %arg8[%c2_132, %c2_133, %c0_134] : memref<10x10x128xf32, #tpu.memory_space<vmem>>, vector<8x8x128xf32>
    %137 = arith.truncf %136 : vector<8x8x128xf32> to vector<8x8x128xbf16>
    %138 = vector.shape_cast %137 : vector<8x8x128xbf16> to vector<64x128xbf16>
    %c8_135 = arith.constant 8 : index
    %c0_136 = arith.constant 0 : index
    %c0_137 = arith.constant 0 : index
    %139 = vector.load %arg4[%c8_135, %c0_136, %c0_137] : memref<9x128x128xbf16, #tpu.memory_space<vmem>>, vector<1x128x128xbf16>
    %140 = vector.shape_cast %139 : vector<1x128x128xbf16> to vector<128x128xbf16>
    %cst_138 = arith.constant dense<0.000000e+00> : vector<64x128xf32>
    %141 = tpu.matmul %138, %140, %cst_138 {dimension_numbers = #tpu.dot_dimension_numbers<[1], [0], [0], [1], [0, 0, 1, 1], [], []>} : vector<64x128xbf16>, vector<128x128xbf16>, vector<64x128xf32> -> vector<64x128xf32>
    %142 = arith.addf %135, %141 : vector<64x128xf32>
    %c0_139 = arith.constant 0 : index
    %c0_140 = arith.constant 0 : index
    %143 = vector.load %arg5[%c0_139, %c0_140] : memref<1x128xf32, #tpu.memory_space<vmem>>, vector<1x128xf32>
    %144 = vector.shape_cast %143 : vector<1x128xf32> to vector<128xf32>
    %145 = vector.shape_cast %144 : vector<128xf32> to vector<1x128xf32>
    %146 = vector.broadcast %145 : vector<1x128xf32> to vector<64x128xf32>
    %147 = arith.addf %142, %146 : vector<64x128xf32>
    %cst_141 = arith.constant 0.000000e+00 : f32
    %148 = vector.broadcast %cst_141 : f32 to vector<64x128xf32>
    %149 = arith.maximumf %147, %148 : vector<64x128xf32>
    %150 = vector.shape_cast %149 : vector<64x128xf32> to vector<8x8x128xf32>
    %c0_142 = arith.constant 0 : index
    %c0_143 = arith.constant 0 : index
    %c0_144 = arith.constant 0 : index
    %c0_145 = arith.constant 0 : index
    %151 = vector.load %arg6[%c0_142, %c0_143, %c0_144, %c0_145] : memref<1x8x8x128xf32, #tpu.memory_space<vmem>>, vector<1x8x8x128xf32>
    %152 = vector.shape_cast %151 : vector<1x8x8x128xf32> to vector<8x8x128xf32>
    %153 = vector.shape_cast %150 : vector<8x8x128xf32> to vector<1x8x8x128xf32>
    tpu.vector_store %arg6[%c0_142, %c0_143, %c0_144, %c0_145], %153 {strides = array<i32>} : memref<1x8x8x128xf32, #tpu.memory_space<vmem>>, vector<1x8x8x128xf32>,
    return
  }
  func.func @transform_0(%arg0: i32) -> (i32, i32, i32, i32) {
    %c0_i32 = arith.constant 0 : i32
    %c0_i32_0 = arith.constant 0 : i32
    %c0_i32_1 = arith.constant 0 : i32
    %c0_i32_2 = arith.constant 0 : i32
    return %arg0, %c0_i32, %c0_i32_0, %c0_i32_1 : i32, i32, i32, i32
  }
  func.func @transform_1(%arg0: i32) -> (i32, i32, i32) {
    %c0_i32 = arith.constant 0 : i32
    %c0_i32_0 = arith.constant 0 : i32
    %c0_i32_1 = arith.constant 0 : i32
    %c0_i32_2 = arith.constant 0 : i32
    return %c0_i32, %c0_i32_0, %c0_i32_1 : i32, i32, i32
  }
  func.func @transform_2(%arg0: i32) -> (i32, i32) {
    %c0_i32 = arith.constant 0 : i32
    %c0_i32_0 = arith.constant 0 : i32
    %c0_i32_1 = arith.constant 0 : i32
    return %c0_i32, %c0_i32_0 : i32, i32
  }
  func.func @transform_3(%arg0: i32) -> (i32, i32, i32) {
    %c0_i32 = arith.constant 0 : i32
    %c0_i32_0 = arith.constant 0 : i32
    %c0_i32_1 = arith.constant 0 : i32
    %c0_i32_2 = arith.constant 0 : i32
    return %c0_i32, %c0_i32_0, %c0_i32_1 : i32, i32, i32
  }
  func.func @transform_4(%arg0: i32) -> (i32, i32) {
    %c0_i32 = arith.constant 0 : i32
    %c0_i32_0 = arith.constant 0 : i32
    %c0_i32_1 = arith.constant 0 : i32
    return %c0_i32, %c0_i32_0 : i32, i32
  }
  func.func @transform_5(%arg0: i32) -> (i32, i32, i32, i32) {
    %c0_i32 = arith.constant 0 : i32
    %c0_i32_0 = arith.constant 0 : i32
    %c0_i32_1 = arith.constant 0 : i32
    %c0_i32_2 = arith.constant 0 : i32
    return %arg0, %c0_i32, %c0_i32_0, %c0_i32_1 : i32, i32, i32, i32
  }
}

</mosaic_0001>

<llo_original>
// kernel: tpu_custom_call.1
$region0: #{tpu_custom_call.1}
  #allocation0 [shape = 'u32[]', space=smem, size = 0x4, offset = 0x4, fixed_abs, tag = 'smem constant byte address 0x4 - core index']
  #allocation1 [shape = 'u32[144,128]{1,0:T(1,128)}', space=vmem, size = 0x12000, scoped, tag = 'internal scratch']
  #allocation2 [shape = 'f32[10,10,128]{2,1,0:T(8,128)}', space=vmem, size = 0x14000, scoped, tag = 'scratch operand']
  #allocation3 [shape = 'f32[10,10,128]{2,1,0:T(8,128)}', space=vmem, size = 0x14000, scoped, tag = 'scratch operand']
  %s0 = inlined_call_operand.hbm [shape: f32[2,16,16,128], index: 0, kind: input, shape index: {}]
  %s1 = inlined_call_operand.hbm [shape: bf16[9,128,128], index: 1, kind: input, shape index: {}]
  %s2 = inlined_call_operand.vmem [shape: f32[1,128], index: 2, kind: input, shape index: {}]
  %s3 = inlined_call_operand.hbm [shape: bf16[9,128,128], index: 3, kind: input, shape index: {}]
  %s4 = inlined_call_operand.vmem [shape: f32[1,128], index: 4, kind: input, shape index: {}]
  %s5 = inlined_call_operand.hbm [shape: f32[2,8,8,128], index: 5, kind: output, shape index: {}]
  %s6 = sld [smem:[#allocation0]]
  $region65: #{tpu_custom_call.1} parent=0
    _
  %s8 = ssub.s32 1, %s6
  %s9 = scalar_select 0, %s8, %s6
  $region1: #{tpu_custom_call.1} parent=0
    #allocation4 [shape = 'u8[262144]{0}', space=vmem, size = 0x40000, scoped, tag = 'input window, operand 0']
    #allocation5 [shape = 's32[2]{0}', space=sflag, size = 0x8, scoped, tag = 'scoped memory for tpu_custom_call.1']
    #allocation6 [shape = 's32[2]{0}', space=sflag, size = 0x8, scoped, tag = 'scoped memory for tpu_custom_call.1']
    #allocation7 [shape = 'u8[294912]{0}', space=vmem, size = 0x48000, scoped, tag = 'input window, operand 1, single buffered']
    #allocation8 [shape = 's32[1]{0}', space=sflag, size = 0x4, scoped, tag = 'scoped memory for tpu_custom_call.1']
    #allocation9 [shape = 'u8[294912]{0}', space=vmem, size = 0x48000, scoped, tag = 'input window, operand 3, single buffered']
    #allocation10 [shape = 'u8[65536]{0}', space=vmem, size = 0x10000, scoped, tag = 'output window, operand 0']
    %10 = vsyncpa [#allocation5], 0
    %s11 = scalar_lea.sflag [#allocation5], 1
    %12 = vsyncpa %s11, 0
    %13 = vsyncpa [#allocation8], 0
    %14 = vsyncpa [#allocation6], 0
    %s15 = scalar_lea.sflag [#allocation6], 1
    %16 = vsyncpa %s15, 0
    loop: start=0, step=1, limit=4
    $region2: #{tpu_custom_call.1} parent=1 // loop_pre_header
      _
    $region3: #{tpu_custom_call.1} parent=1 // loop_header
      %s18 = sphi 0, %s22
      %p19 = scmp.ge.s32.totalorder %s18, 4
      %s28 = sphi 0, %s30
      %s31 = sphi 0, %s28
      %s32 = sphi 0, %s31
      %s48 = sphi 0, %s32
      %s52 = sphi 0, %s52
      %s54 = sphi 0, %s52
      %s55 = sphi 0, %s54
      %s69 = sphi 0, %s55
      %s73 = sphi 0, %s73
      %s75 = sphi 0, %s73
      %s76 = sphi 0, %s75
      %s90 = sphi 0, %s76
      %s94 = sphi 0, %s94
      %s96 = sphi 0, %s94
      %s97 = sphi 0, %s96
      %s111 = sphi 0, %s97
      %s115 = sphi 0, %s115
      %s117 = sphi 0, %s115
      %s118 = sphi 0, %s117
      %s132 = sphi 0, %s118
      %s138 = sphi 0, %s140
      %s141 = sphi 0, %s138
      %s142 = sphi 0, %s141
      %s158 = sphi 0, %s142
    $region4: #{tpu_custom_call.1} parent=1 // loop_header_branch
      %21 = sbr.rel (%p19) target = $region8
    $region5: #{tpu_custom_call.1} parent=1 // loop_body
      %s23 = ssub.s32 %s18, 1
      %s24 = ssub.s32 %s18, 2
      %s25 = sadd.s32 %s18, 1
      %s26 = ssub.s32 %s18, %s25
      %p27 = scmp.eq.s32.totalorder %s26, 0
      %s29 = sadd.s32 %s28, 1
      %s30 = scalar_select %p27, %s28, %s29
      %p33 = pneg %p27
      %p34 = scmp.eq.s32.totalorder %s18, 1
      %p35 = por %p33, %p34
      %p36 = scmp.ne.s32.totalorder %s28, %s31
      %p37 = scmp.eq.s32.totalorder %s18, 0
      %p38 = por %p36, %p37
      %p39 = scmp.ne.s32.totalorder %s28, %s31
      %p40 = scmp.eq.s32.totalorder %s23, 1
      %p41 = por %p39, %p40
      %p42 = scmp.ne.s32.totalorder %s31, %s32
      %p43 = scmp.eq.s32.totalorder %s23, 0
      %p44 = por %p42, %p43
      %p45 = scmp.ne.s32.totalorder %s31, %s32
      %p46 = scmp.eq.s32.totalorder %s24, 1
      %p47 = por %p45, %p46
      %p49 = scmp.ne.s32.totalorder %s32, %s48
      %p50 = scmp.eq.s32.totalorder %s24, 0
      %p51 = por %p49, %p50
      %s53 = sadd.s32 %s52, 1
      %p56 = scmp.eq.s32.totalorder %s18, 1
      %p57 = scmp.ne.s32.totalorder %s52, %s54
      %p58 = scmp.eq.s32.totalorder %s18, 0
      %p59 = por %p57, %p58
      %p60 = scmp.ne.s32.totalorder %s52, %s54
      %p61 = scmp.eq.s32.totalorder %s23, 1
      %p62 = por %p60, %p61
      %p63 = scmp.ne.s32.totalorder %s54, %s55
      %p64 = scmp.eq.s32.totalorder %s23, 0
      %p65 = por %p63, %p64
      %p66 = scmp.ne.s32.totalorder %s54, %s55
      %p67 = scmp.eq.s32.totalorder %s24, 1
      %p68 = por %p66, %p67
      %p70 = scmp.ne.s32.totalorder %s55, %s69
      %p71 = scmp.eq.s32.totalorder %s24, 0
      %p72 = por %p70, %p71
      %s74 = sadd.s32 %s73, 1
      %p77 = scmp.eq.s32.totalorder %s18, 1
      %p78 = scmp.ne.s32.totalorder %s73, %s75
      %p79 = scmp.eq.s32.totalorder %s18, 0
      %p80 = por %p78, %p79
      %p81 = scmp.ne.s32.totalorder %s73, %s75
      %p82 = scmp.eq.s32.totalorder %s23, 1
      %p83 = por %p81, %p82
      %p84 = scmp.ne.s32.totalorder %s75, %s76
      %p85 = scmp.eq.s32.totalorder %s23, 0
      %p86 = por %p84, %p85
      %p87 = scmp.ne.s32.totalorder %s75, %s76
      %p88 = scmp.eq.s32.totalorder %s24, 1
      %p89 = por %p87, %p88
      %p91 = scmp.ne.s32.totalorder %s76, %s90
      %p92 = scmp.eq.s32.totalorder %s24, 0
      %p93 = por %p91, %p92
      %s95 = sadd.s32 %s94, 1
      %p98 = scmp.eq.s32.totalorder %s18, 1
      %p99 = scmp.ne.s32.totalorder %s94, %s96
      %p100 = scmp.eq.s32.totalorder %s18, 0
      %p101 = por %p99, %p100
      %p102 = scmp.ne.s32.totalorder %s94, %s96
      %p103 = scmp.eq.s32.totalorder %s23, 1
      %p104 = por %p102, %p103
      %p105 = scmp.ne.s32.totalorder %s96, %s97
      %p106 = scmp.eq.s32.totalorder %s23, 0
      %p107 = por %p105, %p106
      %p108 = scmp.ne.s32.totalorder %s96, %s97
      %p109 = scmp.eq.s32.totalorder %s24, 1
      %p110 = por %p108, %p109
      %p112 = scmp.ne.s32.totalorder %s97, %s111
      %p113 = scmp.eq.s32.totalorder %s24, 0
      %p114 = por %p112, %p113
      %s116 = sadd.s32 %s115, 1
      %p119 = scmp.eq.s32.totalorder %s18, 1
      %p120 = scmp.ne.s32.totalorder %s115, %s117
      %p121 = scmp.eq.s32.totalorder %s18, 0
      %p122 = por %p120, %p121
      %p123 = scmp.ne.s32.totalorder %s115, %s117
      %p124 = scmp.eq.s32.totalorder %s23, 1
      %p125 = por %p123, %p124
      %p126 = scmp.ne.s32.totalorder %s117, %s118
      %p127 = scmp.eq.s32.totalorder %s23, 0
      %p128 = por %p126, %p127
      %p129 = scmp.ne.s32.totalorder %s117, %s118
      %p130 = scmp.eq.s32.totalorder %s24, 1
      %p131 = por %p129, %p130
      %p133 = scmp.ne.s32.totalorder %s118, %s132
      %p134 = scmp.eq.s32.totalorder %s24, 0
      %p135 = por %p133, %p134
      %s136 = ssub.s32 %s18, %s25
      %p137 = scmp.eq.s32.totalorder %s136, 0
      %s139 = sadd.s32 %s138, 1
      %s140 = scalar_select %p137, %s138, %s139
      %p143 = pneg %p137
      %p144 = scmp.eq.s32.totalorder %s18, 1
      %p145 = por %p143, %p144
      %p146 = scmp.ne.s32.totalorder %s138, %s141
      %p147 = scmp.eq.s32.totalorder %s18, 0
      %p148 = por %p146, %p147
      %p149 = scmp.ne.s32.totalorder %s138, %s141
      %p150 = scmp.eq.s32.totalorder %s23, 1
      %p151 = por %p149, %p150
      %p152 = scmp.ne.s32.totalorder %s141, %s142
      %p153 = scmp.eq.s32.totalorder %s23, 0
      %p154 = por %p152, %p153
      %p155 = scmp.ne.s32.totalorder %s141, %s142
      %p156 = scmp.eq.s32.totalorder %s24, 1
      %p157 = por %p155, %p156
      %p159 = scmp.ne.s32.totalorder %s142, %s158
      %p160 = scmp.eq.s32.totalorder %s24, 0
      %p161 = por %p159, %p160
      %p162 = scmp.le.s32.totalorder 1, %s18
      %p163 = scmp.lt.s32.totalorder %s18, 3
      %p164 = pnand %p162, %p163
      %p165 = pneg %p164
      // Predicated region
      $region9: #{tpu_custom_call.1} parent=5 // pred_check
        _
      $region10: #{tpu_custom_call.1} parent=5 // pred_check_branch
        %167 = sbr.rel (%p164) target = $region12
      $region11: #{tpu_custom_call.1} parent=5 // pred_region
        %s168 = ssub.s32 %s18, 1
        // Predicated region
        $region13: #{tpu_custom_call.1} parent=11 // pred_check
          %p169 = pneg %p65
        $region14: #{tpu_custom_call.1} parent=11 // pred_check_branch
          %171 = sbr.rel (%p169) target = $region16
        $region15: #{tpu_custom_call.1} parent=11 // pred_region
          %s173 = ssub.s32 9216, 9216
          %174 = vsyncadd [#allocation8], %s173
          %s175 = sshll.u32 [#allocation7], 4
          %s176 = int_to_ptr.vmem [resolvable:$true] %s175
          %181 = dma.hbm_to_vmem [thread:$0]  %s1, 9216, %s176, [#allocation8], 64, 64, 4
        $region16: #{tpu_custom_call.1} parent=11 // pred_fallthru
          _
        // Predicated region
        $region17: #{tpu_custom_call.1} parent=11 // pred_check
          %p182 = pneg %p86
        $region18: #{tpu_custom_call.1} parent=11 // pred_check_branch
          %184 = sbr.rel (%p182) target = $region20
        $region19: #{tpu_custom_call.1} parent=11 // pred_region
          _
        $region20: #{tpu_custom_call.1} parent=11 // pred_fallthru
          _
        // Predicated region
        $region21: #{tpu_custom_call.1} parent=11 // pred_check
          %p185 = pneg %p107
        $region22: #{tpu_custom_call.1} parent=11 // pred_check_branch
          %187 = sbr.rel (%p185) target = $region24
        $region23: #{tpu_custom_call.1} parent=11 // pred_region
          %s189 = ssub.s32 9216, 9216
          %190 = vsyncadd [#allocation8], %s189
          %s191 = sshll.u32 [#allocation9], 4
          %s192 = int_to_ptr.vmem [resolvable:$true] %s191
          %197 = dma.hbm_to_vmem [thread:$0]  %s3, 9216, %s192, [#allocation8], 64, 64, 4
        $region24: #{tpu_custom_call.1} parent=11 // pred_fallthru
          _
        // Predicated region
        $region25: #{tpu_custom_call.1} parent=11 // pred_check
          %p198 = pneg %p128
        $region26: #{tpu_custom_call.1} parent=11 // pred_check_branch
          %200 = sbr.rel (%p198) target = $region28
        $region27: #{tpu_custom_call.1} parent=11 // pred_region
          _
        $region28: #{tpu_custom_call.1} parent=11 // pred_fallthru
          _
      $region12: #{tpu_custom_call.1} parent=5 // pred_fallthru
        _
      %p201 = scmp.lt.s32.totalorder %s18, 2
      // Predicated region
      $region29: #{tpu_custom_call.1} parent=5 // pred_check
        %p202 = pneg %p201
      $region30: #{tpu_custom_call.1} parent=5 // pred_check_branch
        %204 = sbr.rel (%p202) target = $region32
      $region31: #{tpu_custom_call.1} parent=5 // pred_region
        // Predicated region
        $region33: #{tpu_custom_call.1} parent=31 // pred_check
          %p205 = pneg %p38
        $region34: #{tpu_custom_call.1} parent=31 // pred_check_branch
          %207 = sbr.rel (%p205) target = $region36
        $region35: #{tpu_custom_call.1} parent=31 // pred_region
          %s208 = sand.u32 %s28, 1
          %s209 = scalar_lea.sflag [#allocation5], %s208
          %s210 = sand.u32 %s28, 1
          %s211 = smul.addr %s210, 256
          %s212 = scalar_lea.vmem [#allocation4], %s211
          %s214 = ssub.s32 4096, 4096
          %215 = vsyncadd %s209, %s214
          %s216 = smul.addr %s18, 32
          %s217 = smul.addr %s216, 128
          %s218 = scalar_lea.hbm %s0, %s217
          %s219 = sshll.u32 %s212, 4
          %s220 = int_to_ptr.vmem [resolvable:$true] %s219
          %225 = dma.hbm_to_vmem [thread:$0]  %s218, 4096, %s220, %s209, 128, 128, 8
        $region36: #{tpu_custom_call.1} parent=31 // pred_fallthru
          _
      $region32: #{tpu_custom_call.1} parent=5 // pred_fallthru
        _
      %p226 = scmp.le.s32.totalorder 1, %s18
      %p227 = scmp.lt.s32.totalorder %s18, 3
      %p228 = pnand %p226, %p227
      %p229 = pneg %p228
      // Predicated region
      $region37: #{tpu_custom_call.1} parent=5 // pred_check
        _
      $region38: #{tpu_custom_call.1} parent=5 // pred_check_branch
        %231 = sbr.rel (%p228) target = $region40
      $region39: #{tpu_custom_call.1} parent=5 // pred_region
        %s232 = ssub.s32 %s18, 1
        %s233 = sand.u32 %s31, 1
        %s234 = scalar_lea.sflag [#allocation5], %s233
        %s235 = sand.u32 %s31, 1
        %s236 = smul.addr %s235, 256
        %s237 = scalar_lea.vmem [#allocation4], %s236
        // Predicated region
        $region41: #{tpu_custom_call.1} parent=39 // pred_check
          %p238 = pneg %p44
        $region42: #{tpu_custom_call.1} parent=39 // pred_check_branch
          %240 = sbr.rel (%p238) target = $region44
        $region43: #{tpu_custom_call.1} parent=39 // pred_region
          %241 = dma.done %s234, 4096
        $region44: #{tpu_custom_call.1} parent=39 // pred_fallthru
          _
        // Predicated region
        $region45: #{tpu_custom_call.1} parent=39 // pred_check
          %p242 = pneg %p65
        $region46: #{tpu_custom_call.1} parent=39 // pred_check_branch
          %244 = sbr.rel (%p242) target = $region48
        $region47: #{tpu_custom_call.1} parent=39 // pred_region
          %245 = dma.done [#allocation8], 9216
        $region48: #{tpu_custom_call.1} parent=39 // pred_fallthru
          _
        // Predicated region
        $region49: #{tpu_custom_call.1} parent=39 // pred_check
          %p246 = pneg %p107
        $region50: #{tpu_custom_call.1} parent=39 // pred_check_branch
          %248 = sbr.rel (%p246) target = $region52
        $region51: #{tpu_custom_call.1} parent=39 // pred_region
          %249 = dma.done [#allocation8], 9216
        $region52: #{tpu_custom_call.1} parent=39 // pred_fallthru
          _
        %s250 = sand.u32 %s31, 1
        %s251 = scalar_lea.sflag [#allocation5], %s250
        %s252 = sand.u32 %s31, 1
        %s253 = smul.addr %s252, 256
        %s254 = scalar_lea.vmem [#allocation4], %s253
        %p255 = pneg %p44
        %p256 = pneg %p41
        %p257 = pneg %p65
        %p258 = pneg %p62
        %p259 = pneg %p86
        %p260 = pneg %p83
        %p261 = pneg %p107
        %p262 = pneg %p104
        %p263 = pneg %p128
        %p264 = pneg %p125
        %p265 = pneg %p154
        %p266 = pneg %p151
        %s267 = sand.u32 %s141, 1
        %s268 = scalar_lea.sflag [#allocation6], %s267
        %s269 = sand.u32 %s141, 1
        %s270 = smul.addr %s269, 64
        %s271 = scalar_lea.vmem [#allocation10], %s270
        %v273 = vld [vmem:[%s237] sm:$0xff]
        %v274 = vld [vmem:[%s237 + $0x8] sm:$0xff]
        %v275 = vld [vmem:[%s237 + $0x10] sm:$0xff]
        %v276 = vld [vmem:[%s237 + $0x18] sm:$0xff]
        %v277 = vld [vmem:[%s237 + $0x20] sm:$0xff]
        %v278 = vld [vmem:[%s237 + $0x28] sm:$0xff]
        %v279 = vld [vmem:[%s237 + $0x30] sm:$0xff]
        %v280 = vld [vmem:[%s237 + $0x38] sm:$0xff]
        %v281 = vld [vmem:[%s237 + $0x40] sm:$0xff]
        %v282 = vld [vmem:[%s237 + $0x48] sm:$0xff]
        %v283 = vld [vmem:[%s237 + $0x50] sm:$0xff]
        %v284 = vld [vmem:[%s237 + $0x58] sm:$0xff]
        %v285 = vld [vmem:[%s237 + $0x60] sm:$0xff]
        %v286 = vld [vmem:[%s237 + $0x68] sm:$0xff]
        %v287 = vld [vmem:[%s237 + $0x70] sm:$0xff]
        %v288 = vld [vmem:[%s237 + $0x78] sm:$0xff]
        %v289 = vld [vmem:[%s237 + $0x80] sm:$0xff]
        %v290 = vld [vmem:[%s237 + $0x88] sm:$0xff]
        %v291 = vld [vmem:[%s237 + $0x90] sm:$0xff]
        %v292 = vld [vmem:[%s237 + $0x98] sm:$0xff]
        %v293 = vld [vmem:[%s237 + $0xa0] sm:$0xff]
        %v294 = vld [vmem:[%s237 + $0xa8] sm:$0xff]
        %v295 = vld [vmem:[%s237 + $0xb0] sm:$0xff]
        %v296 = vld [vmem:[%s237 + $0xb8] sm:$0xff]
        %v297 = vld [vmem:[%s237 + $0xc0] sm:$0xff]
        %v298 = vld [vmem:[%s237 + $0xc8] sm:$0xff]
        %v299 = vld [vmem:[%s237 + $0xd0] sm:$0xff]
        %v300 = vld [vmem:[%s237 + $0xd8] sm:$0xff]
        %v301 = vld [vmem:[%s237 + $0xe0] sm:$0xff]
        %v302 = vld [vmem:[%s237 + $0xe8] sm:$0xff]
        %v303 = vld [vmem:[%s237 + $0xf0] sm:$0xff]
        %v304 = vld [vmem:[%s237 + $0xf8] sm:$0xff]
        %v337 = vcombine.high %v273, %v273
        %v339 = vunpack.c.l.s4 1983009808
        %v340 = vunpack.c.0.s8 %v339
        %v341 = vlaneseq
        %v342 = vshrl.u32 %v341, 7
        %v343 = vsub.s32 %v340, %v342
        %v344 = vrot.slane %v273, %v343
        %v346 = vunpack.c.l.s4 1983009808
        %v347 = vunpack.c.0.s8 %v346
        %v348 = vlaneseq
        %v349 = vshrl.u32 %v348, 7
        %v350 = vsub.s32 %v347, %v349
        %v351 = vrot.slane %v337, %v350
        %v352 = vcombine.high %v344, %v344
        %v353 = vcombine.high %v351, %v351
        %v354 = vcombine.high %v274, %v274
        %v356 = vunpack.c.l.s4 1983009808
        %v357 = vunpack.c.0.s8 %v356
        %v358 = vlaneseq
        %v359 = vshrl.u32 %v358, 7
        %v360 = vsub.s32 %v357, %v359
        %v361 = vrot.slane %v274, %v360
        %v363 = vunpack.c.l.s4 1983009808
        %v364 = vunpack.c.0.s8 %v363
        %v365 = vlaneseq
        %v366 = vshrl.u32 %v365, 7
        %v367 = vsub.s32 %v364, %v366
        %v368 = vrot.slane %v354, %v367
        %v369 = vcombine.high %v361, %v361
        %v370 = vcombine.high %v368, %v368
        %v371 = vcombine.high %v275, %v275
        %v373 = vunpack.c.l.s4 1983009808
        %v374 = vunpack.c.0.s8 %v373
        %v375 = vlaneseq
        %v376 = vshrl.u32 %v375, 7
        %v377 = vsub.s32 %v374, %v376
        %v378 = vrot.slane %v275, %v377
        %v380 = vunpack.c.l.s4 1983009808
        %v381 = vunpack.c.0.s8 %v380
        %v382 = vlaneseq
        %v383 = vshrl.u32 %v382, 7
        %v384 = vsub.s32 %v381, %v383
        %v385 = vrot.slane %v371, %v384
        %v386 = vcombine.high %v378, %v378
        %v387 = vcombine.high %v385, %v385
        %v388 = vcombine.high %v276, %v276
        %v390 = vunpack.c.l.s4 1983009808
        %v391 = vunpack.c.0.s8 %v390
        %v392 = vlaneseq
        %v393 = vshrl.u32 %v392, 7
        %v394 = vsub.s32 %v391, %v393
        %v395 = vrot.slane %v276, %v394
        %v397 = vunpack.c.l.s4 1983009808
        %v398 = vunpack.c.0.s8 %v397
        %v399 = vlaneseq
        %v400 = vshrl.u32 %v399, 7
        %v401 = vsub.s32 %v398, %v400
        %v402 = vrot.slane %v388, %v401
        %v403 = vcombine.high %v395, %v395
        %v404 = vcombine.high %v402, %v402
        %v405 = vcombine.high %v277, %v277
        %v407 = vunpack.c.l.s4 1983009808
        %v408 = vunpack.c.0.s8 %v407
        %v409 = vlaneseq
        %v410 = vshrl.u32 %v409, 7
        %v411 = vsub.s32 %v408, %v410
        %v412 = vrot.slane %v277, %v411
        %v414 = vunpack.c.l.s4 1983009808
        %v415 = vunpack.c.0.s8 %v414
        %v416 = vlaneseq
        %v417 = vshrl.u32 %v416, 7
        %v418 = vsub.s32 %v415, %v417
        %v419 = vrot.slane %v405, %v418
        %v420 = vcombine.high %v412, %v412
        %v421 = vcombine.high %v419, %v419
        %v422 = vcombine.high %v278, %v278
        %v424 = vunpack.c.l.s4 1983009808
        %v425 = vunpack.c.0.s8 %v424
        %v426 = vlaneseq
        %v427 = vshrl.u32 %v426, 7
        %v428 = vsub.s32 %v425, %v427
        %v429 = vrot.slane %v278, %v428
        %v431 = vunpack.c.l.s4 1983009808
        %v432 = vunpack.c.0.s8 %v431
        %v433 = vlaneseq
        %v434 = vshrl.u32 %v433, 7
        %v435 = vsub.s32 %v432, %v434
        %v436 = vrot.slane %v422, %v435
        %v437 = vcombine.high %v429, %v429
        %v438 = vcombine.high %v436, %v436
        %v439 = vcombine.high %v279, %v279
        %v441 = vunpack.c.l.s4 1983009808
        %v442 = vunpack.c.0.s8 %v441
        %v443 = vlaneseq
        %v444 = vshrl.u32 %v443, 7
        %v445 = vsub.s32 %v442, %v444
        %v446 = vrot.slane %v279, %v445
        %v448 = vunpack.c.l.s4 1983009808
        %v449 = vunpack.c.0.s8 %v448
        %v450 = vlaneseq
        %v451 = vshrl.u32 %v450, 7
        %v452 = vsub.s32 %v449, %v451
        %v453 = vrot.slane %v439, %v452
        %v454 = vcombine.high %v446, %v446
        %v455 = vcombine.high %v453, %v453
        %v456 = vcombine.high %v280, %v280
        %v458 = vunpack.c.l.s4 1983009808
        %v459 = vunpack.c.0.s8 %v458
        %v460 = vlaneseq
        %v461 = vshrl.u32 %v460, 7
        %v462 = vsub.s32 %v459, %v461
        %v463 = vrot.slane %v280, %v462
        %v465 = vunpack.c.l.s4 1983009808
        %v466 = vunpack.c.0.s8 %v465
        %v467 = vlaneseq
        %v468 = vshrl.u32 %v467, 7
        %v469 = vsub.s32 %v466, %v468
        %v470 = vrot.slane %v456, %v469
        %v471 = vcombine.high %v463, %v463
        %v472 = vcombine.high %v470, %v470
        %v473 = vcombine.high %v281, %v281
        %v475 = vunpack.c.l.s4 1983009808
        %v476 = vunpack.c.0.s8 %v475
        %v477 = vlaneseq
        %v478 = vshrl.u32 %v477, 7
        %v479 = vsub.s32 %v476, %v478
        %v480 = vrot.slane %v281, %v479
        %v482 = vunpack.c.l.s4 1983009808
        %v483 = vunpack.c.0.s8 %v482
        %v484 = vlaneseq
        %v485 = vshrl.u32 %v484, 7
        %v486 = vsub.s32 %v483, %v485
        %v487 = vrot.slane %v473, %v486
        %v488 = vcombine.high %v480, %v480
        %v489 = vcombine.high %v487, %v487
        %v490 = vcombine.high %v282, %v282
        %v492 = vunpack.c.l.s4 1983009808
        %v493 = vunpack.c.0.s8 %v492
        %v494 = vlaneseq
        %v495 = vshrl.u32 %v494, 7
        %v496 = vsub.s32 %v493, %v495
        %v497 = vrot.slane %v282, %v496
        %v499 = vunpack.c.l.s4 1983009808
        %v500 = vunpack.c.0.s8 %v499
        %v501 = vlaneseq
        %v502 = vshrl.u32 %v501, 7
        %v503 = vsub.s32 %v500, %v502
        %v504 = vrot.slane %v490, %v503
        %v505 = vcombine.high %v497, %v497
        %v506 = vcombine.high %v504, %v504
        %v507 = vcombine.high %v283, %v283
        %v509 = vunpack.c.l.s4 1983009808
        %v510 = vunpack.c.0.s8 %v509
        %v511 = vlaneseq
        %v512 = vshrl.u32 %v511, 7
        %v513 = vsub.s32 %v510, %v512
        %v514 = vrot.slane %v283, %v513
        %v516 = vunpack.c.l.s4 1983009808
        %v517 = vunpack.c.0.s8 %v516
        %v518 = vlaneseq
        %v519 = vshrl.u32 %v518, 7
        %v520 = vsub.s32 %v517, %v519
        %v521 = vrot.slane %v507, %v520
        %v522 = vcombine.high %v514, %v514
        %v523 = vcombine.high %v521, %v521
        %v524 = vcombine.high %v284, %v284
        %v526 = vunpack.c.l.s4 1983009808
        %v527 = vunpack.c.0.s8 %v526
        %v528 = vlaneseq
        %v529 = vshrl.u32 %v528, 7
        %v530 = vsub.s32 %v527, %v529
        %v531 = vrot.slane %v284, %v530
        %v533 = vunpack.c.l.s4 1983009808
        %v534 = vunpack.c.0.s8 %v533
        %v535 = vlaneseq
        %v536 = vshrl.u32 %v535, 7
        %v537 = vsub.s32 %v534, %v536
        %v538 = vrot.slane %v524, %v537
        %v539 = vcombine.high %v531, %v531
        %v540 = vcombine.high %v538, %v538
        %v541 = vcombine.high %v285, %v285
        %v543 = vunpack.c.l.s4 1983009808
        %v544 = vunpack.c.0.s8 %v543
        %v545 = vlaneseq
        %v546 = vshrl.u32 %v545, 7
        %v547 = vsub.s32 %v544, %v546
        %v548 = vrot.slane %v285, %v547
        %v550 = vunpack.c.l.s4 1983009808
        %v551 = vunpack.c.0.s8 %v550
        %v552 = vlaneseq
        %v553 = vshrl.u32 %v552, 7
        %v554 = vsub.s32 %v551, %v553
        %v555 = vrot.slane %v541, %v554
        %v556 = vcombine.high %v548, %v548
        %v557 = vcombine.high %v555, %v555
        %v558 = vcombine.high %v286, %v286
        %v560 = vunpack.c.l.s4 1983009808
        %v561 = vunpack.c.0.s8 %v560
        %v562 = vlaneseq
        %v563 = vshrl.u32 %v562, 7
        %v564 = vsub.s32 %v561, %v563
        %v565 = vrot.slane %v286, %v564
        %v567 = vunpack.c.l.s4 1983009808
        %v568 = vunpack.c.0.s8 %v567
        %v569 = vlaneseq
        %v570 = vshrl.u32 %v569, 7
        %v571 = vsub.s32 %v568, %v570
        %v572 = vrot.slane %v558, %v571
        %v573 = vcombine.high %v565, %v565
        %v574 = vcombine.high %v572, %v572
        %v575 = vcombine.high %v287, %v287
        %v577 = vunpack.c.l.s4 1983009808
        %v578 = vunpack.c.0.s8 %v577
        %v579 = vlaneseq
        %v580 = vshrl.u32 %v579, 7
        %v581 = vsub.s32 %v578, %v580
        %v582 = vrot.slane %v287, %v581
        %v584 = vunpack.c.l.s4 1983009808
        %v585 = vunpack.c.0.s8 %v584
        %v586 = vlaneseq
        %v587 = vshrl.u32 %v586, 7
        %v588 = vsub.s32 %v585, %v587
        %v589 = vrot.slane %v575, %v588
        %v590 = vcombine.high %v582, %v582
        %v591 = vcombine.high %v589, %v589
        %v592 = vcombine.high %v288, %v288
        %v594 = vunpack.c.l.s4 1983009808
        %v595 = vunpack.c.0.s8 %v594
        %v596 = vlaneseq
        %v597 = vshrl.u32 %v596, 7
        %v598 = vsub.s32 %v595, %v597
        %v599 = vrot.slane %v288, %v598
        %v601 = vunpack.c.l.s4 1983009808
        %v602 = vunpack.c.0.s8 %v601
        %v603 = vlaneseq
        %v604 = vshrl.u32 %v603, 7
        %v605 = vsub.s32 %v602, %v604
        %v606 = vrot.slane %v592, %v605
        %v607 = vcombine.high %v599, %v599
        %v608 = vcombine.high %v606, %v606
        %v609 = vcombine.high %v289, %v289
        %v611 = vunpack.c.l.s4 1983009808
        %v612 = vunpack.c.0.s8 %v611
        %v613 = vlaneseq
        %v614 = vshrl.u32 %v613, 7
        %v615 = vsub.s32 %v612, %v614
        %v616 = vrot.slane %v289, %v615
        %v618 = vunpack.c.l.s4 1983009808
        %v619 = vunpack.c.0.s8 %v618
        %v620 = vlaneseq
        %v621 = vshrl.u32 %v620, 7
        %v622 = vsub.s32 %v619, %v621
        %v623 = vrot.slane %v609, %v622
        %v624 = vcombine.high %v616, %v616
        %v625 = vcombine.high %v623, %v623
        %v626 = vcombine.high %v290, %v290
        %v628 = vunpack.c.l.s4 1983009808
        %v629 = vunpack.c.0.s8 %v628
        %v630 = vlaneseq
        %v631 = vshrl.u32 %v630, 7
        %v632 = vsub.s32 %v629, %v631
        %v633 = vrot.slane %v290, %v632
        %v635 = vunpack.c.l.s4 1983009808
        %v636 = vunpack.c.0.s8 %v635
        %v637 = vlaneseq
        %v638 = vshrl.u32 %v637, 7
        %v639 = vsub.s32 %v636, %v638
        %v640 = vrot.slane %v626, %v639
        %v641 = vcombine.high %v633, %v633
        %v642 = vcombine.high %v640, %v640
        %v643 = vcombine.high %v291, %v291
        %v645 = vunpack.c.l.s4 1983009808
        %v646 = vunpack.c.0.s8 %v645
        %v647 = vlaneseq
        %v648 = vshrl.u32 %v647, 7
        %v649 = vsub.s32 %v646, %v648
        %v650 = vrot.slane %v291, %v649
        %v652 = vunpack.c.l.s4 1983009808
        %v653 = vunpack.c.0.s8 %v652
        %v654 = vlaneseq
        %v655 = vshrl.u32 %v654, 7
        %v656 = vsub.s32 %v653, %v655
        %v657 = vrot.slane %v643, %v656
        %v658 = vcombine.high %v650, %v650
        %v659 = vcombine.high %v657, %v657
        %v660 = vcombine.high %v292, %v292
        %v662 = vunpack.c.l.s4 1983009808
        %v663 = vunpack.c.0.s8 %v662
        %v664 = vlaneseq
        %v665 = vshrl.u32 %v664, 7
        %v666 = vsub.s32 %v663, %v665
        %v667 = vrot.slane %v292, %v666
        %v669 = vunpack.c.l.s4 1983009808
        %v670 = vunpack.c.0.s8 %v669
        %v671 = vlaneseq
        %v672 = vshrl.u32 %v671, 7
        %v673 = vsub.s32 %v670, %v672
        %v674 = vrot.slane %v660, %v673
        %v675 = vcombine.high %v667, %v667
        %v676 = vcombine.high %v674, %v674
        %v677 = vcombine.high %v293, %v293
        %v679 = vunpack.c.l.s4 1983009808
        %v680 = vunpack.c.0.s8 %v679
        %v681 = vlaneseq
        %v682 = vshrl.u32 %v681, 7
        %v683 = vsub.s32 %v680, %v682
        %v684 = vrot.slane %v293, %v683
        %v686 = vunpack.c.l.s4 1983009808
        %v687 = vunpack.c.0.s8 %v686
        %v688 = vlaneseq
        %v689 = vshrl.u32 %v688, 7
        %v690 = vsub.s32 %v687, %v689
        %v691 = vrot.slane %v677, %v690
        %v692 = vcombine.high %v684, %v684
        %v693 = vcombine.high %v691, %v691
        %v694 = vcombine.high %v294, %v294
        %v696 = vunpack.c.l.s4 1983009808
        %v697 = vunpack.c.0.s8 %v696
        %v698 = vlaneseq
        %v699 = vshrl.u32 %v698, 7
        %v700 = vsub.s32 %v697, %v699
        %v701 = vrot.slane %v294, %v700
        %v703 = vunpack.c.l.s4 1983009808
        %v704 = vunpack.c.0.s8 %v703
        %v705 = vlaneseq
        %v706 = vshrl.u32 %v705, 7
        %v707 = vsub.s32 %v704, %v706
        %v708 = vrot.slane %v694, %v707
        %v709 = vcombine.high %v701, %v701
        %v710 = vcombine.high %v708, %v708
        %v711 = vcombine.high %v295, %v295
        %v713 = vunpack.c.l.s4 1983009808
        %v714 = vunpack.c.0.s8 %v713
        %v715 = vlaneseq
        %v716 = vshrl.u32 %v715, 7
        %v717 = vsub.s32 %v714, %v716
        %v718 = vrot.slane %v295, %v717
        %v720 = vunpack.c.l.s4 1983009808
        %v721 = vunpack.c.0.s8 %v720
        %v722 = vlaneseq
        %v723 = vshrl.u32 %v722, 7
        %v724 = vsub.s32 %v721, %v723
        %v725 = vrot.slane %v711, %v724
        %v726 = vcombine.high %v718, %v718
        %v727 = vcombine.high %v725, %v725
        %v728 = vcombine.high %v296, %v296
        %v730 = vunpack.c.l.s4 1983009808
        %v731 = vunpack.c.0.s8 %v730
        %v732 = vlaneseq
        %v733 = vshrl.u32 %v732, 7
        %v734 = vsub.s32 %v731, %v733
        %v735 = vrot.slane %v296, %v734
        %v737 = vunpack.c.l.s4 1983009808
        %v738 = vunpack.c.0.s8 %v737
        %v739 = vlaneseq
        %v740 = vshrl.u32 %v739, 7
        %v741 = vsub.s32 %v738, %v740
        %v742 = vrot.slane %v728, %v741
        %v743 = vcombine.high %v735, %v735
        %v744 = vcombine.high %v742, %v742
        %v745 = vcombine.high %v297, %v297
        %v747 = vunpack.c.l.s4 1983009808
        %v748 = vunpack.c.0.s8 %v747
        %v749 = vlaneseq
        %v750 = vshrl.u32 %v749, 7
        %v751 = vsub.s32 %v748, %v750
        %v752 = vrot.slane %v297, %v751
        %v754 = vunpack.c.l.s4 1983009808
        %v755 = vunpack.c.0.s8 %v754
        %v756 = vlaneseq
        %v757 = vshrl.u32 %v756, 7
        %v758 = vsub.s32 %v755, %v757
        %v759 = vrot.slane %v745, %v758
        %v760 = vcombine.high %v752, %v752
        %v761 = vcombine.high %v759, %v759
        %v762 = vcombine.high %v298, %v298
        %v764 = vunpack.c.l.s4 1983009808
        %v765 = vunpack.c.0.s8 %v764
        %v766 = vlaneseq
        %v767 = vshrl.u32 %v766, 7
        %v768 = vsub.s32 %v765, %v767
        %v769 = vrot.slane %v298, %v768
        %v771 = vunpack.c.l.s4 1983009808
        %v772 = vunpack.c.0.s8 %v771
        %v773 = vlaneseq
        %v774 = vshrl.u32 %v773, 7
        %v775 = vsub.s32 %v772, %v774
        %v776 = vrot.slane %v762, %v775
        %v777 = vcombine.high %v769, %v769
        %v778 = vcombine.high %v776, %v776
        %v779 = vcombine.high %v299, %v299
        %v781 = vunpack.c.l.s4 1983009808
        %v782 = vunpack.c.0.s8 %v781
        %v783 = vlaneseq
        %v784 = vshrl.u32 %v783, 7
        %v785 = vsub.s32 %v782, %v784
        %v786 = vrot.slane %v299, %v785
        %v788 = vunpack.c.l.s4 1983009808
        %v789 = vunpack.c.0.s8 %v788
        %v790 = vlaneseq
        %v791 = vshrl.u32 %v790, 7
        %v792 = vsub.s32 %v789, %v791
        %v793 = vrot.slane %v779, %v792
        %v794 = vcombine.high %v786, %v786
        %v795 = vcombine.high %v793, %v793
        %v796 = vcombine.high %v300, %v300
        %v798 = vunpack.c.l.s4 1983009808
        %v799 = vunpack.c.0.s8 %v798
        %v800 = vlaneseq
        %v801 = vshrl.u32 %v800, 7
        %v802 = vsub.s32 %v799, %v801
        %v803 = vrot.slane %v300, %v802
        %v805 = vunpack.c.l.s4 1983009808
        %v806 = vunpack.c.0.s8 %v805
        %v807 = vlaneseq
        %v808 = vshrl.u32 %v807, 7
        %v809 = vsub.s32 %v806, %v808
        %v810 = vrot.slane %v796, %v809
        %v811 = vcombine.high %v803, %v803
        %v812 = vcombine.high %v810, %v810
        %v813 = vcombine.high %v301, %v301
        %v815 = vunpack.c.l.s4 1983009808
        %v816 = vunpack.c.0.s8 %v815
        %v817 = vlaneseq
        %v818 = vshrl.u32 %v817, 7
        %v819 = vsub.s32 %v816, %v818
        %v820 = vrot.slane %v301, %v819
        %v822 = vunpack.c.l.s4 1983009808
        %v823 = vunpack.c.0.s8 %v822
        %v824 = vlaneseq
        %v825 = vshrl.u32 %v824, 7
        %v826 = vsub.s32 %v823, %v825
        %v827 = vrot.slane %v813, %v826
        %v828 = vcombine.high %v820, %v820
        %v829 = vcombine.high %v827, %v827
        %v830 = vcombine.high %v302, %v302
        %v832 = vunpack.c.l.s4 1983009808
        %v833 = vunpack.c.0.s8 %v832
        %v834 = vlaneseq
        %v835 = vshrl.u32 %v834, 7
        %v836 = vsub.s32 %v833, %v835
        %v837 = vrot.slane %v302, %v836
        %v839 = vunpack.c.l.s4 1983009808
        %v840 = vunpack.c.0.s8 %v839
        %v841 = vlaneseq
        %v842 = vshrl.u32 %v841, 7
        %v843 = vsub.s32 %v840, %v842
        %v844 = vrot.slane %v830, %v843
        %v845 = vcombine.high %v837, %v837
        %v846 = vcombine.high %v844, %v844
        %v847 = vcombine.high %v303, %v303
        %v849 = vunpack.c.l.s4 1983009808
        %v850 = vunpack.c.0.s8 %v849
        %v851 = vlaneseq
        %v852 = vshrl.u32 %v851, 7
        %v853 = vsub.s32 %v850, %v852
        %v854 = vrot.slane %v303, %v853
        %v856 = vunpack.c.l.s4 1983009808
        %v857 = vunpack.c.0.s8 %v856
        %v858 = vlaneseq
        %v859 = vshrl.u32 %v858, 7
        %v860 = vsub.s32 %v857, %v859
        %v861 = vrot.slane %v847, %v860
        %v862 = vcombine.high %v854, %v854
        %v863 = vcombine.high %v861, %v861
        %v864 = vcombine.high %v304, %v304
        %v866 = vunpack.c.l.s4 1983009808
        %v867 = vunpack.c.0.s8 %v866
        %v868 = vlaneseq
        %v869 = vshrl.u32 %v868, 7
        %v870 = vsub.s32 %v867, %v869
        %v871 = vrot.slane %v304, %v870
        %v873 = vunpack.c.l.s4 1983009808
        %v874 = vunpack.c.0.s8 %v873
        %v875 = vlaneseq
        %v876 = vshrl.u32 %v875, 7
        %v877 = vsub.s32 %v874, %v876
        %v878 = vrot.slane %v864, %v877
        %v879 = vcombine.high %v871, %v871
        %v880 = vcombine.high %v878, %v878
        %vm1009 = vcmask 1041408
        %v1010 = vsel %vm1009, %v344, -inf
        %v1011 = vrot.slane %v1010, 4
        %v1012 = vmax.f32 %v1010, %v1011
        %v1013 = vrot.slane %v1012, 2
        %v1014 = vmax.f32 %v1012, %v1013
        %v1015 = vrot.slane %v1014, 1
        %v1016 = vmax.f32 %v1014, %v1015
        %v1017 = vsel %vm1009, %v352, -inf
        %v1018 = vrot.slane %v1017, 4
        %v1019 = vmax.f32 %v1017, %v1018
        %v1020 = vrot.slane %v1019, 2
        %v1021 = vmax.f32 %v1019, %v1020
        %v1022 = vrot.slane %v1021, 1
        %v1023 = vmax.f32 %v1021, %v1022
        %v1024 = vsel %vm1009, %v351, -inf
        %v1025 = vrot.slane %v1024, 4
        %v1026 = vmax.f32 %v1024, %v1025
        %v1027 = vrot.slane %v1026, 2
        %v1028 = vmax.f32 %v1026, %v1027
        %v1029 = vrot.slane %v1028, 1
        %v1030 = vmax.f32 %v1028, %v1029
        %v1031 = vsel %vm1009, %v353, -inf
        %v1032 = vrot.slane %v1031, 4
        %v1033 = vmax.f32 %v1031, %v1032
        %v1034 = vrot.slane %v1033, 2
        %v1035 = vmax.f32 %v1033, %v1034
        %v1036 = vrot.slane %v1035, 1
        %v1037 = vmax.f32 %v1035, %v1036
        %v1038 = vsel %vm1009, %v361, -inf
        %v1039 = vrot.slane %v1038, 4
        %v1040 = vmax.f32 %v1038, %v1039
        %v1041 = vrot.slane %v1040, 2
        %v1042 = vmax.f32 %v1040, %v1041
        %v1043 = vrot.slane %v1042, 1
        %v1044 = vmax.f32 %v1042, %v1043
        %v1045 = vsel %vm1009, %v369, -inf
        %v1046 = vrot.slane %v1045, 4
        %v1047 = vmax.f32 %v1045, %v1046
        %v1048 = vrot.slane %v1047, 2
        %v1049 = vmax.f32 %v1047, %v1048
        %v1050 = vrot.slane %v1049, 1
        %v1051 = vmax.f32 %v1049, %v1050
        %v1052 = vsel %vm1009, %v368, -inf
        %v1053 = vrot.slane %v1052, 4
        %v1054 = vmax.f32 %v1052, %v1053
        %v1055 = vrot.slane %v1054, 2
        %v1056 = vmax.f32 %v1054, %v1055
        %v1057 = vrot.slane %v1056, 1
        %v1058 = vmax.f32 %v1056, %v1057
        %v1059 = vsel %vm1009, %v370, -inf
        %v1060 = vrot.slane %v1059, 4
        %v1061 = vmax.f32 %v1059, %v1060
        %v1062 = vrot.slane %v1061, 2
        %v1063 = vmax.f32 %v1061, %v1062
        %v1064 = vrot.slane %v1063, 1
        %v1065 = vmax.f32 %v1063, %v1064
        %v1066 = vsel %vm1009, %v378, -inf
        %v1067 = vrot.slane %v1066, 4
        %v1068 = vmax.f32 %v1066, %v1067
        %v1069 = vrot.slane %v1068, 2
        %v1070 = vmax.f32 %v1068, %v1069
        %v1071 = vrot.slane %v1070, 1
        %v1072 = vmax.f32 %v1070, %v1071
        %v1073 = vsel %vm1009, %v386, -inf
        %v1074 = vrot.slane %v1073, 4
        %v1075 = vmax.f32 %v1073, %v1074
        %v1076 = vrot.slane %v1075, 2
        %v1077 = vmax.f32 %v1075, %v1076
        %v1078 = vrot.slane %v1077, 1
        %v1079 = vmax.f32 %v1077, %v1078
        %v1080 = vsel %vm1009, %v385, -inf
        %v1081 = vrot.slane %v1080, 4
        %v1082 = vmax.f32 %v1080, %v1081
        %v1083 = vrot.slane %v1082, 2
        %v1084 = vmax.f32 %v1082, %v1083
        %v1085 = vrot.slane %v1084, 1
        %v1086 = vmax.f32 %v1084, %v1085
        %v1087 = vsel %vm1009, %v387, -inf
        %v1088 = vrot.slane %v1087, 4
        %v1089 = vmax.f32 %v1087, %v1088
        %v1090 = vrot.slane %v1089, 2
        %v1091 = vmax.f32 %v1089, %v1090
        %v1092 = vrot.slane %v1091, 1
        %v1093 = vmax.f32 %v1091, %v1092
        %v1094 = vsel %vm1009, %v395, -inf
        %v1095 = vrot.slane %v1094, 4
        %v1096 = vmax.f32 %v1094, %v1095
        %v1097 = vrot.slane %v1096, 2
        %v1098 = vmax.f32 %v1096, %v1097
        %v1099 = vrot.slane %v1098, 1
        %v1100 = vmax.f32 %v1098, %v1099
        %v1101 = vsel %vm1009, %v403, -inf
        %v1102 = vrot.slane %v1101, 4
        %v1103 = vmax.f32 %v1101, %v1102
        %v1104 = vrot.slane %v1103, 2
        %v1105 = vmax.f32 %v1103, %v1104
        %v1106 = vrot.slane %v1105, 1
        %v1107 = vmax.f32 %v1105, %v1106
        %v1108 = vsel %vm1009, %v402, -inf
        %v1109 = vrot.slane %v1108, 4
        %v1110 = vmax.f32 %v1108, %v1109
        %v1111 = vrot.slane %v1110, 2
        %v1112 = vmax.f32 %v1110, %v1111
        %v1113 = vrot.slane %v1112, 1
        %v1114 = vmax.f32 %v1112, %v1113
        %v1115 = vsel %vm1009, %v404, -inf
        %v1116 = vrot.slane %v1115, 4
        %v1117 = vmax.f32 %v1115, %v1116
        %v1118 = vrot.slane %v1117, 2
        %v1119 = vmax.f32 %v1117, %v1118
        %v1120 = vrot.slane %v1119, 1
        %v1121 = vmax.f32 %v1119, %v1120
        %v1122 = vsel %vm1009, %v412, -inf
        %v1123 = vrot.slane %v1122, 4
        %v1124 = vmax.f32 %v1122, %v1123
        %v1125 = vrot.slane %v1124, 2
        %v1126 = vmax.f32 %v1124, %v1125
        %v1127 = vrot.slane %v1126, 1
        %v1128 = vmax.f32 %v1126, %v1127
        %v1129 = vsel %vm1009, %v420, -inf
        %v1130 = vrot.slane %v1129, 4
        %v1131 = vmax.f32 %v1129, %v1130
        %v1132 = vrot.slane %v1131, 2
        %v1133 = vmax.f32 %v1131, %v1132
        %v1134 = vrot.slane %v1133, 1
        %v1135 = vmax.f32 %v1133, %v1134
        %v1136 = vsel %vm1009, %v419, -inf
        %v1137 = vrot.slane %v1136, 4
        %v1138 = vmax.f32 %v1136, %v1137
        %v1139 = vrot.slane %v1138, 2
        %v1140 = vmax.f32 %v1138, %v1139
        %v1141 = vrot.slane %v1140, 1
        %v1142 = vmax.f32 %v1140, %v1141
        %v1143 = vsel %vm1009, %v421, -inf
        %v1144 = vrot.slane %v1143, 4
        %v1145 = vmax.f32 %v1143, %v1144
        %v1146 = vrot.slane %v1145, 2
        %v1147 = vmax.f32 %v1145, %v1146
        %v1148 = vrot.slane %v1147, 1
        %v1149 = vmax.f32 %v1147, %v1148
        %v1150 = vsel %vm1009, %v429, -inf
        %v1151 = vrot.slane %v1150, 4
        %v1152 = vmax.f32 %v1150, %v1151
        %v1153 = vrot.slane %v1152, 2
        %v1154 = vmax.f32 %v1152, %v1153
        %v1155 = vrot.slane %v1154, 1
        %v1156 = vmax.f32 %v1154, %v1155
        %v1157 = vsel %vm1009, %v437, -inf
        %v1158 = vrot.slane %v1157, 4
        %v1159 = vmax.f32 %v1157, %v1158
        %v1160 = vrot.slane %v1159, 2
        %v1161 = vmax.f32 %v1159, %v1160
        %v1162 = vrot.slane %v1161, 1
        %v1163 = vmax.f32 %v1161, %v1162
        %v1164 = vsel %vm1009, %v436, -inf
        %v1165 = vrot.slane %v1164, 4
        %v1166 = vmax.f32 %v1164, %v1165
        %v1167 = vrot.slane %v1166, 2
        %v1168 = vmax.f32 %v1166, %v1167
        %v1169 = vrot.slane %v1168, 1
        %v1170 = vmax.f32 %v1168, %v1169
        %v1171 = vsel %vm1009, %v438, -inf
        %v1172 = vrot.slane %v1171, 4
        %v1173 = vmax.f32 %v1171, %v1172
        %v1174 = vrot.slane %v1173, 2
        %v1175 = vmax.f32 %v1173, %v1174
        %v1176 = vrot.slane %v1175, 1
        %v1177 = vmax.f32 %v1175, %v1176
        %v1178 = vsel %vm1009, %v446, -inf
        %v1179 = vrot.slane %v1178, 4
        %v1180 = vmax.f32 %v1178, %v1179
        %v1181 = vrot.slane %v1180, 2
        %v1182 = vmax.f32 %v1180, %v1181
        %v1183 = vrot.slane %v1182, 1
        %v1184 = vmax.f32 %v1182, %v1183
        %v1185 = vsel %vm1009, %v454, -inf
        %v1186 = vrot.slane %v1185, 4
        %v1187 = vmax.f32 %v1185, %v1186
        %v1188 = vrot.slane %v1187, 2
        %v1189 = vmax.f32 %v1187, %v1188
        %v1190 = vrot.slane %v1189, 1
        %v1191 = vmax.f32 %v1189, %v1190
        %v1192 = vsel %vm1009, %v453, -inf
        %v1193 = vrot.slane %v1192, 4
        %v1194 = vmax.f32 %v1192, %v1193
        %v1195 = vrot.slane %v1194, 2
        %v1196 = vmax.f32 %v1194, %v1195
        %v1197 = vrot.slane %v1196, 1
        %v1198 = vmax.f32 %v1196, %v1197
        %v1199 = vsel %vm1009, %v455, -inf
        %v1200 = vrot.slane %v1199, 4
        %v1201 = vmax.f32 %v1199, %v1200
        %v1202 = vrot.slane %v1201, 2
        %v1203 = vmax.f32 %v1201, %v1202
        %v1204 = vrot.slane %v1203, 1
        %v1205 = vmax.f32 %v1203, %v1204
        %v1206 = vsel %vm1009, %v463, -inf
        %v1207 = vrot.slane %v1206, 4
        %v1208 = vmax.f32 %v1206, %v1207
        %v1209 = vrot.slane %v1208, 2
        %v1210 = vmax.f32 %v1208, %v1209
        %v1211 = vrot.slane %v1210, 1
        %v1212 = vmax.f32 %v1210, %v1211
        %v1213 = vsel %vm1009, %v471, -inf
        %v1214 = vrot.slane %v1213, 4
        %v1215 = vmax.f32 %v1213, %v1214
        %v1216 = vrot.slane %v1215, 2
        %v1217 = vmax.f32 %v1215, %v1216
        %v1218 = vrot.slane %v1217, 1
        %v1219 = vmax.f32 %v1217, %v1218
        %v1220 = vsel %vm1009, %v470, -inf
        %v1221 = vrot.slane %v1220, 4
        %v1222 = vmax.f32 %v1220, %v1221
        %v1223 = vrot.slane %v1222, 2
        %v1224 = vmax.f32 %v1222, %v1223
        %v1225 = vrot.slane %v1224, 1
        %v1226 = vmax.f32 %v1224, %v1225
        %v1227 = vsel %vm1009, %v472, -inf
        %v1228 = vrot.slane %v1227, 4
        %v1229 = vmax.f32 %v1227, %v1228
        %v1230 = vrot.slane %v1229, 2
        %v1231 = vmax.f32 %v1229, %v1230
        %v1232 = vrot.slane %v1231, 1
        %v1233 = vmax.f32 %v1231, %v1232
        %v1234 = vsel %vm1009, %v480, -inf
        %v1235 = vrot.slane %v1234, 4
        %v1236 = vmax.f32 %v1234, %v1235
        %v1237 = vrot.slane %v1236, 2
        %v1238 = vmax.f32 %v1236, %v1237
        %v1239 = vrot.slane %v1238, 1
        %v1240 = vmax.f32 %v1238, %v1239
        %v1241 = vsel %vm1009, %v488, -inf
        %v1242 = vrot.slane %v1241, 4
        %v1243 = vmax.f32 %v1241, %v1242
        %v1244 = vrot.slane %v1243, 2
        %v1245 = vmax.f32 %v1243, %v1244
        %v1246 = vrot.slane %v1245, 1
        %v1247 = vmax.f32 %v1245, %v1246
        %v1248 = vsel %vm1009, %v487, -inf
        %v1249 = vrot.slane %v1248, 4
        %v1250 = vmax.f32 %v1248, %v1249
        %v1251 = vrot.slane %v1250, 2
        %v1252 = vmax.f32 %v1250, %v1251
        %v1253 = vrot.slane %v1252, 1
        %v1254 = vmax.f32 %v1252, %v1253
        %v1255 = vsel %vm1009, %v489, -inf
        %v1256 = vrot.slane %v1255, 4
        %v1257 = vmax.f32 %v1255, %v1256
        %v1258 = vrot.slane %v1257, 2
        %v1259 = vmax.f32 %v1257, %v1258
        %v1260 = vrot.slane %v1259, 1
        %v1261 = vmax.f32 %v1259, %v1260
        %v1262 = vsel %vm1009, %v497, -inf
        %v1263 = vrot.slane %v1262, 4
        %v1264 = vmax.f32 %v1262, %v1263
        %v1265 = vrot.slane %v1264, 2
        %v1266 = vmax.f32 %v1264, %v1265
        %v1267 = vrot.slane %v1266, 1
        %v1268 = vmax.f32 %v1266, %v1267
        %v1269 = vsel %vm1009, %v505, -inf
        %v1270 = vrot.slane %v1269, 4
        %v1271 = vmax.f32 %v1269, %v1270
        %v1272 = vrot.slane %v1271, 2
        %v1273 = vmax.f32 %v1271, %v1272
        %v1274 = vrot.slane %v1273, 1
        %v1275 = vmax.f32 %v1273, %v1274
        %v1276 = vsel %vm1009, %v504, -inf
        %v1277 = vrot.slane %v1276, 4
        %v1278 = vmax.f32 %v1276, %v1277
        %v1279 = vrot.slane %v1278, 2
        %v1280 = vmax.f32 %v1278, %v1279
        %v1281 = vrot.slane %v1280, 1
        %v1282 = vmax.f32 %v1280, %v1281
        %v1283 = vsel %vm1009, %v506, -inf
        %v1284 = vrot.slane %v1283, 4
        %v1285 = vmax.f32 %v1283, %v1284
        %v1286 = vrot.slane %v1285, 2
        %v1287 = vmax.f32 %v1285, %v1286
        %v1288 = vrot.slane %v1287, 1
        %v1289 = vmax.f32 %v1287, %v1288
        %v1290 = vsel %vm1009, %v514, -inf
        %v1291 = vrot.slane %v1290, 4
        %v1292 = vmax.f32 %v1290, %v1291
        %v1293 = vrot.slane %v1292, 2
        %v1294 = vmax.f32 %v1292, %v1293
        %v1295 = vrot.slane %v1294, 1
        %v1296 = vmax.f32 %v1294, %v1295
        %v1297 = vsel %vm1009, %v522, -inf
        %v1298 = vrot.slane %v1297, 4
        %v1299 = vmax.f32 %v1297, %v1298
        %v1300 = vrot.slane %v1299, 2
        %v1301 = vmax.f32 %v1299, %v1300
        %v1302 = vrot.slane %v1301, 1
        %v1303 = vmax.f32 %v1301, %v1302
        %v1304 = vsel %vm1009, %v521, -inf
        %v1305 = vrot.slane %v1304, 4
        %v1306 = vmax.f32 %v1304, %v1305
        %v1307 = vrot.slane %v1306, 2
        %v1308 = vmax.f32 %v1306, %v1307
        %v1309 = vrot.slane %v1308, 1
        %v1310 = vmax.f32 %v1308, %v1309
        %v1311 = vsel %vm1009, %v523, -inf
        %v1312 = vrot.slane %v1311, 4
        %v1313 = vmax.f32 %v1311, %v1312
        %v1314 = vrot.slane %v1313, 2
        %v1315 = vmax.f32 %v1313, %v1314
        %v1316 = vrot.slane %v1315, 1
        %v1317 = vmax.f32 %v1315, %v1316
        %v1318 = vsel %vm1009, %v531, -inf
        %v1319 = vrot.slane %v1318, 4
        %v1320 = vmax.f32 %v1318, %v1319
        %v1321 = vrot.slane %v1320, 2
        %v1322 = vmax.f32 %v1320, %v1321
        %v1323 = vrot.slane %v1322, 1
        %v1324 = vmax.f32 %v1322, %v1323
        %v1325 = vsel %vm1009, %v539, -inf
        %v1326 = vrot.slane %v1325, 4
        %v1327 = vmax.f32 %v1325, %v1326
        %v1328 = vrot.slane %v1327, 2
        %v1329 = vmax.f32 %v1327, %v1328
        %v1330 = vrot.slane %v1329, 1
        %v1331 = vmax.f32 %v1329, %v1330
        %v1332 = vsel %vm1009, %v538, -inf
        %v1333 = vrot.slane %v1332, 4
        %v1334 = vmax.f32 %v1332, %v1333
        %v1335 = vrot.slane %v1334, 2
        %v1336 = vmax.f32 %v1334, %v1335
        %v1337 = vrot.slane %v1336, 1
        %v1338 = vmax.f32 %v1336, %v1337
        %v1339 = vsel %vm1009, %v540, -inf
        %v1340 = vrot.slane %v1339, 4
        %v1341 = vmax.f32 %v1339, %v1340
        %v1342 = vrot.slane %v1341, 2
        %v1343 = vmax.f32 %v1341, %v1342
        %v1344 = vrot.slane %v1343, 1
        %v1345 = vmax.f32 %v1343, %v1344
        %v1346 = vsel %vm1009, %v548, -inf
        %v1347 = vrot.slane %v1346, 4
        %v1348 = vmax.f32 %v1346, %v1347
        %v1349 = vrot.slane %v1348, 2
        %v1350 = vmax.f32 %v1348, %v1349
        %v1351 = vrot.slane %v1350, 1
        %v1352 = vmax.f32 %v1350, %v1351
        %v1353 = vsel %vm1009, %v556, -inf
        %v1354 = vrot.slane %v1353, 4
        %v1355 = vmax.f32 %v1353, %v1354
        %v1356 = vrot.slane %v1355, 2
        %v1357 = vmax.f32 %v1355, %v1356
        %v1358 = vrot.slane %v1357, 1
        %v1359 = vmax.f32 %v1357, %v1358
        %v1360 = vsel %vm1009, %v555, -inf
        %v1361 = vrot.slane %v1360, 4
        %v1362 = vmax.f32 %v1360, %v1361
        %v1363 = vrot.slane %v1362, 2
        %v1364 = vmax.f32 %v1362, %v1363
        %v1365 = vrot.slane %v1364, 1
        %v1366 = vmax.f32 %v1364, %v1365
        %v1367 = vsel %vm1009, %v557, -inf
        %v1368 = vrot.slane %v1367, 4
        %v1369 = vmax.f32 %v1367, %v1368
        %v1370 = vrot.slane %v1369, 2
        %v1371 = vmax.f32 %v1369, %v1370
        %v1372 = vrot.slane %v1371, 1
        %v1373 = vmax.f32 %v1371, %v1372
        %v1374 = vsel %vm1009, %v565, -inf
        %v1375 = vrot.slane %v1374, 4
        %v1376 = vmax.f32 %v1374, %v1375
        %v1377 = vrot.slane %v1376, 2
        %v1378 = vmax.f32 %v1376, %v1377
        %v1379 = vrot.slane %v1378, 1
        %v1380 = vmax.f32 %v1378, %v1379
        %v1381 = vsel %vm1009, %v573, -inf
        %v1382 = vrot.slane %v1381, 4
        %v1383 = vmax.f32 %v1381, %v1382
        %v1384 = vrot.slane %v1383, 2
        %v1385 = vmax.f32 %v1383, %v1384
        %v1386 = vrot.slane %v1385, 1
        %v1387 = vmax.f32 %v1385, %v1386
        %v1388 = vsel %vm1009, %v572, -inf
        %v1389 = vrot.slane %v1388, 4
        %v1390 = vmax.f32 %v1388, %v1389
        %v1391 = vrot.slane %v1390, 2
        %v1392 = vmax.f32 %v1390, %v1391
        %v1393 = vrot.slane %v1392, 1
        %v1394 = vmax.f32 %v1392, %v1393
        %v1395 = vsel %vm1009, %v574, -inf
        %v1396 = vrot.slane %v1395, 4
        %v1397 = vmax.f32 %v1395, %v1396
        %v1398 = vrot.slane %v1397, 2
        %v1399 = vmax.f32 %v1397, %v1398
        %v1400 = vrot.slane %v1399, 1
        %v1401 = vmax.f32 %v1399, %v1400
        %v1402 = vsel %vm1009, %v582, -inf
        %v1403 = vrot.slane %v1402, 4
        %v1404 = vmax.f32 %v1402, %v1403
        %v1405 = vrot.slane %v1404, 2
        %v1406 = vmax.f32 %v1404, %v1405
        %v1407 = vrot.slane %v1406, 1
        %v1408 = vmax.f32 %v1406, %v1407
        %v1409 = vsel %vm1009, %v590, -inf
        %v1410 = vrot.slane %v1409, 4
        %v1411 = vmax.f32 %v1409, %v1410
        %v1412 = vrot.slane %v1411, 2
        %v1413 = vmax.f32 %v1411, %v1412
        %v1414 = vrot.slane %v1413, 1
        %v1415 = vmax.f32 %v1413, %v1414
        %v1416 = vsel %vm1009, %v589, -inf
        %v1417 = vrot.slane %v1416, 4
        %v1418 = vmax.f32 %v1416, %v1417
        %v1419 = vrot.slane %v1418, 2
        %v1420 = vmax.f32 %v1418, %v1419
        %v1421 = vrot.slane %v1420, 1
        %v1422 = vmax.f32 %v1420, %v1421
        %v1423 = vsel %vm1009, %v591, -inf
        %v1424 = vrot.slane %v1423, 4
        %v1425 = vmax.f32 %v1423, %v1424
        %v1426 = vrot.slane %v1425, 2
        %v1427 = vmax.f32 %v1425, %v1426
        %v1428 = vrot.slane %v1427, 1
        %v1429 = vmax.f32 %v1427, %v1428
        %v1430 = vsel %vm1009, %v599, -inf
        %v1431 = vrot.slane %v1430, 4
        %v1432 = vmax.f32 %v1430, %v1431
        %v1433 = vrot.slane %v1432, 2
        %v1434 = vmax.f32 %v1432, %v1433
        %v1435 = vrot.slane %v1434, 1
        %v1436 = vmax.f32 %v1434, %v1435
        %v1437 = vsel %vm1009, %v607, -inf
        %v1438 = vrot.slane %v1437, 4
        %v1439 = vmax.f32 %v1437, %v1438
        %v1440 = vrot.slane %v1439, 2
        %v1441 = vmax.f32 %v1439, %v1440
        %v1442 = vrot.slane %v1441, 1
        %v1443 = vmax.f32 %v1441, %v1442
        %v1444 = vsel %vm1009, %v606, -inf
        %v1445 = vrot.slane %v1444, 4
        %v1446 = vmax.f32 %v1444, %v1445
        %v1447 = vrot.slane %v1446, 2
        %v1448 = vmax.f32 %v1446, %v1447
        %v1449 = vrot.slane %v1448, 1
        %v1450 = vmax.f32 %v1448, %v1449
        %v1451 = vsel %vm1009, %v608, -inf
        %v1452 = vrot.slane %v1451, 4
        %v1453 = vmax.f32 %v1451, %v1452
        %v1454 = vrot.slane %v1453, 2
        %v1455 = vmax.f32 %v1453, %v1454
        %v1456 = vrot.slane %v1455, 1
        %v1457 = vmax.f32 %v1455, %v1456
        %v1458 = vsel %vm1009, %v616, -inf
        %v1459 = vrot.slane %v1458, 4
        %v1460 = vmax.f32 %v1458, %v1459
        %v1461 = vrot.slane %v1460, 2
        %v1462 = vmax.f32 %v1460, %v1461
        %v1463 = vrot.slane %v1462, 1
        %v1464 = vmax.f32 %v1462, %v1463
        %v1465 = vsel %vm1009, %v624, -inf
        %v1466 = vrot.slane %v1465, 4
        %v1467 = vmax.f32 %v1465, %v1466
        %v1468 = vrot.slane %v1467, 2
        %v1469 = vmax.f32 %v1467, %v1468
        %v1470 = vrot.slane %v1469, 1
        %v1471 = vmax.f32 %v1469, %v1470
        %v1472 = vsel %vm1009, %v623, -inf
        %v1473 = vrot.slane %v1472, 4
        %v1474 = vmax.f32 %v1472, %v1473
        %v1475 = vrot.slane %v1474, 2
        %v1476 = vmax.f32 %v1474, %v1475
        %v1477 = vrot.slane %v1476, 1
        %v1478 = vmax.f32 %v1476, %v1477
        %v1479 = vsel %vm1009, %v625, -inf
        %v1480 = vrot.slane %v1479, 4
        %v1481 = vmax.f32 %v1479, %v1480
        %v1482 = vrot.slane %v1481, 2
        %v1483 = vmax.f32 %v1481, %v1482
        %v1484 = vrot.slane %v1483, 1
        %v1485 = vmax.f32 %v1483, %v1484
        %v1486 = vsel %vm1009, %v633, -inf
        %v1487 = vrot.slane %v1486, 4
        %v1488 = vmax.f32 %v1486, %v1487
        %v1489 = vrot.slane %v1488, 2
        %v1490 = vmax.f32 %v1488, %v1489
        %v1491 = vrot.slane %v1490, 1
        %v1492 = vmax.f32 %v1490, %v1491
        %v1493 = vsel %vm1009, %v641, -inf
        %v1494 = vrot.slane %v1493, 4
        %v1495 = vmax.f32 %v1493, %v1494
        %v1496 = vrot.slane %v1495, 2
        %v1497 = vmax.f32 %v1495, %v1496
        %v1498 = vrot.slane %v1497, 1
        %v1499 = vmax.f32 %v1497, %v1498
        %v1500 = vsel %vm1009, %v640, -inf
        %v1501 = vrot.slane %v1500, 4
        %v1502 = vmax.f32 %v1500, %v1501
        %v1503 = vrot.slane %v1502, 2
        %v1504 = vmax.f32 %v1502, %v1503
        %v1505 = vrot.slane %v1504, 1
        %v1506 = vmax.f32 %v1504, %v1505
        %v1507 = vsel %vm1009, %v642, -inf
        %v1508 = vrot.slane %v1507, 4
        %v1509 = vmax.f32 %v1507, %v1508
        %v1510 = vrot.slane %v1509, 2
        %v1511 = vmax.f32 %v1509, %v1510
        %v1512 = vrot.slane %v1511, 1
        %v1513 = vmax.f32 %v1511, %v1512
        %v1514 = vsel %vm1009, %v650, -inf
        %v1515 = vrot.slane %v1514, 4
        %v1516 = vmax.f32 %v1514, %v1515
        %v1517 = vrot.slane %v1516, 2
        %v1518 = vmax.f32 %v1516, %v1517
        %v1519 = vrot.slane %v1518, 1
        %v1520 = vmax.f32 %v1518, %v1519
        %v1521 = vsel %vm1009, %v658, -inf
        %v1522 = vrot.slane %v1521, 4
        %v1523 = vmax.f32 %v1521, %v1522
        %v1524 = vrot.slane %v1523, 2
        %v1525 = vmax.f32 %v1523, %v1524
        %v1526 = vrot.slane %v1525, 1
        %v1527 = vmax.f32 %v1525, %v1526
        %v1528 = vsel %vm1009, %v657, -inf
        %v1529 = vrot.slane %v1528, 4
        %v1530 = vmax.f32 %v1528, %v1529
        %v1531 = vrot.slane %v1530, 2
        %v1532 = vmax.f32 %v1530, %v1531
        %v1533 = vrot.slane %v1532, 1
        %v1534 = vmax.f32 %v1532, %v1533
        %v1535 = vsel %vm1009, %v659, -inf
        %v1536 = vrot.slane %v1535, 4
        %v1537 = vmax.f32 %v1535, %v1536
        %v1538 = vrot.slane %v1537, 2
        %v1539 = vmax.f32 %v1537, %v1538
        %v1540 = vrot.slane %v1539, 1
        %v1541 = vmax.f32 %v1539, %v1540
        %v1542 = vsel %vm1009, %v667, -inf
        %v1543 = vrot.slane %v1542, 4
        %v1544 = vmax.f32 %v1542, %v1543
        %v1545 = vrot.slane %v1544, 2
        %v1546 = vmax.f32 %v1544, %v1545
        %v1547 = vrot.slane %v1546, 1
        %v1548 = vmax.f32 %v1546, %v1547
        %v1549 = vsel %vm1009, %v675, -inf
        %v1550 = vrot.slane %v1549, 4
        %v1551 = vmax.f32 %v1549, %v1550
        %v1552 = vrot.slane %v1551, 2
        %v1553 = vmax.f32 %v1551, %v1552
        %v1554 = vrot.slane %v1553, 1
        %v1555 = vmax.f32 %v1553, %v1554
        %v1556 = vsel %vm1009, %v674, -inf
        %v1557 = vrot.slane %v1556, 4
        %v1558 = vmax.f32 %v1556, %v1557
        %v1559 = vrot.slane %v1558, 2
        %v1560 = vmax.f32 %v1558, %v1559
        %v1561 = vrot.slane %v1560, 1
        %v1562 = vmax.f32 %v1560, %v1561
        %v1563 = vsel %vm1009, %v676, -inf
        %v1564 = vrot.slane %v1563, 4
        %v1565 = vmax.f32 %v1563, %v1564
        %v1566 = vrot.slane %v1565, 2
        %v1567 = vmax.f32 %v1565, %v1566
        %v1568 = vrot.slane %v1567, 1
        %v1569 = vmax.f32 %v1567, %v1568
        %v1570 = vsel %vm1009, %v684, -inf
        %v1571 = vrot.slane %v1570, 4
        %v1572 = vmax.f32 %v1570, %v1571
        %v1573 = vrot.slane %v1572, 2
        %v1574 = vmax.f32 %v1572, %v1573
        %v1575 = vrot.slane %v1574, 1
        %v1576 = vmax.f32 %v1574, %v1575
        %v1577 = vsel %vm1009, %v692, -inf
        %v1578 = vrot.slane %v1577, 4
        %v1579 = vmax.f32 %v1577, %v1578
        %v1580 = vrot.slane %v1579, 2
        %v1581 = vmax.f32 %v1579, %v1580
        %v1582 = vrot.slane %v1581, 1
        %v1583 = vmax.f32 %v1581, %v1582
        %v1584 = vsel %vm1009, %v691, -inf
        %v1585 = vrot.slane %v1584, 4
        %v1586 = vmax.f32 %v1584, %v1585
        %v1587 = vrot.slane %v1586, 2
        %v1588 = vmax.f32 %v1586, %v1587
        %v1589 = vrot.slane %v1588, 1
        %v1590 = vmax.f32 %v1588, %v1589
        %v1591 = vsel %vm1009, %v693, -inf
        %v1592 = vrot.slane %v1591, 4
        %v1593 = vmax.f32 %v1591, %v1592
        %v1594 = vrot.slane %v1593, 2
        %v1595 = vmax.f32 %v1593, %v1594
        %v1596 = vrot.slane %v1595, 1
        %v1597 = vmax.f32 %v1595, %v1596
        %v1598 = vsel %vm1009, %v701, -inf
        %v1599 = vrot.slane %v1598, 4
        %v1600 = vmax.f32 %v1598, %v1599
        %v1601 = vrot.slane %v1600, 2
        %v1602 = vmax.f32 %v1600, %v1601
        %v1603 = vrot.slane %v1602, 1
        %v1604 = vmax.f32 %v1602, %v1603
        %v1605 = vsel %vm1009, %v709, -inf
        %v1606 = vrot.slane %v1605, 4
        %v1607 = vmax.f32 %v1605, %v1606
        %v1608 = vrot.slane %v1607, 2
        %v1609 = vmax.f32 %v1607, %v1608
        %v1610 = vrot.slane %v1609, 1
        %v1611 = vmax.f32 %v1609, %v1610
        %v1612 = vsel %vm1009, %v708, -inf
        %v1613 = vrot.slane %v1612, 4
        %v1614 = vmax.f32 %v1612, %v1613
        %v1615 = vrot.slane %v1614, 2
        %v1616 = vmax.f32 %v1614, %v1615
        %v1617 = vrot.slane %v1616, 1
        %v1618 = vmax.f32 %v1616, %v1617
        %v1619 = vsel %vm1009, %v710, -inf
        %v1620 = vrot.slane %v1619, 4
        %v1621 = vmax.f32 %v1619, %v1620
        %v1622 = vrot.slane %v1621, 2
        %v1623 = vmax.f32 %v1621, %v1622
        %v1624 = vrot.slane %v1623, 1
        %v1625 = vmax.f32 %v1623, %v1624
        %v1626 = vsel %vm1009, %v718, -inf
        %v1627 = vrot.slane %v1626, 4
        %v1628 = vmax.f32 %v1626, %v1627
        %v1629 = vrot.slane %v1628, 2
        %v1630 = vmax.f32 %v1628, %v1629
        %v1631 = vrot.slane %v1630, 1
        %v1632 = vmax.f32 %v1630, %v1631
        %v1633 = vsel %vm1009, %v726, -inf
        %v1634 = vrot.slane %v1633, 4
        %v1635 = vmax.f32 %v1633, %v1634
        %v1636 = vrot.slane %v1635, 2
        %v1637 = vmax.f32 %v1635, %v1636
        %v1638 = vrot.slane %v1637, 1
        %v1639 = vmax.f32 %v1637, %v1638
        %v1640 = vsel %vm1009, %v725, -inf
        %v1641 = vrot.slane %v1640, 4
        %v1642 = vmax.f32 %v1640, %v1641
        %v1643 = vrot.slane %v1642, 2
        %v1644 = vmax.f32 %v1642, %v1643
        %v1645 = vrot.slane %v1644, 1
        %v1646 = vmax.f32 %v1644, %v1645
        %v1647 = vsel %vm1009, %v727, -inf
        %v1648 = vrot.slane %v1647, 4
        %v1649 = vmax.f32 %v1647, %v1648
        %v1650 = vrot.slane %v1649, 2
        %v1651 = vmax.f32 %v1649, %v1650
        %v1652 = vrot.slane %v1651, 1
        %v1653 = vmax.f32 %v1651, %v1652
        %v1654 = vsel %vm1009, %v735, -inf
        %v1655 = vrot.slane %v1654, 4
        %v1656 = vmax.f32 %v1654, %v1655
        %v1657 = vrot.slane %v1656, 2
        %v1658 = vmax.f32 %v1656, %v1657
        %v1659 = vrot.slane %v1658, 1
        %v1660 = vmax.f32 %v1658, %v1659
        %v1661 = vsel %vm1009, %v743, -inf
        %v1662 = vrot.slane %v1661, 4
        %v1663 = vmax.f32 %v1661, %v1662
        %v1664 = vrot.slane %v1663, 2
        %v1665 = vmax.f32 %v1663, %v1664
        %v1666 = vrot.slane %v1665, 1
        %v1667 = vmax.f32 %v1665, %v1666
        %v1668 = vsel %vm1009, %v742, -inf
        %v1669 = vrot.slane %v1668, 4
        %v1670 = vmax.f32 %v1668, %v1669
        %v1671 = vrot.slane %v1670, 2
        %v1672 = vmax.f32 %v1670, %v1671
        %v1673 = vrot.slane %v1672, 1
        %v1674 = vmax.f32 %v1672, %v1673
        %v1675 = vsel %vm1009, %v744, -inf
        %v1676 = vrot.slane %v1675, 4
        %v1677 = vmax.f32 %v1675, %v1676
        %v1678 = vrot.slane %v1677, 2
        %v1679 = vmax.f32 %v1677, %v1678
        %v1680 = vrot.slane %v1679, 1
        %v1681 = vmax.f32 %v1679, %v1680
        %v1682 = vsel %vm1009, %v752, -inf
        %v1683 = vrot.slane %v1682, 4
        %v1684 = vmax.f32 %v1682, %v1683
        %v1685 = vrot.slane %v1684, 2
        %v1686 = vmax.f32 %v1684, %v1685
        %v1687 = vrot.slane %v1686, 1
        %v1688 = vmax.f32 %v1686, %v1687
        %v1689 = vsel %vm1009, %v760, -inf
        %v1690 = vrot.slane %v1689, 4
        %v1691 = vmax.f32 %v1689, %v1690
        %v1692 = vrot.slane %v1691, 2
        %v1693 = vmax.f32 %v1691, %v1692
        %v1694 = vrot.slane %v1693, 1
        %v1695 = vmax.f32 %v1693, %v1694
        %v1696 = vsel %vm1009, %v759, -inf
        %v1697 = vrot.slane %v1696, 4
        %v1698 = vmax.f32 %v1696, %v1697
        %v1699 = vrot.slane %v1698, 2
        %v1700 = vmax.f32 %v1698, %v1699
        %v1701 = vrot.slane %v1700, 1
        %v1702 = vmax.f32 %v1700, %v1701
        %v1703 = vsel %vm1009, %v761, -inf
        %v1704 = vrot.slane %v1703, 4
        %v1705 = vmax.f32 %v1703, %v1704
        %v1706 = vrot.slane %v1705, 2
        %v1707 = vmax.f32 %v1705, %v1706
        %v1708 = vrot.slane %v1707, 1
        %v1709 = vmax.f32 %v1707, %v1708
        %v1710 = vsel %vm1009, %v769, -inf
        %v1711 = vrot.slane %v1710, 4
        %v1712 = vmax.f32 %v1710, %v1711
        %v1713 = vrot.slane %v1712, 2
        %v1714 = vmax.f32 %v1712, %v1713
        %v1715 = vrot.slane %v1714, 1
        %v1716 = vmax.f32 %v1714, %v1715
        %v1717 = vsel %vm1009, %v777, -inf
        %v1718 = vrot.slane %v1717, 4
        %v1719 = vmax.f32 %v1717, %v1718
        %v1720 = vrot.slane %v1719, 2
        %v1721 = vmax.f32 %v1719, %v1720
        %v1722 = vrot.slane %v1721, 1
        %v1723 = vmax.f32 %v1721, %v1722
        %v1724 = vsel %vm1009, %v776, -inf
        %v1725 = vrot.slane %v1724, 4
        %v1726 = vmax.f32 %v1724, %v1725
        %v1727 = vrot.slane %v1726, 2
        %v1728 = vmax.f32 %v1726, %v1727
        %v1729 = vrot.slane %v1728, 1
        %v1730 = vmax.f32 %v1728, %v1729
        %v1731 = vsel %vm1009, %v778, -inf
        %v1732 = vrot.slane %v1731, 4
        %v1733 = vmax.f32 %v1731, %v1732
        %v1734 = vrot.slane %v1733, 2
        %v1735 = vmax.f32 %v1733, %v1734
        %v1736 = vrot.slane %v1735, 1
        %v1737 = vmax.f32 %v1735, %v1736
        %v1738 = vsel %vm1009, %v786, -inf
        %v1739 = vrot.slane %v1738, 4
        %v1740 = vmax.f32 %v1738, %v1739
        %v1741 = vrot.slane %v1740, 2
        %v1742 = vmax.f32 %v1740, %v1741
        %v1743 = vrot.slane %v1742, 1
        %v1744 = vmax.f32 %v1742, %v1743
        %v1745 = vsel %vm1009, %v794, -inf
        %v1746 = vrot.slane %v1745, 4
        %v1747 = vmax.f32 %v1745, %v1746
        %v1748 = vrot.slane %v1747, 2
        %v1749 = vmax.f32 %v1747, %v1748
        %v1750 = vrot.slane %v1749, 1
        %v1751 = vmax.f32 %v1749, %v1750
        %v1752 = vsel %vm1009, %v793, -inf
        %v1753 = vrot.slane %v1752, 4
        %v1754 = vmax.f32 %v1752, %v1753
        %v1755 = vrot.slane %v1754, 2
        %v1756 = vmax.f32 %v1754, %v1755
        %v1757 = vrot.slane %v1756, 1
        %v1758 = vmax.f32 %v1756, %v1757
        %v1759 = vsel %vm1009, %v795, -inf
        %v1760 = vrot.slane %v1759, 4
        %v1761 = vmax.f32 %v1759, %v1760
        %v1762 = vrot.slane %v1761, 2
        %v1763 = vmax.f32 %v1761, %v1762
        %v1764 = vrot.slane %v1763, 1
        %v1765 = vmax.f32 %v1763, %v1764
        %v1766 = vsel %vm1009, %v803, -inf
        %v1767 = vrot.slane %v1766, 4
        %v1768 = vmax.f32 %v1766, %v1767
        %v1769 = vrot.slane %v1768, 2
        %v1770 = vmax.f32 %v1768, %v1769
        %v1771 = vrot.slane %v1770, 1
        %v1772 = vmax.f32 %v1770, %v1771
        %v1773 = vsel %vm1009, %v811, -inf
        %v1774 = vrot.slane %v1773, 4
        %v1775 = vmax.f32 %v1773, %v1774
        %v1776 = vrot.slane %v1775, 2
        %v1777 = vmax.f32 %v1775, %v1776
        %v1778 = vrot.slane %v1777, 1
        %v1779 = vmax.f32 %v1777, %v1778
        %v1780 = vsel %vm1009, %v810, -inf
        %v1781 = vrot.slane %v1780, 4
        %v1782 = vmax.f32 %v1780, %v1781
        %v1783 = vrot.slane %v1782, 2
        %v1784 = vmax.f32 %v1782, %v1783
        %v1785 = vrot.slane %v1784, 1
        %v1786 = vmax.f32 %v1784, %v1785
        %v1787 = vsel %vm1009, %v812, -inf
        %v1788 = vrot.slane %v1787, 4
        %v1789 = vmax.f32 %v1787, %v1788
        %v1790 = vrot.slane %v1789, 2
        %v1791 = vmax.f32 %v1789, %v1790
        %v1792 = vrot.slane %v1791, 1
        %v1793 = vmax.f32 %v1791, %v1792
        %v1794 = vsel %vm1009, %v820, -inf
        %v1795 = vrot.slane %v1794, 4
        %v1796 = vmax.f32 %v1794, %v1795
        %v1797 = vrot.slane %v1796, 2
        %v1798 = vmax.f32 %v1796, %v1797
        %v1799 = vrot.slane %v1798, 1
        %v1800 = vmax.f32 %v1798, %v1799
        %v1801 = vsel %vm1009, %v828, -inf
        %v1802 = vrot.slane %v1801, 4
        %v1803 = vmax.f32 %v1801, %v1802
        %v1804 = vrot.slane %v1803, 2
        %v1805 = vmax.f32 %v1803, %v1804
        %v1806 = vrot.slane %v1805, 1
        %v1807 = vmax.f32 %v1805, %v1806
        %v1808 = vsel %vm1009, %v827, -inf
        %v1809 = vrot.slane %v1808, 4
        %v1810 = vmax.f32 %v1808, %v1809
        %v1811 = vrot.slane %v1810, 2
        %v1812 = vmax.f32 %v1810, %v1811
        %v1813 = vrot.slane %v1812, 1
        %v1814 = vmax.f32 %v1812, %v1813
        %v1815 = vsel %vm1009, %v829, -inf
        %v1816 = vrot.slane %v1815, 4
        %v1817 = vmax.f32 %v1815, %v1816
        %v1818 = vrot.slane %v1817, 2
        %v1819 = vmax.f32 %v1817, %v1818
        %v1820 = vrot.slane %v1819, 1
        %v1821 = vmax.f32 %v1819, %v1820
        %v1822 = vsel %vm1009, %v837, -inf
        %v1823 = vrot.slane %v1822, 4
        %v1824 = vmax.f32 %v1822, %v1823
        %v1825 = vrot.slane %v1824, 2
        %v1826 = vmax.f32 %v1824, %v1825
        %v1827 = vrot.slane %v1826, 1
        %v1828 = vmax.f32 %v1826, %v1827
        %v1829 = vsel %vm1009, %v845, -inf
        %v1830 = vrot.slane %v1829, 4
        %v1831 = vmax.f32 %v1829, %v1830
        %v1832 = vrot.slane %v1831, 2
        %v1833 = vmax.f32 %v1831, %v1832
        %v1834 = vrot.slane %v1833, 1
        %v1835 = vmax.f32 %v1833, %v1834
        %v1836 = vsel %vm1009, %v844, -inf
        %v1837 = vrot.slane %v1836, 4
        %v1838 = vmax.f32 %v1836, %v1837
        %v1839 = vrot.slane %v1838, 2
        %v1840 = vmax.f32 %v1838, %v1839
        %v1841 = vrot.slane %v1840, 1
        %v1842 = vmax.f32 %v1840, %v1841
        %v1843 = vsel %vm1009, %v846, -inf
        %v1844 = vrot.slane %v1843, 4
        %v1845 = vmax.f32 %v1843, %v1844
        %v1846 = vrot.slane %v1845, 2
        %v1847 = vmax.f32 %v1845, %v1846
        %v1848 = vrot.slane %v1847, 1
        %v1849 = vmax.f32 %v1847, %v1848
        %v1850 = vsel %vm1009, %v854, -inf
        %v1851 = vrot.slane %v1850, 4
        %v1852 = vmax.f32 %v1850, %v1851
        %v1853 = vrot.slane %v1852, 2
        %v1854 = vmax.f32 %v1852, %v1853
        %v1855 = vrot.slane %v1854, 1
        %v1856 = vmax.f32 %v1854, %v1855
        %v1857 = vsel %vm1009, %v862, -inf
        %v1858 = vrot.slane %v1857, 4
        %v1859 = vmax.f32 %v1857, %v1858
        %v1860 = vrot.slane %v1859, 2
        %v1861 = vmax.f32 %v1859, %v1860
        %v1862 = vrot.slane %v1861, 1
        %v1863 = vmax.f32 %v1861, %v1862
        %v1864 = vsel %vm1009, %v861, -inf
        %v1865 = vrot.slane %v1864, 4
        %v1866 = vmax.f32 %v1864, %v1865
        %v1867 = vrot.slane %v1866, 2
        %v1868 = vmax.f32 %v1866, %v1867
        %v1869 = vrot.slane %v1868, 1
        %v1870 = vmax.f32 %v1868, %v1869
        %v1871 = vsel %vm1009, %v863, -inf
        %v1872 = vrot.slane %v1871, 4
        %v1873 = vmax.f32 %v1871, %v1872
        %v1874 = vrot.slane %v1873, 2
        %v1875 = vmax.f32 %v1873, %v1874
        %v1876 = vrot.slane %v1875, 1
        %v1877 = vmax.f32 %v1875, %v1876
        %v1878 = vsel %vm1009, %v871, -inf
        %v1879 = vrot.slane %v1878, 4
        %v1880 = vmax.f32 %v1878, %v1879
        %v1881 = vrot.slane %v1880, 2
        %v1882 = vmax.f32 %v1880, %v1881
        %v1883 = vrot.slane %v1882, 1
        %v1884 = vmax.f32 %v1882, %v1883
        %v1885 = vsel %vm1009, %v879, -inf
        %v1886 = vrot.slane %v1885, 4
        %v1887 = vmax.f32 %v1885, %v1886
        %v1888 = vrot.slane %v1887, 2
        %v1889 = vmax.f32 %v1887, %v1888
        %v1890 = vrot.slane %v1889, 1
        %v1891 = vmax.f32 %v1889, %v1890
        %v1892 = vsel %vm1009, %v878, -inf
        %v1893 = vrot.slane %v1892, 4
        %v1894 = vmax.f32 %v1892, %v1893
        %v1895 = vrot.slane %v1894, 2
        %v1896 = vmax.f32 %v1894, %v1895
        %v1897 = vrot.slane %v1896, 1
        %v1898 = vmax.f32 %v1896, %v1897
        %v1899 = vsel %vm1009, %v880, -inf
        %v1900 = vrot.slane %v1899, 4
        %v1901 = vmax.f32 %v1899, %v1900
        %v1902 = vrot.slane %v1901, 2
        %v1903 = vmax.f32 %v1901, %v1902
        %v1904 = vrot.slane %v1903, 1
        %v1905 = vmax.f32 %v1903, %v1904
        %v1906 = vmax.f32 %v1016, %v1072
        %v1907 = vmax.f32 %v1023, %v1079
        %v1908 = vmax.f32 %v1030, %v1086
        %v1909 = vmax.f32 %v1037, %v1093
        %v1910 = vmax.f32 %v1044, %v1100
        %v1911 = vmax.f32 %v1051, %v1107
        %v1912 = vmax.f32 %v1058, %v1114
        %v1913 = vmax.f32 %v1065, %v1121
        %v1914 = vmax.f32 %v1128, %v1184
        %v1915 = vmax.f32 %v1135, %v1191
        %v1916 = vmax.f32 %v1142, %v1198
        %v1917 = vmax.f32 %v1149, %v1205
        %v1918 = vmax.f32 %v1156, %v1212
        %v1919 = vmax.f32 %v1163, %v1219
        %v1920 = vmax.f32 %v1170, %v1226
        %v1921 = vmax.f32 %v1177, %v1233
        %v1922 = vmax.f32 %v1240, %v1296
        %v1923 = vmax.f32 %v1247, %v1303
        %v1924 = vmax.f32 %v1254, %v1310
        %v1925 = vmax.f32 %v1261, %v1317
        %v1926 = vmax.f32 %v1268, %v1324
        %v1927 = vmax.f32 %v1275, %v1331
        %v1928 = vmax.f32 %v1282, %v1338
        %v1929 = vmax.f32 %v1289, %v1345
        %v1930 = vmax.f32 %v1352, %v1408
        %v1931 = vmax.f32 %v1359, %v1415
        %v1932 = vmax.f32 %v1366, %v1422
        %v1933 = vmax.f32 %v1373, %v1429
        %v1934 = vmax.f32 %v1380, %v1436
        %v1935 = vmax.f32 %v1387, %v1443
        %v1936 = vmax.f32 %v1394, %v1450
        %v1937 = vmax.f32 %v1401, %v1457
        %v1938 = vmax.f32 %v1464, %v1520
        %v1939 = vmax.f32 %v1471, %v1527
        %v1940 = vmax.f32 %v1478, %v1534
        %v1941 = vmax.f32 %v1485, %v1541
        %v1942 = vmax.f32 %v1492, %v1548
        %v1943 = vmax.f32 %v1499, %v1555
        %v1944 = vmax.f32 %v1506, %v1562
        %v1945 = vmax.f32 %v1513, %v1569
        %v1946 = vmax.f32 %v1576, %v1632
        %v1947 = vmax.f32 %v1583, %v1639
        %v1948 = vmax.f32 %v1590, %v1646
        %v1949 = vmax.f32 %v1597, %v1653
        %v1950 = vmax.f32 %v1604, %v1660
        %v1951 = vmax.f32 %v1611, %v1667
        %v1952 = vmax.f32 %v1618, %v1674
        %v1953 = vmax.f32 %v1625, %v1681
        %v1954 = vmax.f32 %v1688, %v1744
        %v1955 = vmax.f32 %v1695, %v1751
        %v1956 = vmax.f32 %v1702, %v1758
        %v1957 = vmax.f32 %v1709, %v1765
        %v1958 = vmax.f32 %v1716, %v1772
        %v1959 = vmax.f32 %v1723, %v1779
        %v1960 = vmax.f32 %v1730, %v1786
        %v1961 = vmax.f32 %v1737, %v1793
        %v1962 = vmax.f32 %v1800, %v1856
        %v1963 = vmax.f32 %v1807, %v1863
        %v1964 = vmax.f32 %v1814, %v1870
        %v1965 = vmax.f32 %v1821, %v1877
        %v1966 = vmax.f32 %v1828, %v1884
        %v1967 = vmax.f32 %v1835, %v1891
        %v1968 = vmax.f32 %v1842, %v1898
        %v1969 = vmax.f32 %v1849, %v1905
        %1970 = vst [vmem:[#allocation2] sm:$0xff] 0.0
        %1971 = vst [vmem:[#allocation2 + $0x8] sm:$0x3] 0.0
        %1972 = vst [vmem:[#allocation2 + $0x10] sm:$0xff] 0.0
        %1973 = vst [vmem:[#allocation2 + $0x18] sm:$0x3] 0.0
        %1974 = vst [vmem:[#allocation2 + $0x20] sm:$0xff] 0.0
        %1975 = vst [vmem:[#allocation2 + $0x28] sm:$0x3] 0.0
        %1976 = vst [vmem:[#allocation2 + $0x30] sm:$0xff] 0.0
        %1977 = vst [vmem:[#allocation2 + $0x38] sm:$0x3] 0.0
        %1978 = vst [vmem:[#allocation2 + $0x40] sm:$0xff] 0.0
        %1979 = vst [vmem:[#allocation2 + $0x48] sm:$0x3] 0.0
        %1980 = vst [vmem:[#allocation2 + $0x50] sm:$0xff] 0.0
        %1981 = vst [vmem:[#allocation2 + $0x58] sm:$0x3] 0.0
        %1982 = vst [vmem:[#allocation2 + $0x60] sm:$0xff] 0.0
        %1983 = vst [vmem:[#allocation2 + $0x68] sm:$0x3] 0.0
        %1984 = vst [vmem:[#allocation2 + $0x70] sm:$0xff] 0.0
        %1985 = vst [vmem:[#allocation2 + $0x78] sm:$0x3] 0.0
        %1986 = vst [vmem:[#allocation2 + $0x80] sm:$0xff] 0.0
        %1987 = vst [vmem:[#allocation2 + $0x88] sm:$0x3] 0.0
        %1988 = vst [vmem:[#allocation2 + $0x90] sm:$0xff] 0.0
        %1989 = vst [vmem:[#allocation2 + $0x98] sm:$0x3] 0.0
        %vm2054 = vcmask 1041409
        %v2055 = vsel %vm2054, %v1907, %v1906
        %vm2056 = vcmask 1042434
        %v2057 = vsel %vm2056, %v1908, %v2055
        %vm2058 = vcmask 1043459
        %v2059 = vsel %vm2058, %v1909, %v2057
        %vm2060 = vcmask 1044484
        %v2061 = vsel %vm2060, %v1910, %v2059
        %vm2062 = vcmask 1045509
        %v2063 = vsel %vm2062, %v1911, %v2061
        %vm2064 = vcmask 1046534
        %v2065 = vsel %vm2064, %v1912, %v2063
        %vm2066 = vcmask 1047559
        %v2067 = vsel %vm2066, %v1913, %v2065
        %v2068 = vsel %vm2054, %v1915, %v1914
        %v2069 = vsel %vm2056, %v1916, %v2068
        %v2070 = vsel %vm2058, %v1917, %v2069
        %v2071 = vsel %vm2060, %v1918, %v2070
        %v2072 = vsel %vm2062, %v1919, %v2071
        %v2073 = vsel %vm2064, %v1920, %v2072
        %v2074 = vsel %vm2066, %v1921, %v2073
        %v2075 = vsel %vm2054, %v1923, %v1922
        %v2076 = vsel %vm2056, %v1924, %v2075
        %v2077 = vsel %vm2058, %v1925, %v2076
        %v2078 = vsel %vm2060, %v1926, %v2077
        %v2079 = vsel %vm2062, %v1927, %v2078
        %v2080 = vsel %vm2064, %v1928, %v2079
        %v2081 = vsel %vm2066, %v1929, %v2080
        %v2082 = vsel %vm2054, %v1931, %v1930
        %v2083 = vsel %vm2056, %v1932, %v2082
        %v2084 = vsel %vm2058, %v1933, %v2083
        %v2085 = vsel %vm2060, %v1934, %v2084
        %v2086 = vsel %vm2062, %v1935, %v2085
        %v2087 = vsel %vm2064, %v1936, %v2086
        %v2088 = vsel %vm2066, %v1937, %v2087
        %v2089 = vsel %vm2054, %v1939, %v1938
        %v2090 = vsel %vm2056, %v1940, %v2089
        %v2091 = vsel %vm2058, %v1941, %v2090
        %v2092 = vsel %vm2060, %v1942, %v2091
        %v2093 = vsel %vm2062, %v1943, %v2092
        %v2094 = vsel %vm2064, %v1944, %v2093
        %v2095 = vsel %vm2066, %v1945, %v2094
        %v2096 = vsel %vm2054, %v1947, %v1946
        %v2097 = vsel %vm2056, %v1948, %v2096
        %v2098 = vsel %vm2058, %v1949, %v2097
        %v2099 = vsel %vm2060, %v1950, %v2098
        %v2100 = vsel %vm2062, %v1951, %v2099
        %v2101 = vsel %vm2064, %v1952, %v2100
        %v2102 = vsel %vm2066, %v1953, %v2101
        %v2103 = vsel %vm2054, %v1955, %v1954
        %v2104 = vsel %vm2056, %v1956, %v2103
        %v2105 = vsel %vm2058, %v1957, %v2104
        %v2106 = vsel %vm2060, %v1958, %v2105
        %v2107 = vsel %vm2062, %v1959, %v2106
        %v2108 = vsel %vm2064, %v1960, %v2107
        %v2109 = vsel %vm2066, %v1961, %v2108
        %v2110 = vsel %vm2054, %v1963, %v1962
        %v2111 = vsel %vm2056, %v1964, %v2110
        %v2112 = vsel %vm2058, %v1965, %v2111
        %v2113 = vsel %vm2060, %v1966, %v2112
        %v2114 = vsel %vm2062, %v1967, %v2113
        %v2115 = vsel %vm2064, %v1968, %v2114
        %v2116 = vsel %vm2066, %v1969, %v2115
        %s2125 = scalar_lea.vmem [#allocation2], 16
        %2126 = vst [vmem:[%s2125 + $0x1] sm:$0xff] %v2067
        %2127 = vst [vmem:[%s2125 + $0x11] sm:$0xff] %v2074
        %2128 = vst [vmem:[%s2125 + $0x21] sm:$0xff] %v2081
        %2129 = vst [vmem:[%s2125 + $0x31] sm:$0xff] %v2088
        %2130 = vst [vmem:[%s2125 + $0x41] sm:$0xff] %v2095
        %2131 = vst [vmem:[%s2125 + $0x51] sm:$0xff] %v2102
        %2132 = vst [vmem:[%s2125 + $0x61] sm:$0xff] %v2109
        %2133 = vst [vmem:[%s2125 + $0x71] sm:$0xff] %v2116
        %v2134 = vld [vmem:[#allocation2] sm:$0xff]
        %v2135 = vld [vmem:[#allocation2 + $0x10] sm:$0xff]
        %v2136 = vld [vmem:[#allocation2 + $0x20] sm:$0xff]
        %v2137 = vld [vmem:[#allocation2 + $0x30] sm:$0xff]
        %v2138 = vld [vmem:[#allocation2 + $0x40] sm:$0xff]
        %v2139 = vld [vmem:[#allocation2 + $0x50] sm:$0xff]
        %v2140 = vld [vmem:[#allocation2 + $0x60] sm:$0xff]
        %v2141 = vld [vmem:[#allocation2 + $0x70] sm:$0xff]
        %v2142 = vpack.c.bf16 %v2134, %v2134
        %v2143 = vpack.c.bf16 %v2135, %v2135
        %v2144 = vpack.c.bf16 %v2136, %v2136
        %v2145 = vpack.c.bf16 %v2137, %v2137
        %v2146 = vpack.c.bf16 %v2138, %v2138
        %v2147 = vpack.c.bf16 %v2139, %v2139
        %v2148 = vpack.c.bf16 %v2140, %v2140
        %v2149 = vpack.c.bf16 %v2141, %v2141
        %v2150 = vld [vmem:[#allocation7] sm:$0xf]
        %v2151 = vld [vmem:[#allocation7 + $0x4] sm:$0xf]
        %v2152 = vld [vmem:[#allocation7 + $0x8] sm:$0xf]
        %v2153 = vld [vmem:[#allocation7 + $0xc] sm:$0xf]
        %v2154 = vld [vmem:[#allocation7 + $0x10] sm:$0xf]
        %v2155 = vld [vmem:[#allocation7 + $0x14] sm:$0xf]
        %v2156 = vld [vmem:[#allocation7 + $0x18] sm:$0xf]
        %v2157 = vld [vmem:[#allocation7 + $0x1c] sm:$0xf]
        %v2158 = vld [vmem:[#allocation7 + $0x20] sm:$0xf]
        %v2159 = vld [vmem:[#allocation7 + $0x24] sm:$0xf]
        %v2160 = vld [vmem:[#allocation7 + $0x28] sm:$0xf]
        %v2161 = vld [vmem:[#allocation7 + $0x2c] sm:$0xf]
        %v2162 = vld [vmem:[#allocation7 + $0x30] sm:$0xf]
        %v2163 = vld [vmem:[#allocation7 + $0x34] sm:$0xf]
        %v2164 = vld [vmem:[#allocation7 + $0x38] sm:$0xf]
        %v2165 = vld [vmem:[#allocation7 + $0x3c] sm:$0xf]
        %v2166 = vld [vmem:[#allocation2 + $0x1] sm:$0xff]
        %v2167 = vld [vmem:[#allocation2 + $0x11] sm:$0xff]
        %v2168 = vld [vmem:[#allocation2 + $0x21] sm:$0xff]
        %v2169 = vld [vmem:[#allocation2 + $0x31] sm:$0xff]
        %v2170 = vld [vmem:[#allocation2 + $0x41] sm:$0xff]
        %v2171 = vld [vmem:[#allocation2 + $0x51] sm:$0xff]
        %v2172 = vld [vmem:[#allocation2 + $0x61] sm:$0xff]
        %v2173 = vld [vmem:[#allocation2 + $0x71] sm:$0xff]
        %v2174 = vpack.c.bf16 %v2166, %v2166
        %v2175 = vpack.c.bf16 %v2167, %v2167
        %v2176 = vpack.c.bf16 %v2168, %v2168
        %v2177 = vpack.c.bf16 %v2169, %v2169
        %v2178 = vpack.c.bf16 %v2170, %v2170
        %v2179 = vpack.c.bf16 %v2171, %v2171
        %v2180 = vpack.c.bf16 %v2172, %v2172
        %v2181 = vpack.c.bf16 %v2173, %v2173
        %s2182 = scalar_lea.vmem [#allocation7], 64
        %v2183 = vld [vmem:[%s2182] sm:$0xf]
        %v2184 = vld [vmem:[%s2182 + $0x4] sm:$0xf]
        %v2185 = vld [vmem:[%s2182 + $0x8] sm:$0xf]
        %v2186 = vld [vmem:[%s2182 + $0xc] sm:$0xf]
        %v2187 = vld [vmem:[%s2182 + $0x10] sm:$0xf]
        %v2188 = vld [vmem:[%s2182 + $0x14] sm:$0xf]
        %v2189 = vld [vmem:[%s2182 + $0x18] sm:$0xf]
        %v2190 = vld [vmem:[%s2182 + $0x1c] sm:$0xf]
        %v2191 = vld [vmem:[%s2182 + $0x20] sm:$0xf]
        %v2192 = vld [vmem:[%s2182 + $0x24] sm:$0xf]
        %v2193 = vld [vmem:[%s2182 + $0x28] sm:$0xf]
        %v2194 = vld [vmem:[%s2182 + $0x2c] sm:$0xf]
        %v2195 = vld [vmem:[%s2182 + $0x30] sm:$0xf]
        %v2196 = vld [vmem:[%s2182 + $0x34] sm:$0xf]
        %v2197 = vld [vmem:[%s2182 + $0x38] sm:$0xf]
        %v2198 = vld [vmem:[%s2182 + $0x3c] sm:$0xf]
        %v2207 = vunpack.c.l.b16 %v2174
        %v2208 = vunpack.c.l.b16 %v2175
        %v2209 = vunpack.c.l.b16 %v2176
        %v2210 = vunpack.c.l.b16 %v2177
        %v2211 = vunpack.c.l.b16 %v2178
        %v2212 = vunpack.c.l.b16 %v2179
        %v2213 = vunpack.c.l.b16 %v2180
        %v2214 = vunpack.c.l.b16 %v2181
        %v2215 = vpack.c.b16 %v2208, %v2207
        %v2216 = vpack.c.b16 %v2210, %v2209
        %v2217 = vpack.c.b16 %v2212, %v2211
        %v2218 = vpack.c.b16 %v2214, %v2213
        %v2239 = vunpack.c.l.b16 %v2183
        %v2240 = vunpack.c.l.b16 %v2184
        %v2241 = vunpack.c.l.b16 %v2185
        %v2242 = vunpack.c.l.b16 %v2186
        %v2243 = vunpack.c.l.b16 %v2187
        %v2244 = vunpack.c.l.b16 %v2188
        %v2245 = vunpack.c.l.b16 %v2189
        %v2246 = vunpack.c.l.b16 %v2190
        %v2247 = vunpack.c.l.b16 %v2191
        %v2248 = vunpack.c.l.b16 %v2192
        %v2249 = vunpack.c.l.b16 %v2193
        %v2250 = vunpack.c.l.b16 %v2194
        %v2251 = vunpack.c.l.b16 %v2195
        %v2252 = vunpack.c.l.b16 %v2196
        %v2253 = vunpack.c.l.b16 %v2197
        %v2254 = vunpack.c.l.b16 %v2198
        %v2255 = vpack.c.b16 %v2240, %v2239
        %v2256 = vpack.c.b16 %v2242, %v2241
        %v2257 = vpack.c.b16 %v2244, %v2243
        %v2258 = vpack.c.b16 %v2246, %v2245
        %v2259 = vpack.c.b16 %v2248, %v2247
        %v2260 = vpack.c.b16 %v2250, %v2249
        %v2261 = vpack.c.b16 %v2252, %v2251
        %v2262 = vpack.c.b16 %v2254, %v2253
        %2271 = vmatprep.subr.bf16.mxu0 0
        %2272 = vmatpush1.bf16.msra.mxu0 %v2255
        %2273 = vmatprep.subr.bf16.mxu0 0
        %2274 = vmatpush1.bf16.msra.mxu0 %v2256
        %2275 = vmatprep.subr.bf16.mxu0 0
        %2276 = vmatpush1.bf16.msra.mxu0 %v2257
        %2277 = vmatprep.subr.bf16.mxu0 0
        %2278 = vmatpush1.bf16.msra.mxu0 %v2258
        %2279 = vmatprep.subr.bf16.mxu0 0
        %2280 = vmatpush1.bf16.msra.mxu0 %v2259
        %2281 = vmatprep.subr.bf16.mxu0 0
        %2282 = vmatpush1.bf16.msra.mxu0 %v2260
        %2283 = vmatprep.subr.bf16.mxu0 0
        %2284 = vmatpush1.bf16.msra.mxu0 %v2261
        %2285 = vmatprep.subr.bf16.mxu0 0
        %2286 = vmatpush1.bf16.msra.mxu0 %v2262
        %2287 = vmatprep.subr.bf16.mxu0 0
        %2288 = vmatpush1.bf16.msra.mxu0 0
        %2289 = vmatprep.subr.bf16.mxu0 0
        %2290 = vmatpush1.bf16.msra.mxu0 0
        %2291 = vmatprep.subr.bf16.mxu0 0
        %2292 = vmatpush1.bf16.msra.mxu0 0
        %2293 = vmatprep.subr.bf16.mxu0 0
        %2294 = vmatpush1.bf16.msra.mxu0 0
        %2295 = vmatprep.subr.bf16.mxu0 0
        %2296 = vmatpush1.bf16.msra.mxu0 0
        %2297 = vmatprep.subr.bf16.mxu0 0
        %2298 = vmatpush1.bf16.msra.mxu0 0
        %2299 = vmatprep.subr.bf16.mxu0 0
        %2300 = vmatpush1.bf16.msra.mxu0 0
        %2301 = vmatprep.subr.bf16.mxu0 0
        %2302 = vmatpush1.bf16.msra.mxu0 0
        %2303 = vmatprep.mubr.bf16.mxu0 0
        %2304 = vmatmul.mubr.bf16.gmra.mrb[0].mxu0 %v2215
        %v2305 = vpop.f32.mrb[0].mxu0
        %v2306 = vadd.f32 0.0, %v2305
        %v2307 = vpop.f32.mrb[0].mxu0
        %v2308 = vpop.f32.mrb[0].mxu0
        %v2309 = vadd.f32 0.0, %v2308
        %v2310 = vpop.f32.mrb[0].mxu0
        %2311 = vmatprep.mubr.bf16.mxu0 0
        %2312 = vmatmul.mubr.bf16.gmra.mrb[0].mxu0 %v2216
        %v2313 = vpop.f32.mrb[0].mxu0
        %v2314 = vadd.f32 0.0, %v2313
        %v2315 = vpop.f32.mrb[0].mxu0
        %v2316 = vpop.f32.mrb[0].mxu0
        %v2317 = vadd.f32 0.0, %v2316
        %v2318 = vpop.f32.mrb[0].mxu0
        %2319 = vmatprep.mubr.bf16.mxu0 0
        %2320 = vmatmul.mubr.bf16.gmra.mrb[0].mxu0 %v2217
        %v2321 = vpop.f32.mrb[0].mxu0
        %v2322 = vadd.f32 0.0, %v2321
        %v2323 = vpop.f32.mrb[0].mxu0
        %v2324 = vpop.f32.mrb[0].mxu0
        %v2325 = vadd.f32 0.0, %v2324
        %v2326 = vpop.f32.mrb[0].mxu0
        %2327 = vmatprep.mubr.bf16.mxu0 0
        %2328 = vmatmul.mubr.bf16.gmra.mrb[0].mxu0 %v2218
        %v2329 = vpop.f32.mrb[0].mxu0
        %v2330 = vadd.f32 0.0, %v2329
        %v2331 = vpop.f32.mrb[0].mxu0
        %v2332 = vpop.f32.mrb[0].mxu0
        %v2333 = vadd.f32 0.0, %v2332
        %v2334 = vpop.f32.mrb[0].mxu0
        %2335 = vdwg.mxu0
        %v2344 = vunpack.c.l.b16 %v2142
        %v2345 = vunpack.c.l.b16 %v2143
        %v2346 = vunpack.c.l.b16 %v2144
        %v2347 = vunpack.c.l.b16 %v2145
        %v2348 = vunpack.c.l.b16 %v2146
        %v2349 = vunpack.c.l.b16 %v2147
        %v2350 = vunpack.c.l.b16 %v2148
        %v2351 = vunpack.c.l.b16 %v2149
        %v2352 = vpack.c.b16 %v2345, %v2344
        %v2353 = vpack.c.b16 %v2347, %v2346
        %v2354 = vpack.c.b16 %v2349, %v2348
        %v2355 = vpack.c.b16 %v2351, %v2350
        %v2376 = vunpack.c.l.b16 %v2150
        %v2377 = vunpack.c.l.b16 %v2151
        %v2378 = vunpack.c.l.b16 %v2152
        %v2379 = vunpack.c.l.b16 %v2153
        %v2380 = vunpack.c.l.b16 %v2154
        %v2381 = vunpack.c.l.b16 %v2155
        %v2382 = vunpack.c.l.b16 %v2156
        %v2383 = vunpack.c.l.b16 %v2157
        %v2384 = vunpack.c.l.b16 %v2158
        %v2385 = vunpack.c.l.b16 %v2159
        %v2386 = vunpack.c.l.b16 %v2160
        %v2387 = vunpack.c.l.b16 %v2161
        %v2388 = vunpack.c.l.b16 %v2162
        %v2389 = vunpack.c.l.b16 %v2163
        %v2390 = vunpack.c.l.b16 %v2164
        %v2391 = vunpack.c.l.b16 %v2165
        %v2392 = vpack.c.b16 %v2377, %v2376
        %v2393 = vpack.c.b16 %v2379, %v2378
        %v2394 = vpack.c.b16 %v2381, %v2380
        %v2395 = vpack.c.b16 %v2383, %v2382
        %v2396 = vpack.c.b16 %v2385, %v2384
        %v2397 = vpack.c.b16 %v2387, %v2386
        %v2398 = vpack.c.b16 %v2389, %v2388
        %v2399 = vpack.c.b16 %v2391, %v2390
        %2408 = vmatprep.subr.bf16.mxu0 0
        %2409 = vmatpush1.bf16.msra.mxu0 %v2392
        %2410 = vmatprep.subr.bf16.mxu0 0
        %2411 = vmatpush1.bf16.msra.mxu0 %v2393
        %2412 = vmatprep.subr.bf16.mxu0 0
        %2413 = vmatpush1.bf16.msra.mxu0 %v2394
        %2414 = vmatprep.subr.bf16.mxu0 0
        %2415 = vmatpush1.bf16.msra.mxu0 %v2395
        %2416 = vmatprep.subr.bf16.mxu0 0
        %2417 = vmatpush1.bf16.msra.mxu0 %v2396
        %2418 = vmatprep.subr.bf16.mxu0 0
        %2419 = vmatpush1.bf16.msra.mxu0 %v2397
        %2420 = vmatprep.subr.bf16.mxu0 0
        %2421 = vmatpush1.bf16.msra.mxu0 %v2398
        %2422 = vmatprep.subr.bf16.mxu0 0
        %2423 = vmatpush1.bf16.msra.mxu0 %v2399
        %2424 = vmatprep.subr.bf16.mxu0 0
        %2425 = vmatpush1.bf16.msra.mxu0 0
        %2426 = vmatprep.subr.bf16.mxu0 0
        %2427 = vmatpush1.bf16.msra.mxu0 0
        %2428 = vmatprep.subr.bf16.mxu0 0
        %2429 = vmatpush1.bf16.msra.mxu0 0
        %2430 = vmatprep.subr.bf16.mxu0 0
        %2431 = vmatpush1.bf16.msra.mxu0 0
        %2432 = vmatprep.subr.bf16.mxu0 0
        %2433 = vmatpush1.bf16.msra.mxu0 0
        %2434 = vmatprep.subr.bf16.mxu0 0
        %2435 = vmatpush1.bf16.msra.mxu0 0
        %2436 = vmatprep.subr.bf16.mxu0 0
        %2437 = vmatpush1.bf16.msra.mxu0 0
        %2438 = vmatprep.subr.bf16.mxu0 0
        %2439 = vmatpush1.bf16.msra.mxu0 0
        %2440 = vmatprep.mubr.bf16.mxu0 0
        %2441 = vmatmul.mubr.bf16.gmra.mrb[0].mxu0 %v2352
        %v2442 = vpop.f32.mrb[0].mxu0
        %v2443 = vadd.f32 %v2306, %v2442
        %v2444 = vpop.f32.mrb[0].mxu0
        %v2445 = vpop.f32.mrb[0].mxu0
        %v2446 = vadd.f32 %v2309, %v2445
        %v2447 = vpop.f32.mrb[0].mxu0
        %2448 = vmatprep.mubr.bf16.mxu0 0
        %2449 = vmatmul.mubr.bf16.gmra.mrb[0].mxu0 %v2353
        %v2450 = vpop.f32.mrb[0].mxu0
        %v2451 = vadd.f32 %v2314, %v2450
        %v2452 = vpop.f32.mrb[0].mxu0
        %v2453 = vpop.f32.mrb[0].mxu0
        %v2454 = vadd.f32 %v2317, %v2453
        %v2455 = vpop.f32.mrb[0].mxu0
        %2456 = vmatprep.mubr.bf16.mxu0 0
        %2457 = vmatmul.mubr.bf16.gmra.mrb[0].mxu0 %v2354
        %v2458 = vpop.f32.mrb[0].mxu0
        %v2459 = vadd.f32 %v2322, %v2458
        %v2460 = vpop.f32.mrb[0].mxu0
        %v2461 = vpop.f32.mrb[0].mxu0
        %v2462 = vadd.f32 %v2325, %v2461
        %v2463 = vpop.f32.mrb[0].mxu0
        %2464 = vmatprep.mubr.bf16.mxu0 0
        %2465 = vmatmul.mubr.bf16.gmra.mrb[0].mxu0 %v2355
        %v2466 = vpop.f32.mrb[0].mxu0
        %v2467 = vadd.f32 %v2330, %v2466
        %v2468 = vpop.f32.mrb[0].mxu0
        %v2469 = vpop.f32.mrb[0].mxu0
        %v2470 = vadd.f32 %v2333, %v2469
        %v2471 = vpop.f32.mrb[0].mxu0
        %2472 = vdwg.mxu0
        %v2473 = vld [vmem:[#allocation2 + $0x2] sm:$0xff]
        %v2474 = vld [vmem:[#allocation2 + $0x12] sm:$0xff]
        %v2475 = vld [vmem:[#allocation2 + $0x22] sm:$0xff]
        %v2476 = vld [vmem:[#allocation2 + $0x32] sm:$0xff]
        %v2477 = vld [vmem:[#allocation2 + $0x42] sm:$0xff]
        %v2478 = vld [vmem:[#allocation2 + $0x52] sm:$0xff]
        %v2479 = vld [vmem:[#allocation2 + $0x62] sm:$0xff]
        %v2480 = vld [vmem:[#allocation2 + $0x72] sm:$0xff]
        %v2481 = vpack.c.bf16 %v2473, %v2473
        %v2482 = vpack.c.bf16 %v2474, %v2474
        %v2483 = vpack.c.bf16 %v2475, %v2475
        %v2484 = vpack.c.bf16 %v2476, %v2476
        %v2485 = vpack.c.bf16 %v2477, %v2477
        %v2486 = vpack.c.bf16 %v2478, %v2478
        %v2487 = vpack.c.bf16 %v2479, %v2479
        %v2488 = vpack.c.bf16 %v2480, %v2480
        %s2489 = scalar_lea.vmem [#allocation7], 128
        %v2490 = vld [vmem:[%s2489] sm:$0xf]
        %v2491 = vld [vmem:[%s2489 + $0x4] sm:$0xf]
        %v2492 = vld [vmem:[%s2489 + $0x8] sm:$0xf]
        %v2493 = vld [vmem:[%s2489 + $0xc] sm:$0xf]
        %v2494 = vld [vmem:[%s2489 + $0x10] sm:$0xf]
        %v2495 = vld [vmem:[%s2489 + $0x14] sm:$0xf]
        %v2496 = vld [vmem:[%s2489 + $0x18] sm:$0xf]
        %v2497 = vld [vmem:[%s2489 + $0x1c] sm:$0xf]
        %v2498 = vld [vmem:[%s2489 + $0x20] sm:$0xf]
        %v2499 = vld [vmem:[%s2489 + $0x24] sm:$0xf]
        %v2500 = vld [vmem:[%s2489 + $0x28] sm:$0xf]
        %v2501 = vld [vmem:[%s2489 + $0x2c] sm:$0xf]
        %v2502 = vld [vmem:[%s2489 + $0x30] sm:$0xf]
        %v2503 = vld [vmem:[%s2489 + $0x34] sm:$0xf]
        %v2504 = vld [vmem:[%s2489 + $0x38] sm:$0xf]
        %v2505 = vld [vmem:[%s2489 + $0x3c] sm:$0xf]
        %v2514 = vunpack.c.l.b16 %v2481
        %v2515 = vunpack.c.l.b16 %v2482
        %v2516 = vunpack.c.l.b16 %v2483
        %v2517 = vunpack.c.l.b16 %v2484
        %v2518 = vunpack.c.l.b16 %v2485
        %v2519 = vunpack.c.l.b16 %v2486
        %v2520 = vunpack.c.l.b16 %v2487
        %v2521 = vunpack.c.l.b16 %v2488
        %v2522 = vpack.c.b16 %v2515, %v2514
        %v2523 = vpack.c.b16 %v2517, %v2516
        %v2524 = vpack.c.b16 %v2519, %v2518
        %v2525 = vpack.c.b16 %v2521, %v2520
        %v2546 = vunpack.c.l.b16 %v2490
        %v2547 = vunpack.c.l.b16 %v2491
        %v2548 = vunpack.c.l.b16 %v2492
        %v2549 = vunpack.c.l.b16 %v2493
        %v2550 = vunpack.c.l.b16 %v2494
        %v2551 = vunpack.c.l.b16 %v2495
        %v2552 = vunpack.c.l.b16 %v2496
        %v2553 = vunpack.c.l.b16 %v2497
        %v2554 = vunpack.c.l.b16 %v2498
        %v2555 = vunpack.c.l.b16 %v2499
        %v2556 = vunpack.c.l.b16 %v2500
        %v2557 = vunpack.c.l.b16 %v2501
        %v2558 = vunpack.c.l.b16 %v2502
        %v2559 = vunpack.c.l.b16 %v2503
        %v2560 = vunpack.c.l.b16 %v2504
        %v2561 = vunpack.c.l.b16 %v2505
        %v2562 = vpack.c.b16 %v2547, %v2546
        %v2563 = vpack.c.b16 %v2549, %v2548
        %v2564 = vpack.c.b16 %v2551, %v2550
        %v2565 = vpack.c.b16 %v2553, %v2552
        %v2566 = vpack.c.b16 %v2555, %v2554
        %v2567 = vpack.c.b16 %v2557, %v2556
        %v2568 = vpack.c.b16 %v2559, %v2558
        %v2569 = vpack.c.b16 %v2561, %v2560
        %2578 = vmatprep.subr.bf16.mxu0 0
        %2579 = vmatpush1.bf16.msra.mxu0 %v2562
        %2580 = vmatprep.subr.bf16.mxu0 0
        %2581 = vmatpush1.bf16.msra.mxu0 %v2563
        %2582 = vmatprep.subr.bf16.mxu0 0
        %2583 = vmatpush1.bf16.msra.mxu0 %v2564
        %2584 = vmatprep.subr.bf16.mxu0 0
        %2585 = vmatpush1.bf16.msra.mxu0 %v2565
        %2586 = vmatprep.subr.bf16.mxu0 0
        %2587 = vmatpush1.bf16.msra.mxu0 %v2566
        %2588 = vmatprep.subr.bf16.mxu0 0
        %2589 = vmatpush1.bf16.msra.mxu0 %v2567
        %2590 = vmatprep.subr.bf16.mxu0 0
        %2591 = vmatpush1.bf16.msra.mxu0 %v2568
        %2592 = vmatprep.subr.bf16.mxu0 0
        %2593 = vmatpush1.bf16.msra.mxu0 %v2569
        %2594 = vmatprep.subr.bf16.mxu0 0
        %2595 = vmatpush1.bf16.msra.mxu0 0
        %2596 = vmatprep.subr.bf16.mxu0 0
        %2597 = vmatpush1.bf16.msra.mxu0 0
        %2598 = vmatprep.subr.bf16.mxu0 0
        %2599 = vmatpush1.bf16.msra.mxu0 0
        %2600 = vmatprep.subr.bf16.mxu0 0
        %2601 = vmatpush1.bf16.msra.mxu0 0
        %2602 = vmatprep.subr.bf16.mxu0 0
        %2603 = vmatpush1.bf16.msra.mxu0 0
        %2604 = vmatprep.subr.bf16.mxu0 0
        %2605 = vmatpush1.bf16.msra.mxu0 0
        %2606 = vmatprep.subr.bf16.mxu0 0
        %2607 = vmatpush1.bf16.msra.mxu0 0
        %2608 = vmatprep.subr.bf16.mxu0 0
        %2609 = vmatpush1.bf16.msra.mxu0 0
        %2610 = vmatprep.mubr.bf16.mxu0 0
        %2611 = vmatmul.mubr.bf16.gmra.mrb[0].mxu0 %v2522
        %v2612 = vpop.f32.mrb[0].mxu0
        %v2613 = vadd.f32 0.0, %v2612
        %v2614 = vpop.f32.mrb[0].mxu0
        %v2615 = vpop.f32.mrb[0].mxu0
        %v2616 = vadd.f32 0.0, %v2615
        %v2617 = vpop.f32.mrb[0].mxu0
        %2618 = vmatprep.mubr.bf16.mxu0 0
        %2619 = vmatmul.mubr.bf16.gmra.mrb[0].mxu0 %v2523
        %v2620 = vpop.f32.mrb[0].mxu0
        %v2621 = vadd.f32 0.0, %v2620
        %v2622 = vpop.f32.mrb[0].mxu0
        %v2623 = vpop.f32.mrb[0].mxu0
        %v2624 = vadd.f32 0.0, %v2623
        %v2625 = vpop.f32.mrb[0].mxu0
        %2626 = vmatprep.mubr.bf16.mxu0 0
        %2627 = vmatmul.mubr.bf16.gmra.mrb[0].mxu0 %v2524
        %v2628 = vpop.f32.mrb[0].mxu0
        %v2629 = vadd.f32 0.0, %v2628
        %v2630 = vpop.f32.mrb[0].mxu0
        %v2631 = vpop.f32.mrb[0].mxu0
        %v2632 = vadd.f32 0.0, %v2631
        %v2633 = vpop.f32.mrb[0].mxu0
        %2634 = vmatprep.mubr.bf16.mxu0 0
        %2635 = vmatmul.mubr.bf16.gmra.mrb[0].mxu0 %v2525
        %v2636 = vpop.f32.mrb[0].mxu0
        %v2637 = vadd.f32 0.0, %v2636
        %v2638 = vpop.f32.mrb[0].mxu0
        %v2639 = vpop.f32.mrb[0].mxu0
        %v2640 = vadd.f32 0.0, %v2639
        %v2641 = vpop.f32.mrb[0].mxu0
        %2642 = vdwg.mxu0
        %v2643 = vadd.f32 %v2443, %v2613
        %v2644 = vadd.f32 %v2446, %v2616
        %v2645 = vadd.f32 %v2451, %v2621
        %v2646 = vadd.f32 %v2454, %v2624
        %v2647 = vadd.f32 %v2459, %v2629
        %v2648 = vadd.f32 %v2462, %v2632
        %v2649 = vadd.f32 %v2467, %v2637
        %v2650 = vadd.f32 %v2470, %v2640
        %v2651 = vld [vmem:[%s2125] sm:$0xff]
        %v2652 = vld [vmem:[%s2125 + $0x10] sm:$0xff]
        %v2653 = vld [vmem:[%s2125 + $0x20] sm:$0xff]
        %v2654 = vld [vmem:[%s2125 + $0x30] sm:$0xff]
        %v2655 = vld [vmem:[%s2125 + $0x40] sm:$0xff]
        %v2656 = vld [vmem:[%s2125 + $0x50] sm:$0xff]
        %v2657 = vld [vmem:[%s2125 + $0x60] sm:$0xff]
        %v2658 = vld [vmem:[%s2125 + $0x70] sm:$0xff]
        %v2659 = vpack.c.bf16 %v2651, %v2651
        %v2660 = vpack.c.bf16 %v2652, %v2652
        %v2661 = vpack.c.bf16 %v2653, %v2653
        %v2662 = vpack.c.bf16 %v2654, %v2654
        %v2663 = vpack.c.bf16 %v2655, %v2655
        %v2664 = vpack.c.bf16 %v2656, %v2656
        %v2665 = vpack.c.bf16 %v2657, %v2657
        %v2666 = vpack.c.bf16 %v2658, %v2658
        %s2667 = scalar_lea.vmem [#allocation7], 192
        %v2668 = vld [vmem:[%s2667] sm:$0xf]
        %v2669 = vld [vmem:[%s2667 + $0x4] sm:$0xf]
        %v2670 = vld [vmem:[%s2667 + $0x8] sm:$0xf]
        %v2671 = vld [vmem:[%s2667 + $0xc] sm:$0xf]
        %v2672 = vld [vmem:[%s2667 + $0x10] sm:$0xf]
        %v2673 = vld [vmem:[%s2667 + $0x14] sm:$0xf]
        %v2674 = vld [vmem:[%s2667 + $0x18] sm:$0xf]
        %v2675 = vld [vmem:[%s2667 + $0x1c] sm:$0xf]
        %v2676 = vld [vmem:[%s2667 + $0x20] sm:$0xf]
        %v2677 = vld [vmem:[%s2667 + $0x24] sm:$0xf]
        %v2678 = vld [vmem:[%s2667 + $0x28] sm:$0xf]
        %v2679 = vld [vmem:[%s2667 + $0x2c] sm:$0xf]
        %v2680 = vld [vmem:[%s2667 + $0x30] sm:$0xf]
        %v2681 = vld [vmem:[%s2667 + $0x34] sm:$0xf]
        %v2682 = vld [vmem:[%s2667 + $0x38] sm:$0xf]
        %v2683 = vld [vmem:[%s2667 + $0x3c] sm:$0xf]
        %v2692 = vunpack.c.l.b16 %v2659
        %v2693 = vunpack.c.l.b16 %v2660
        %v2694 = vunpack.c.l.b16 %v2661
        %v2695 = vunpack.c.l.b16 %v2662
        %v2696 = vunpack.c.l.b16 %v2663
        %v2697 = vunpack.c.l.b16 %v2664
        %v2698 = vunpack.c.l.b16 %v2665
        %v2699 = vunpack.c.l.b16 %v2666
        %v2700 = vpack.c.b16 %v2693, %v2692
        %v2701 = vpack.c.b16 %v2695, %v2694
        %v2702 = vpack.c.b16 %v2697, %v2696
        %v2703 = vpack.c.b16 %v2699, %v2698
        %v2724 = vunpack.c.l.b16 %v2668
        %v2725 = vunpack.c.l.b16 %v2669
        %v2726 = vunpack.c.l.b16 %v2670
        %v2727 = vunpack.c.l.b16 %v2671
        %v2728 = vunpack.c.l.b16 %v2672
        %v2729 = vunpack.c.l.b16 %v2673
        %v2730 = vunpack.c.l.b16 %v2674
        %v2731 = vunpack.c.l.b16 %v2675
        %v2732 = vunpack.c.l.b16 %v2676
        %v2733 = vunpack.c.l.b16 %v2677
        %v2734 = vunpack.c.l.b16 %v2678
        %v2735 = vunpack.c.l.b16 %v2679
        %v2736 = vunpack.c.l.b16 %v2680
        %v2737 = vunpack.c.l.b16 %v2681
        %v2738 = vunpack.c.l.b16 %v2682
        %v2739 = vunpack.c.l.b16 %v2683
        %v2740 = vpack.c.b16 %v2725, %v2724
        %v2741 = vpack.c.b16 %v2727, %v2726
        %v2742 = vpack.c.b16 %v2729, %v2728
        %v2743 = vpack.c.b16 %v2731, %v2730
        %v2744 = vpack.c.b16 %v2733, %v2732
        %v2745 = vpack.c.b16 %v2735, %v2734
        %v2746 = vpack.c.b16 %v2737, %v2736
        %v2747 = vpack.c.b16 %v2739, %v2738
        %2756 = vmatprep.subr.bf16.mxu0 0
        %2757 = vmatpush1.bf16.msra.mxu0 %v2740
        %2758 = vmatprep.subr.bf16.mxu0 0
        %2759 = vmatpush1.bf16.msra.mxu0 %v2741
        %2760 = vmatprep.subr.bf16.mxu0 0
        %2761 = vmatpush1.bf16.msra.mxu0 %v2742
        %2762 = vmatprep.subr.bf16.mxu0 0
        %2763 = vmatpush1.bf16.msra.mxu0 %v2743
        %2764 = vmatprep.subr.bf16.mxu0 0
        %2765 = vmatpush1.bf16.msra.mxu0 %v2744
        %2766 = vmatprep.subr.bf16.mxu0 0
        %2767 = vmatpush1.bf16.msra.mxu0 %v2745
        %2768 = vmatprep.subr.bf16.mxu0 0
        %2769 = vmatpush1.bf16.msra.mxu0 %v2746
        %2770 = vmatprep.subr.bf16.mxu0 0
        %2771 = vmatpush1.bf16.msra.mxu0 %v2747
        %2772 = vmatprep.subr.bf16.mxu0 0
        %2773 = vmatpush1.bf16.msra.mxu0 0
        %2774 = vmatprep.subr.bf16.mxu0 0
        %2775 = vmatpush1.bf16.msra.mxu0 0
        %2776 = vmatprep.subr.bf16.mxu0 0
        %2777 = vmatpush1.bf16.msra.mxu0 0
        %2778 = vmatprep.subr.bf16.mxu0 0
        %2779 = vmatpush1.bf16.msra.mxu0 0
        %2780 = vmatprep.subr.bf16.mxu0 0
        %2781 = vmatpush1.bf16.msra.mxu0 0
        %2782 = vmatprep.subr.bf16.mxu0 0
        %2783 = vmatpush1.bf16.msra.mxu0 0
        %2784 = vmatprep.subr.bf16.mxu0 0
        %2785 = vmatpush1.bf16.msra.mxu0 0
        %2786 = vmatprep.subr.bf16.mxu0 0
        %2787 = vmatpush1.bf16.msra.mxu0 0
        %2788 = vmatprep.mubr.bf16.mxu0 0
        %2789 = vmatmul.mubr.bf16.gmra.mrb[0].mxu0 %v2700
        %v2790 = vpop.f32.mrb[0].mxu0
        %v2791 = vadd.f32 0.0, %v2790
        %v2792 = vpop.f32.mrb[0].mxu0
        %v2793 = vpop.f32.mrb[0].mxu0
        %v2794 = vadd.f32 0.0, %v2793
        %v2795 = vpop.f32.mrb[0].mxu0
        %2796 = vmatprep.mubr.bf16.mxu0 0
        %2797 = vmatmul.mubr.bf16.gmra.mrb[0].mxu0 %v2701
        %v2798 = vpop.f32.mrb[0].mxu0
        %v2799 = vadd.f32 0.0, %v2798
        %v2800 = vpop.f32.mrb[0].mxu0
        %v2801 = vpop.f32.mrb[0].mxu0
        %v2802 = vadd.f32 0.0, %v2801
        %v2803 = vpop.f32.mrb[0].mxu0
        %2804 = vmatprep.mubr.bf16.mxu0 0
        %2805 = vmatmul.mubr.bf16.gmra.mrb[0].mxu0 %v2702
        %v2806 = vpop.f32.mrb[0].mxu0
        %v2807 = vadd.f32 0.0, %v2806
        %v2808 = vpop.f32.mrb[0].mxu0
        %v2809 = vpop.f32.mrb[0].mxu0
        %v2810 = vadd.f32 0.0, %v2809
        %v2811 = vpop.f32.mrb[0].mxu0
        %2812 = vmatprep.mubr.bf16.mxu0 0
        %2813 = vmatmul.mubr.bf16.gmra.mrb[0].mxu0 %v2703
        %v2814 = vpop.f32.mrb[0].mxu0
        %v2815 = vadd.f32 0.0, %v2814
        %v2816 = vpop.f32.mrb[0].mxu0
        %v2817 = vpop.f32.mrb[0].mxu0
        %v2818 = vadd.f32 0.0, %v2817
        %v2819 = vpop.f32.mrb[0].mxu0
        %2820 = vdwg.mxu0
        %v2821 = vadd.f32 %v2643, %v2791
        %v2822 = vadd.f32 %v2644, %v2794
        %v2823 = vadd.f32 %v2645, %v2799
        %v2824 = vadd.f32 %v2646, %v2802
        %v2825 = vadd.f32 %v2647, %v2807
        %v2826 = vadd.f32 %v2648, %v2810
        %v2827 = vadd.f32 %v2649, %v2815
        %v2828 = vadd.f32 %v2650, %v2818
        %v2829 = vld [vmem:[%s2125 + $0x1] sm:$0xff]
        %v2830 = vld [vmem:[%s2125 + $0x11] sm:$0xff]
        %v2831 = vld [vmem:[%s2125 + $0x21] sm:$0xff]
        %v2832 = vld [vmem:[%s2125 + $0x31] sm:$0xff]
        %v2833 = vld [vmem:[%s2125 + $0x41] sm:$0xff]
        %v2834 = vld [vmem:[%s2125 + $0x51] sm:$0xff]
        %v2835 = vld [vmem:[%s2125 + $0x61] sm:$0xff]
        %v2836 = vld [vmem:[%s2125 + $0x71] sm:$0xff]
        %v2837 = vpack.c.bf16 %v2829, %v2829
        %v2838 = vpack.c.bf16 %v2830, %v2830
        %v2839 = vpack.c.bf16 %v2831, %v2831
        %v2840 = vpack.c.bf16 %v2832, %v2832
        %v2841 = vpack.c.bf16 %v2833, %v2833
        %v2842 = vpack.c.bf16 %v2834, %v2834
        %v2843 = vpack.c.bf16 %v2835, %v2835
        %v2844 = vpack.c.bf16 %v2836, %v2836
        %s2845 = scalar_lea.vmem [#allocation7], 256
        %v2846 = vld [vmem:[%s2845] sm:$0xf]
        %v2847 = vld [vmem:[%s2845 + $0x4] sm:$0xf]
        %v2848 = vld [vmem:[%s2845 + $0x8] sm:$0xf]
        %v2849 = vld [vmem:[%s2845 + $0xc] sm:$0xf]
        %v2850 = vld [vmem:[%s2845 + $0x10] sm:$0xf]
        %v2851 = vld [vmem:[%s2845 + $0x14] sm:$0xf]
        %v2852 = vld [vmem:[%s2845 + $0x18] sm:$0xf]
        %v2853 = vld [vmem:[%s2845 + $0x1c] sm:$0xf]
        %v2854 = vld [vmem:[%s2845 + $0x20] sm:$0xf]
        %v2855 = vld [vmem:[%s2845 + $0x24] sm:$0xf]
        %v2856 = vld [vmem:[%s2845 + $0x28] sm:$0xf]
        %v2857 = vld [vmem:[%s2845 + $0x2c] sm:$0xf]
        %v2858 = vld [vmem:[%s2845 + $0x30] sm:$0xf]
        %v2859 = vld [vmem:[%s2845 + $0x34] sm:$0xf]
        %v2860 = vld [vmem:[%s2845 + $0x38] sm:$0xf]
        %v2861 = vld [vmem:[%s2845 + $0x3c] sm:$0xf]
        %v2870 = vunpack.c.l.b16 %v2837
        %v2871 = vunpack.c.l.b16 %v2838
        %v2872 = vunpack.c.l.b16 %v2839
        %v2873 = vunpack.c.l.b16 %v2840
        %v2874 = vunpack.c.l.b16 %v2841
        %v2875 = vunpack.c.l.b16 %v2842
        %v2876 = vunpack.c.l.b16 %v2843
        %v2877 = vunpack.c.l.b16 %v2844
        %v2878 = vpack.c.b16 %v2871, %v2870
        %v2879 = vpack.c.b16 %v2873, %v2872
        %v2880 = vpack.c.b16 %v2875, %v2874
        %v2881 = vpack.c.b16 %v2877, %v2876
        %v2902 = vunpack.c.l.b16 %v2846
        %v2903 = vunpack.c.l.b16 %v2847
        %v2904 = vunpack.c.l.b16 %v2848
        %v2905 = vunpack.c.l.b16 %v2849
        %v2906 = vunpack.c.l.b16 %v2850
        %v2907 = vunpack.c.l.b16 %v2851
        %v2908 = vunpack.c.l.b16 %v2852
        %v2909 = vunpack.c.l.b16 %v2853
        %v2910 = vunpack.c.l.b16 %v2854
        %v2911 = vunpack.c.l.b16 %v2855
        %v2912 = vunpack.c.l.b16 %v2856
        %v2913 = vunpack.c.l.b16 %v2857
        %v2914 = vunpack.c.l.b16 %v2858
        %v2915 = vunpack.c.l.b16 %v2859
        %v2916 = vunpack.c.l.b16 %v2860
        %v2917 = vunpack.c.l.b16 %v2861
        %v2918 = vpack.c.b16 %v2903, %v2902
        %v2919 = vpack.c.b16 %v2905, %v2904
        %v2920 = vpack.c.b16 %v2907, %v2906
        %v2921 = vpack.c.b16 %v2909, %v2908
        %v2922 = vpack.c.b16 %v2911, %v2910
        %v2923 = vpack.c.b16 %v2913, %v2912
        %v2924 = vpack.c.b16 %v2915, %v2914
        %v2925 = vpack.c.b16 %v2917, %v2916
        %2934 = vmatprep.subr.bf16.mxu0 0
        %2935 = vmatpush1.bf16.msra.mxu0 %v2918
        %2936 = vmatprep.subr.bf16.mxu0 0
        %2937 = vmatpush1.bf16.msra.mxu0 %v2919
        %2938 = vmatprep.subr.bf16.mxu0 0
        %2939 = vmatpush1.bf16.msra.mxu0 %v2920
        %2940 = vmatprep.subr.bf16.mxu0 0
        %2941 = vmatpush1.bf16.msra.mxu0 %v2921
        %2942 = vmatprep.subr.bf16.mxu0 0
        %2943 = vmatpush1.bf16.msra.mxu0 %v2922
        %2944 = vmatprep.subr.bf16.mxu0 0
        %2945 = vmatpush1.bf16.msra.mxu0 %v2923
        %2946 = vmatprep.subr.bf16.mxu0 0
        %2947 = vmatpush1.bf16.msra.mxu0 %v2924
        %2948 = vmatprep.subr.bf16.mxu0 0
        %2949 = vmatpush1.bf16.msra.mxu0 %v2925
        %2950 = vmatprep.subr.bf16.mxu0 0
        %2951 = vmatpush1.bf16.msra.mxu0 0
        %2952 = vmatprep.subr.bf16.mxu0 0
        %2953 = vmatpush1.bf16.msra.mxu0 0
        %2954 = vmatprep.subr.bf16.mxu0 0
        %2955 = vmatpush1.bf16.msra.mxu0 0
        %2956 = vmatprep.subr.bf16.mxu0 0
        %2957 = vmatpush1.bf16.msra.mxu0 0
        %2958 = vmatprep.subr.bf16.mxu0 0
        %2959 = vmatpush1.bf16.msra.mxu0 0
        %2960 = vmatprep.subr.bf16.mxu0 0
        %2961 = vmatpush1.bf16.msra.mxu0 0
        %2962 = vmatprep.subr.bf16.mxu0 0
        %2963 = vmatpush1.bf16.msra.mxu0 0
        %2964 = vmatprep.subr.bf16.mxu0 0
        %2965 = vmatpush1.bf16.msra.mxu0 0
        %2966 = vmatprep.mubr.bf16.mxu0 0
        %2967 = vmatmul.mubr.bf16.gmra.mrb[0].mxu0 %v2878
        %v2968 = vpop.f32.mrb[0].mxu0
        %v2969 = vadd.f32 0.0, %v2968
        %v2970 = vpop.f32.mrb[0].mxu0
        %v2971 = vpop.f32.mrb[0].mxu0
        %v2972 = vadd.f32 0.0, %v2971
        %v2973 = vpop.f32.mrb[0].mxu0
        %2974 = vmatprep.mubr.bf16.mxu0 0
        %2975 = vmatmul.mubr.bf16.gmra.mrb[0].mxu0 %v2879
        %v2976 = vpop.f32.mrb[0].mxu0
        %v2977 = vadd.f32 0.0, %v2976
        %v2978 = vpop.f32.mrb[0].mxu0
        %v2979 = vpop.f32.mrb[0].mxu0
        %v2980 = vadd.f32 0.0, %v2979
        %v2981 = vpop.f32.mrb[0].mxu0
        %2982 = vmatprep.mubr.bf16.mxu0 0
        %2983 = vmatmul.mubr.bf16.gmra.mrb[0].mxu0 %v2880
        %v2984 = vpop.f32.mrb[0].mxu0
        %v2985 = vadd.f32 0.0, %v2984
        %v2986 = vpop.f32.mrb[0].mxu0
        %v2987 = vpop.f32.mrb[0].mxu0
        %v2988 = vadd.f32 0.0, %v2987
        %v2989 = vpop.f32.mrb[0].mxu0
        %2990 = vmatprep.mubr.bf16.mxu0 0
        %2991 = vmatmul.mubr.bf16.gmra.mrb[0].mxu0 %v2881
        %v2992 = vpop.f32.mrb[0].mxu0
        %v2993 = vadd.f32 0.0, %v2992
        %v2994 = vpop.f32.mrb[0].mxu0
        %v2995 = vpop.f32.mrb[0].mxu0
        %v2996 = vadd.f32 0.0, %v2995
        %v2997 = vpop.f32.mrb[0].mxu0
        %2998 = vdwg.mxu0
        %v2999 = vadd.f32 %v2821, %v2969
        %v3000 = vadd.f32 %v2822, %v2972
        %v3001 = vadd.f32 %v2823, %v2977
        %v3002 = vadd.f32 %v2824, %v2980
        %v3003 = vadd.f32 %v2825, %v2985
        %v3004 = vadd.f32 %v2826, %v2988
        %v3005 = vadd.f32 %v2827, %v2993
        %v3006 = vadd.f32 %v2828, %v2996
        %v3007 = vld [vmem:[%s2125 + $0x2] sm:$0xff]
        %v3008 = vld [vmem:[%s2125 + $0x12] sm:$0xff]
        %v3009 = vld [vmem:[%s2125 + $0x22] sm:$0xff]
        %v3010 = vld [vmem:[%s2125 + $0x32] sm:$0xff]
        %v3011 = vld [vmem:[%s2125 + $0x42] sm:$0xff]
        %v3012 = vld [vmem:[%s2125 + $0x52] sm:$0xff]
        %v3013 = vld [vmem:[%s2125 + $0x62] sm:$0xff]
        %v3014 = vld [vmem:[%s2125 + $0x72] sm:$0xff]
        %v3015 = vpack.c.bf16 %v3007, %v3007
        %v3016 = vpack.c.bf16 %v3008, %v3008
        %v3017 = vpack.c.bf16 %v3009, %v3009
        %v3018 = vpack.c.bf16 %v3010, %v3010
        %v3019 = vpack.c.bf16 %v3011, %v3011
        %v3020 = vpack.c.bf16 %v3012, %v3012
        %v3021 = vpack.c.bf16 %v3013, %v3013
        %v3022 = vpack.c.bf16 %v3014, %v3014
        %s3023 = scalar_lea.vmem [#allocation7], 320
        %v3024 = vld [vmem:[%s3023] sm:$0xf]
        %v3025 = vld [vmem:[%s3023 + $0x4] sm:$0xf]
        %v3026 = vld [vmem:[%s3023 + $0x8] sm:$0xf]
        %v3027 = vld [vmem:[%s3023 + $0xc] sm:$0xf]
        %v3028 = vld [vmem:[%s3023 + $0x10] sm:$0xf]
        %v3029 = vld [vmem:[%s3023 + $0x14] sm:$0xf]
        %v3030 = vld [vmem:[%s3023 + $0x18] sm:$0xf]
        %v3031 = vld [vmem:[%s3023 + $0x1c] sm:$0xf]
        %v3032 = vld [vmem:[%s3023 + $0x20] sm:$0xf]
        %v3033 = vld [vmem:[%s3023 + $0x24] sm:$0xf]
        %v3034 = vld [vmem:[%s3023 + $0x28] sm:$0xf]
        %v3035 = vld [vmem:[%s3023 + $0x2c] sm:$0xf]
        %v3036 = vld [vmem:[%s3023 + $0x30] sm:$0xf]
        %v3037 = vld [vmem:[%s3023 + $0x34] sm:$0xf]
        %v3038 = vld [vmem:[%s3023 + $0x38] sm:$0xf]
        %v3039 = vld [vmem:[%s3023 + $0x3c] sm:$0xf]
        %v3048 = vunpack.c.l.b16 %v3015
        %v3049 = vunpack.c.l.b16 %v3016
        %v3050 = vunpack.c.l.b16 %v3017
        %v3051 = vunpack.c.l.b16 %v3018
        %v3052 = vunpack.c.l.b16 %v3019
        %v3053 = vunpack.c.l.b16 %v3020
        %v3054 = vunpack.c.l.b16 %v3021
        %v3055 = vunpack.c.l.b16 %v3022
        %v3056 = vpack.c.b16 %v3049, %v3048
        %v3057 = vpack.c.b16 %v3051, %v3050
        %v3058 = vpack.c.b16 %v3053, %v3052
        %v3059 = vpack.c.b16 %v3055, %v3054
        %v3080 = vunpack.c.l.b16 %v3024
        %v3081 = vunpack.c.l.b16 %v3025
        %v3082 = vunpack.c.l.b16 %v3026
        %v3083 = vunpack.c.l.b16 %v3027
        %v3084 = vunpack.c.l.b16 %v3028
        %v3085 = vunpack.c.l.b16 %v3029
        %v3086 = vunpack.c.l.b16 %v3030
        %v3087 = vunpack.c.l.b16 %v3031
        %v3088 = vunpack.c.l.b16 %v3032
        %v3089 = vunpack.c.l.b16 %v3033
        %v3090 = vunpack.c.l.b16 %v3034
        %v3091 = vunpack.c.l.b16 %v3035
        %v3092 = vunpack.c.l.b16 %v3036
        %v3093 = vunpack.c.l.b16 %v3037
        %v3094 = vunpack.c.l.b16 %v3038
        %v3095 = vunpack.c.l.b16 %v3039
        %v3096 = vpack.c.b16 %v3081, %v3080
        %v3097 = vpack.c.b16 %v3083, %v3082
        %v3098 = vpack.c.b16 %v3085, %v3084
        %v3099 = vpack.c.b16 %v3087, %v3086
        %v3100 = vpack.c.b16 %v3089, %v3088
        %v3101 = vpack.c.b16 %v3091, %v3090
        %v3102 = vpack.c.b16 %v3093, %v3092
        %v3103 = vpack.c.b16 %v3095, %v3094
        %3112 = vmatprep.subr.bf16.mxu0 0
        %3113 = vmatpush1.bf16.msra.mxu0 %v3096
        %3114 = vmatprep.subr.bf16.mxu0 0
        %3115 = vmatpush1.bf16.msra.mxu0 %v3097
        %3116 = vmatprep.subr.bf16.mxu0 0
        %3117 = vmatpush1.bf16.msra.mxu0 %v3098
        %3118 = vmatprep.subr.bf16.mxu0 0
        %3119 = vmatpush1.bf16.msra.mxu0 %v3099
        %3120 = vmatprep.subr.bf16.mxu0 0
        %3121 = vmatpush1.bf16.msra.mxu0 %v3100
        %3122 = vmatprep.subr.bf16.mxu0 0
        %3123 = vmatpush1.bf16.msra.mxu0 %v3101
        %3124 = vmatprep.subr.bf16.mxu0 0
        %3125 = vmatpush1.bf16.msra.mxu0 %v3102
        %3126 = vmatprep.subr.bf16.mxu0 0
        %3127 = vmatpush1.bf16.msra.mxu0 %v3103
        %3128 = vmatprep.subr.bf16.mxu0 0
        %3129 = vmatpush1.bf16.msra.mxu0 0
        %3130 = vmatprep.subr.bf16.mxu0 0
        %3131 = vmatpush1.bf16.msra.mxu0 0
        %3132 = vmatprep.subr.bf16.mxu0 0
        %3133 = vmatpush1.bf16.msra.mxu0 0
        %3134 = vmatprep.subr.bf16.mxu0 0
        %3135 = vmatpush1.bf16.msra.mxu0 0
        %3136 = vmatprep.subr.bf16.mxu0 0
        %3137 = vmatpush1.bf16.msra.mxu0 0
        %3138 = vmatprep.subr.bf16.mxu0 0
        %3139 = vmatpush1.bf16.msra.mxu0 0
        %3140 = vmatprep.subr.bf16.mxu0 0
        %3141 = vmatpush1.bf16.msra.mxu0 0
        %3142 = vmatprep.subr.bf16.mxu0 0
        %3143 = vmatpush1.bf16.msra.mxu0 0
        %3144 = vmatprep.mubr.bf16.mxu0 0
        %3145 = vmatmul.mubr.bf16.gmra.mrb[0].mxu0 %v3056
        %v3146 = vpop.f32.mrb[0].mxu0
        %v3147 = vadd.f32 0.0, %v3146
        %v3148 = vpop.f32.mrb[0].mxu0
        %v3149 = vpop.f32.mrb[0].mxu0
        %v3150 = vadd.f32 0.0, %v3149
        %v3151 = vpop.f32.mrb[0].mxu0
        %3152 = vmatprep.mubr.bf16.mxu0 0
        %3153 = vmatmul.mubr.bf16.gmra.mrb[0].mxu0 %v3057
        %v3154 = vpop.f32.mrb[0].mxu0
        %v3155 = vadd.f32 0.0, %v3154
        %v3156 = vpop.f32.mrb[0].mxu0
        %v3157 = vpop.f32.mrb[0].mxu0
        %v3158 = vadd.f32 0.0, %v3157
        %v3159 = vpop.f32.mrb[0].mxu0
        %3160 = vmatprep.mubr.bf16.mxu0 0
        %3161 = vmatmul.mubr.bf16.gmra.mrb[0].mxu0 %v3058
        %v3162 = vpop.f32.mrb[0].mxu0
        %v3163 = vadd.f32 0.0, %v3162
        %v3164 = vpop.f32.mrb[0].mxu0
        %v3165 = vpop.f32.mrb[0].mxu0
        %v3166 = vadd.f32 0.0, %v3165
        %v3167 = vpop.f32.mrb[0].mxu0
        %3168 = vmatprep.mubr.bf16.mxu0 0
        %3169 = vmatmul.mubr.bf16.gmra.mrb[0].mxu0 %v3059
        %v3170 = vpop.f32.mrb[0].mxu0
        %v3171 = vadd.f32 0.0, %v3170
        %v3172 = vpop.f32.mrb[0].mxu0
        %v3173 = vpop.f32.mrb[0].mxu0
        %v3174 = vadd.f32 0.0, %v3173
        %v3175 = vpop.f32.mrb[0].mxu0
        %3176 = vdwg.mxu0
        %v3177 = vadd.f32 %v2999, %v3147
        %v3178 = vadd.f32 %v3000, %v3150
        %v3179 = vadd.f32 %v3001, %v3155
        %v3180 = vadd.f32 %v3002, %v3158
        %v3181 = vadd.f32 %v3003, %v3163
        %v3182 = vadd.f32 %v3004, %v3166
        %v3183 = vadd.f32 %v3005, %v3171
        %v3184 = vadd.f32 %v3006, %v3174
        %s3185 = scalar_lea.vmem [#allocation2], 32
        %v3186 = vld [vmem:[%s3185] sm:$0xff]
        %v3187 = vld [vmem:[%s3185 + $0x10] sm:$0xff]
        %v3188 = vld [vmem:[%s3185 + $0x20] sm:$0xff]
        %v3189 = vld [vmem:[%s3185 + $0x30] sm:$0xff]
        %v3190 = vld [vmem:[%s3185 + $0x40] sm:$0xff]
        %v3191 = vld [vmem:[%s3185 + $0x50] sm:$0xff]
        %v3192 = vld [vmem:[%s3185 + $0x60] sm:$0xff]
        %v3193 = vld [vmem:[%s3185 + $0x70] sm:$0xff]
        %v3194 = vpack.c.bf16 %v3186, %v3186
        %v3195 = vpack.c.bf16 %v3187, %v3187
        %v3196 = vpack.c.bf16 %v3188, %v3188
        %v3197 = vpack.c.bf16 %v3189, %v3189
        %v3198 = vpack.c.bf16 %v3190, %v3190
        %v3199 = vpack.c.bf16 %v3191, %v3191
        %v3200 = vpack.c.bf16 %v3192, %v3192
        %v3201 = vpack.c.bf16 %v3193, %v3193
        %s3202 = scalar_lea.vmem [#allocation7], 384
        %v3203 = vld [vmem:[%s3202] sm:$0xf]
        %v3204 = vld [vmem:[%s3202 + $0x4] sm:$0xf]
        %v3205 = vld [vmem:[%s3202 + $0x8] sm:$0xf]
        %v3206 = vld [vmem:[%s3202 + $0xc] sm:$0xf]
        %v3207 = vld [vmem:[%s3202 + $0x10] sm:$0xf]
        %v3208 = vld [vmem:[%s3202 + $0x14] sm:$0xf]
        %v3209 = vld [vmem:[%s3202 + $0x18] sm:$0xf]
        %v3210 = vld [vmem:[%s3202 + $0x1c] sm:$0xf]
        %v3211 = vld [vmem:[%s3202 + $0x20] sm:$0xf]
        %v3212 = vld [vmem:[%s3202 + $0x24] sm:$0xf]
        %v3213 = vld [vmem:[%s3202 + $0x28] sm:$0xf]
        %v3214 = vld [vmem:[%s3202 + $0x2c] sm:$0xf]
        %v3215 = vld [vmem:[%s3202 + $0x30] sm:$0xf]
        %v3216 = vld [vmem:[%s3202 + $0x34] sm:$0xf]
        %v3217 = vld [vmem:[%s3202 + $0x38] sm:$0xf]
        %v3218 = vld [vmem:[%s3202 + $0x3c] sm:$0xf]
        %v3227 = vunpack.c.l.b16 %v3194
        %v3228 = vunpack.c.l.b16 %v3195
        %v3229 = vunpack.c.l.b16 %v3196
        %v3230 = vunpack.c.l.b16 %v3197
        %v3231 = vunpack.c.l.b16 %v3198
        %v3232 = vunpack.c.l.b16 %v3199
        %v3233 = vunpack.c.l.b16 %v3200
        %v3234 = vunpack.c.l.b16 %v3201
        %v3235 = vpack.c.b16 %v3228, %v3227
        %v3236 = vpack.c.b16 %v3230, %v3229
        %v3237 = vpack.c.b16 %v3232, %v3231
        %v3238 = vpack.c.b16 %v3234, %v3233
        %v3259 = vunpack.c.l.b16 %v3203
        %v3260 = vunpack.c.l.b16 %v3204
        %v3261 = vunpack.c.l.b16 %v3205
        %v3262 = vunpack.c.l.b16 %v3206
        %v3263 = vunpack.c.l.b16 %v3207
        %v3264 = vunpack.c.l.b16 %v3208
        %v3265 = vunpack.c.l.b16 %v3209
        %v3266 = vunpack.c.l.b16 %v3210
        %v3267 = vunpack.c.l.b16 %v3211
        %v3268 = vunpack.c.l.b16 %v3212
        %v3269 = vunpack.c.l.b16 %v3213
        %v3270 = vunpack.c.l.b16 %v3214
        %v3271 = vunpack.c.l.b16 %v3215
        %v3272 = vunpack.c.l.b16 %v3216
        %v3273 = vunpack.c.l.b16 %v3217
        %v3274 = vunpack.c.l.b16 %v3218
        %v3275 = vpack.c.b16 %v3260, %v3259
        %v3276 = vpack.c.b16 %v3262, %v3261
        %v3277 = vpack.c.b16 %v3264, %v3263
        %v3278 = vpack.c.b16 %v3266, %v3265
        %v3279 = vpack.c.b16 %v3268, %v3267
        %v3280 = vpack.c.b16 %v3270, %v3269
        %v3281 = vpack.c.b16 %v3272, %v3271
        %v3282 = vpack.c.b16 %v3274, %v3273
        %3291 = vmatprep.subr.bf16.mxu0 0
        %3292 = vmatpush1.bf16.msra.mxu0 %v3275
        %3293 = vmatprep.subr.bf16.mxu0 0
        %3294 = vmatpush1.bf16.msra.mxu0 %v3276
        %3295 = vmatprep.subr.bf16.mxu0 0
        %3296 = vmatpush1.bf16.msra.mxu0 %v3277
        %3297 = vmatprep.subr.bf16.mxu0 0
        %3298 = vmatpush1.bf16.msra.mxu0 %v3278
        %3299 = vmatprep.subr.bf16.mxu0 0
        %3300 = vmatpush1.bf16.msra.mxu0 %v3279
        %3301 = vmatprep.subr.bf16.mxu0 0
        %3302 = vmatpush1.bf16.msra.mxu0 %v3280
        %3303 = vmatprep.subr.bf16.mxu0 0
        %3304 = vmatpush1.bf16.msra.mxu0 %v3281
        %3305 = vmatprep.subr.bf16.mxu0 0
        %3306 = vmatpush1.bf16.msra.mxu0 %v3282
        %3307 = vmatprep.subr.bf16.mxu0 0
        %3308 = vmatpush1.bf16.msra.mxu0 0
        %3309 = vmatprep.subr.bf16.mxu0 0
        %3310 = vmatpush1.bf16.msra.mxu0 0
        %3311 = vmatprep.subr.bf16.mxu0 0
        %3312 = vmatpush1.bf16.msra.mxu0 0
        %3313 = vmatprep.subr.bf16.mxu0 0
        %3314 = vmatpush1.bf16.msra.mxu0 0
        %3315 = vmatprep.subr.bf16.mxu0 0
        %3316 = vmatpush1.bf16.msra.mxu0 0
        %3317 = vmatprep.subr.bf16.mxu0 0
        %3318 = vmatpush1.bf16.msra.mxu0 0
        %3319 = vmatprep.subr.bf16.mxu0 0
        %3320 = vmatpush1.bf16.msra.mxu0 0
        %3321 = vmatprep.subr.bf16.mxu0 0
        %3322 = vmatpush1.bf16.msra.mxu0 0
        %3323 = vmatprep.mubr.bf16.mxu0 0
        %3324 = vmatmul.mubr.bf16.gmra.mrb[0].mxu0 %v3235
        %v3325 = vpop.f32.mrb[0].mxu0
        %v3326 = vadd.f32 0.0, %v3325
        %v3327 = vpop.f32.mrb[0].mxu0
        %v3328 = vpop.f32.mrb[0].mxu0
        %v3329 = vadd.f32 0.0, %v3328
        %v3330 = vpop.f32.mrb[0].mxu0
        %3331 = vmatprep.mubr.bf16.mxu0 0
        %3332 = vmatmul.mubr.bf16.gmra.mrb[0].mxu0 %v3236
        %v3333 = vpop.f32.mrb[0].mxu0
        %v3334 = vadd.f32 0.0, %v3333
        %v3335 = vpop.f32.mrb[0].mxu0
        %v3336 = vpop.f32.mrb[0].mxu0
        %v3337 = vadd.f32 0.0, %v3336
        %v3338 = vpop.f32.mrb[0].mxu0
        %3339 = vmatprep.mubr.bf16.mxu0 0
        %3340 = vmatmul.mubr.bf16.gmra.mrb[0].mxu0 %v3237
        %v3341 = vpop.f32.mrb[0].mxu0
        %v3342 = vadd.f32 0.0, %v3341
        %v3343 = vpop.f32.mrb[0].mxu0
        %v3344 = vpop.f32.mrb[0].mxu0
        %v3345 = vadd.f32 0.0, %v3344
        %v3346 = vpop.f32.mrb[0].mxu0
        %3347 = vmatprep.mubr.bf16.mxu0 0
        %3348 = vmatmul.mubr.bf16.gmra.mrb[0].mxu0 %v3238
        %v3349 = vpop.f32.mrb[0].mxu0
        %v3350 = vadd.f32 0.0, %v3349
        %v3351 = vpop.f32.mrb[0].mxu0
        %v3352 = vpop.f32.mrb[0].mxu0
        %v3353 = vadd.f32 0.0, %v3352
        %v3354 = vpop.f32.mrb[0].mxu0
        %3355 = vdwg.mxu0
        %v3356 = vadd.f32 %v3177, %v3326
        %v3357 = vadd.f32 %v3178, %v3329
        %v3358 = vadd.f32 %v3179, %v3334
        %v3359 = vadd.f32 %v3180, %v3337
        %v3360 = vadd.f32 %v3181, %v3342
        %v3361 = vadd.f32 %v3182, %v3345
        %v3362 = vadd.f32 %v3183, %v3350
        %v3363 = vadd.f32 %v3184, %v3353
        %v3364 = vld [vmem:[%s3185 + $0x1] sm:$0xff]
        %v3365 = vld [vmem:[%s3185 + $0x11] sm:$0xff]
        %v3366 = vld [vmem:[%s3185 + $0x21] sm:$0xff]
        %v3367 = vld [vmem:[%s3185 + $0x31] sm:$0xff]
        %v3368 = vld [vmem:[%s3185 + $0x41] sm:$0xff]
        %v3369 = vld [vmem:[%s3185 + $0x51] sm:$0xff]
        %v3370 = vld [vmem:[%s3185 + $0x61] sm:$0xff]
        %v3371 = vld [vmem:[%s3185 + $0x71] sm:$0xff]
        %v3372 = vpack.c.bf16 %v3364, %v3364
        %v3373 = vpack.c.bf16 %v3365, %v3365
        %v3374 = vpack.c.bf16 %v3366, %v3366
        %v3375 = vpack.c.bf16 %v3367, %v3367
        %v3376 = vpack.c.bf16 %v3368, %v3368
        %v3377 = vpack.c.bf16 %v3369, %v3369
        %v3378 = vpack.c.bf16 %v3370, %v3370
        %v3379 = vpack.c.bf16 %v3371, %v3371
        %s3380 = scalar_lea.vmem [#allocation7], 448
        %v3381 = vld [vmem:[%s3380] sm:$0xf]
        %v3382 = vld [vmem:[%s3380 + $0x4] sm:$0xf]
        %v3383 = vld [vmem:[%s3380 + $0x8] sm:$0xf]
        %v3384 = vld [vmem:[%s3380 + $0xc] sm:$0xf]
        %v3385 = vld [vmem:[%s3380 + $0x10] sm:$0xf]
        %v3386 = vld [vmem:[%s3380 + $0x14] sm:$0xf]
        %v3387 = vld [vmem:[%s3380 + $0x18] sm:$0xf]
        %v3388 = vld [vmem:[%s3380 + $0x1c] sm:$0xf]
        %v3389 = vld [vmem:[%s3380 + $0x20] sm:$0xf]
        %v3390 = vld [vmem:[%s3380 + $0x24] sm:$0xf]
        %v3391 = vld [vmem:[%s3380 + $0x28] sm:$0xf]
        %v3392 = vld [vmem:[%s3380 + $0x2c] sm:$0xf]
        %v3393 = vld [vmem:[%s3380 + $0x30] sm:$0xf]
        %v3394 = vld [vmem:[%s3380 + $0x34] sm:$0xf]
        %v3395 = vld [vmem:[%s3380 + $0x38] sm:$0xf]
        %v3396 = vld [vmem:[%s3380 + $0x3c] sm:$0xf]
        %v3405 = vunpack.c.l.b16 %v3372
        %v3406 = vunpack.c.l.b16 %v3373
        %v3407 = vunpack.c.l.b16 %v3374
        %v3408 = vunpack.c.l.b16 %v3375
        %v3409 = vunpack.c.l.b16 %v3376
        %v3410 = vunpack.c.l.b16 %v3377
        %v3411 = vunpack.c.l.b16 %v3378
        %v3412 = vunpack.c.l.b16 %v3379
        %v3413 = vpack.c.b16 %v3406, %v3405
        %v3414 = vpack.c.b16 %v3408, %v3407
        %v3415 = vpack.c.b16 %v3410, %v3409
        %v3416 = vpack.c.b16 %v3412, %v3411
        %v3437 = vunpack.c.l.b16 %v3381
        %v3438 = vunpack.c.l.b16 %v3382
        %v3439 = vunpack.c.l.b16 %v3383
        %v3440 = vunpack.c.l.b16 %v3384
        %v3441 = vunpack.c.l.b16 %v3385
        %v3442 = vunpack.c.l.b16 %v3386
        %v3443 = vunpack.c.l.b16 %v3387
        %v3444 = vunpack.c.l.b16 %v3388
        %v3445 = vunpack.c.l.b16 %v3389
        %v3446 = vunpack.c.l.b16 %v3390
        %v3447 = vunpack.c.l.b16 %v3391
        %v3448 = vunpack.c.l.b16 %v3392
        %v3449 = vunpack.c.l.b16 %v3393
        %v3450 = vunpack.c.l.b16 %v3394
        %v3451 = vunpack.c.l.b16 %v3395
        %v3452 = vunpack.c.l.b16 %v3396
        %v3453 = vpack.c.b16 %v3438, %v3437
        %v3454 = vpack.c.b16 %v3440, %v3439
        %v3455 = vpack.c.b16 %v3442, %v3441
        %v3456 = vpack.c.b16 %v3444, %v3443
        %v3457 = vpack.c.b16 %v3446, %v3445
        %v3458 = vpack.c.b16 %v3448, %v3447
        %v3459 = vpack.c.b16 %v3450, %v3449
        %v3460 = vpack.c.b16 %v3452, %v3451
        %3469 = vmatprep.subr.bf16.mxu0 0
        %3470 = vmatpush1.bf16.msra.mxu0 %v3453
        %3471 = vmatprep.subr.bf16.mxu0 0
        %3472 = vmatpush1.bf16.msra.mxu0 %v3454
        %3473 = vmatprep.subr.bf16.mxu0 0
        %3474 = vmatpush1.bf16.msra.mxu0 %v3455
        %3475 = vmatprep.subr.bf16.mxu0 0
        %3476 = vmatpush1.bf16.msra.mxu0 %v3456
        %3477 = vmatprep.subr.bf16.mxu0 0
        %3478 = vmatpush1.bf16.msra.mxu0 %v3457
        %3479 = vmatprep.subr.bf16.mxu0 0
        %3480 = vmatpush1.bf16.msra.mxu0 %v3458
        %3481 = vmatprep.subr.bf16.mxu0 0
        %3482 = vmatpush1.bf16.msra.mxu0 %v3459
        %3483 = vmatprep.subr.bf16.mxu0 0
        %3484 = vmatpush1.bf16.msra.mxu0 %v3460
        %3485 = vmatprep.subr.bf16.mxu0 0
        %3486 = vmatpush1.bf16.msra.mxu0 0
        %3487 = vmatprep.subr.bf16.mxu0 0
        %3488 = vmatpush1.bf16.msra.mxu0 0
        %3489 = vmatprep.subr.bf16.mxu0 0
        %3490 = vmatpush1.bf16.msra.mxu0 0
        %3491 = vmatprep.subr.bf16.mxu0 0
        %3492 = vmatpush1.bf16.msra.mxu0 0
        %3493 = vmatprep.subr.bf16.mxu0 0
        %3494 = vmatpush1.bf16.msra.mxu0 0
        %3495 = vmatprep.subr.bf16.mxu0 0
        %3496 = vmatpush1.bf16.msra.mxu0 0
        %3497 = vmatprep.subr.bf16.mxu0 0
        %3498 = vmatpush1.bf16.msra.mxu0 0
        %3499 = vmatprep.subr.bf16.mxu0 0
        %3500 = vmatpush1.bf16.msra.mxu0 0
        %3501 = vmatprep.mubr.bf16.mxu0 0
        %3502 = vmatmul.mubr.bf16.gmra.mrb[0].mxu0 %v3413
        %v3503 = vpop.f32.mrb[0].mxu0
        %v3504 = vadd.f32 0.0, %v3503
        %v3505 = vpop.f32.mrb[0].mxu0
        %v3506 = vpop.f32.mrb[0].mxu0
        %v3507 = vadd.f32 0.0, %v3506
        %v3508 = vpop.f32.mrb[0].mxu0
        %3509 = vmatprep.mubr.bf16.mxu0 0
        %3510 = vmatmul.mubr.bf16.gmra.mrb[0].mxu0 %v3414
        %v3511 = vpop.f32.mrb[0].mxu0
        %v3512 = vadd.f32 0.0, %v3511
        %v3513 = vpop.f32.mrb[0].mxu0
        %v3514 = vpop.f32.mrb[0].mxu0
        %v3515 = vadd.f32 0.0, %v3514
        %v3516 = vpop.f32.mrb[0].mxu0
        %3517 = vmatprep.mubr.bf16.mxu0 0
        %3518 = vmatmul.mubr.bf16.gmra.mrb[0].mxu0 %v3415
        %v3519 = vpop.f32.mrb[0].mxu0
        %v3520 = vadd.f32 0.0, %v3519
        %v3521 = vpop.f32.mrb[0].mxu0
        %v3522 = vpop.f32.mrb[0].mxu0
        %v3523 = vadd.f32 0.0, %v3522
        %v3524 = vpop.f32.mrb[0].mxu0
        %3525 = vmatprep.mubr.bf16.mxu0 0
        %3526 = vmatmul.mubr.bf16.gmra.mrb[0].mxu0 %v3416
        %v3527 = vpop.f32.mrb[0].mxu0
        %v3528 = vadd.f32 0.0, %v3527
        %v3529 = vpop.f32.mrb[0].mxu0
        %v3530 = vpop.f32.mrb[0].mxu0
        %v3531 = vadd.f32 0.0, %v3530
        %v3532 = vpop.f32.mrb[0].mxu0
        %3533 = vdwg.mxu0
        %v3534 = vadd.f32 %v3356, %v3504
        %v3535 = vadd.f32 %v3357, %v3507
        %v3536 = vadd.f32 %v3358, %v3512
        %v3537 = vadd.f32 %v3359, %v3515
        %v3538 = vadd.f32 %v3360, %v3520
        %v3539 = vadd.f32 %v3361, %v3523
        %v3540 = vadd.f32 %v3362, %v3528
        %v3541 = vadd.f32 %v3363, %v3531
        %v3542 = vld [vmem:[%s3185 + $0x2] sm:$0xff]
        %v3543 = vld [vmem:[%s3185 + $0x12] sm:$0xff]
        %v3544 = vld [vmem:[%s3185 + $0x22] sm:$0xff]
        %v3545 = vld [vmem:[%s3185 + $0x32] sm:$0xff]
        %v3546 = vld [vmem:[%s3185 + $0x42] sm:$0xff]
        %v3547 = vld [vmem:[%s3185 + $0x52] sm:$0xff]
        %v3548 = vld [vmem:[%s3185 + $0x62] sm:$0xff]
        %v3549 = vld [vmem:[%s3185 + $0x72] sm:$0xff]
        %v3550 = vpack.c.bf16 %v3542, %v3542
        %v3551 = vpack.c.bf16 %v3543, %v3543
        %v3552 = vpack.c.bf16 %v3544, %v3544
        %v3553 = vpack.c.bf16 %v3545, %v3545
        %v3554 = vpack.c.bf16 %v3546, %v3546
        %v3555 = vpack.c.bf16 %v3547, %v3547
        %v3556 = vpack.c.bf16 %v3548, %v3548
        %v3557 = vpack.c.bf16 %v3549, %v3549
        %s3558 = scalar_lea.vmem [#allocation7], 512
        %v3559 = vld [vmem:[%s3558] sm:$0xf]
        %v3560 = vld [vmem:[%s3558 + $0x4] sm:$0xf]
        %v3561 = vld [vmem:[%s3558 + $0x8] sm:$0xf]
        %v3562 = vld [vmem:[%s3558 + $0xc] sm:$0xf]
        %v3563 = vld [vmem:[%s3558 + $0x10] sm:$0xf]
        %v3564 = vld [vmem:[%s3558 + $0x14] sm:$0xf]
        %v3565 = vld [vmem:[%s3558 + $0x18] sm:$0xf]
        %v3566 = vld [vmem:[%s3558 + $0x1c] sm:$0xf]
        %v3567 = vld [vmem:[%s3558 + $0x20] sm:$0xf]
        %v3568 = vld [vmem:[%s3558 + $0x24] sm:$0xf]
        %v3569 = vld [vmem:[%s3558 + $0x28] sm:$0xf]
        %v3570 = vld [vmem:[%s3558 + $0x2c] sm:$0xf]
        %v3571 = vld [vmem:[%s3558 + $0x30] sm:$0xf]
        %v3572 = vld [vmem:[%s3558 + $0x34] sm:$0xf]
        %v3573 = vld [vmem:[%s3558 + $0x38] sm:$0xf]
        %v3574 = vld [vmem:[%s3558 + $0x3c] sm:$0xf]
        %v3583 = vunpack.c.l.b16 %v3550
        %v3584 = vunpack.c.l.b16 %v3551
        %v3585 = vunpack.c.l.b16 %v3552
        %v3586 = vunpack.c.l.b16 %v3553
        %v3587 = vunpack.c.l.b16 %v3554
        %v3588 = vunpack.c.l.b16 %v3555
        %v3589 = vunpack.c.l.b16 %v3556
        %v3590 = vunpack.c.l.b16 %v3557
        %v3591 = vpack.c.b16 %v3584, %v3583
        %v3592 = vpack.c.b16 %v3586, %v3585
        %v3593 = vpack.c.b16 %v3588, %v3587
        %v3594 = vpack.c.b16 %v3590, %v3589
        %v3615 = vunpack.c.l.b16 %v3559
        %v3616 = vunpack.c.l.b16 %v3560
        %v3617 = vunpack.c.l.b16 %v3561
        %v3618 = vunpack.c.l.b16 %v3562
        %v3619 = vunpack.c.l.b16 %v3563
        %v3620 = vunpack.c.l.b16 %v3564
        %v3621 = vunpack.c.l.b16 %v3565
        %v3622 = vunpack.c.l.b16 %v3566
        %v3623 = vunpack.c.l.b16 %v3567
        %v3624 = vunpack.c.l.b16 %v3568
        %v3625 = vunpack.c.l.b16 %v3569
        %v3626 = vunpack.c.l.b16 %v3570
        %v3627 = vunpack.c.l.b16 %v3571
        %v3628 = vunpack.c.l.b16 %v3572
        %v3629 = vunpack.c.l.b16 %v3573
        %v3630 = vunpack.c.l.b16 %v3574
        %v3631 = vpack.c.b16 %v3616, %v3615
        %v3632 = vpack.c.b16 %v3618, %v3617
        %v3633 = vpack.c.b16 %v3620, %v3619
        %v3634 = vpack.c.b16 %v3622, %v3621
        %v3635 = vpack.c.b16 %v3624, %v3623
        %v3636 = vpack.c.b16 %v3626, %v3625
        %v3637 = vpack.c.b16 %v3628, %v3627
        %v3638 = vpack.c.b16 %v3630, %v3629
        %3647 = vmatprep.subr.bf16.mxu0 0
        %3648 = vmatpush1.bf16.msra.mxu0 %v3631
        %3649 = vmatprep.subr.bf16.mxu0 0
        %3650 = vmatpush1.bf16.msra.mxu0 %v3632
        %3651 = vmatprep.subr.bf16.mxu0 0
        %3652 = vmatpush1.bf16.msra.mxu0 %v3633
        %3653 = vmatprep.subr.bf16.mxu0 0
        %3654 = vmatpush1.bf16.msra.mxu0 %v3634
        %3655 = vmatprep.subr.bf16.mxu0 0
        %3656 = vmatpush1.bf16.msra.mxu0 %v3635
        %3657 = vmatprep.subr.bf16.mxu0 0
        %3658 = vmatpush1.bf16.msra.mxu0 %v3636
        %3659 = vmatprep.subr.bf16.mxu0 0
        %3660 = vmatpush1.bf16.msra.mxu0 %v3637
        %3661 = vmatprep.subr.bf16.mxu0 0
        %3662 = vmatpush1.bf16.msra.mxu0 %v3638
        %3663 = vmatprep.subr.bf16.mxu0 0
        %3664 = vmatpush1.bf16.msra.mxu0 0
        %3665 = vmatprep.subr.bf16.mxu0 0
        %3666 = vmatpush1.bf16.msra.mxu0 0
        %3667 = vmatprep.subr.bf16.mxu0 0
        %3668 = vmatpush1.bf16.msra.mxu0 0
        %3669 = vmatprep.subr.bf16.mxu0 0
        %3670 = vmatpush1.bf16.msra.mxu0 0
        %3671 = vmatprep.subr.bf16.mxu0 0
        %3672 = vmatpush1.bf16.msra.mxu0 0
        %3673 = vmatprep.subr.bf16.mxu0 0
        %3674 = vmatpush1.bf16.msra.mxu0 0
        %3675 = vmatprep.subr.bf16.mxu0 0
        %3676 = vmatpush1.bf16.msra.mxu0 0
        %3677 = vmatprep.subr.bf16.mxu0 0
        %3678 = vmatpush1.bf16.msra.mxu0 0
        %3679 = vmatprep.mubr.bf16.mxu0 0
        %3680 = vmatmul.mubr.bf16.gmra.mrb[0].mxu0 %v3591
        %v3681 = vpop.f32.mrb[0].mxu0
        %v3682 = vadd.f32 0.0, %v3681
        %v3683 = vpop.f32.mrb[0].mxu0
        %v3684 = vpop.f32.mrb[0].mxu0
        %v3685 = vadd.f32 0.0, %v3684
        %v3686 = vpop.f32.mrb[0].mxu0
        %3687 = vmatprep.mubr.bf16.mxu0 0
        %3688 = vmatmul.mubr.bf16.gmra.mrb[0].mxu0 %v3592
        %v3689 = vpop.f32.mrb[0].mxu0
        %v3690 = vadd.f32 0.0, %v3689
        %v3691 = vpop.f32.mrb[0].mxu0
        %v3692 = vpop.f32.mrb[0].mxu0
        %v3693 = vadd.f32 0.0, %v3692
        %v3694 = vpop.f32.mrb[0].mxu0
        %3695 = vmatprep.mubr.bf16.mxu0 0
        %3696 = vmatmul.mubr.bf16.gmra.mrb[0].mxu0 %v3593
        %v3697 = vpop.f32.mrb[0].mxu0
        %v3698 = vadd.f32 0.0, %v3697
        %v3699 = vpop.f32.mrb[0].mxu0
        %v3700 = vpop.f32.mrb[0].mxu0
        %v3701 = vadd.f32 0.0, %v3700
        %v3702 = vpop.f32.mrb[0].mxu0
        %3703 = vmatprep.mubr.bf16.mxu0 0
        %3704 = vmatmul.mubr.bf16.gmra.mrb[0].mxu0 %v3594
        %v3705 = vpop.f32.mrb[0].mxu0
        %v3706 = vadd.f32 0.0, %v3705
        %v3707 = vpop.f32.mrb[0].mxu0
        %v3708 = vpop.f32.mrb[0].mxu0
        %v3709 = vadd.f32 0.0, %v3708
        %v3710 = vpop.f32.mrb[0].mxu0
        %3711 = vdwg.mxu0
        %v3712 = vadd.f32 %v3534, %v3682
        %v3713 = vadd.f32 %v3535, %v3685
        %v3714 = vadd.f32 %v3536, %v3690
        %v3715 = vadd.f32 %v3537, %v3693
        %v3716 = vadd.f32 %v3538, %v3698
        %v3717 = vadd.f32 %v3539, %v3701
        %v3718 = vadd.f32 %v3540, %v3706
        %v3719 = vadd.f32 %v3541, %v3709
        %v3720 = vld [vmem:[%s2] sm:$0x1]
        %v3722 = vlaneseq
        %v3723 = vshrl.u32 %v3722, 7
        %v3724 = vsub.s32 0, %v3723
        %v3725 = vrot.slane %v3720, %v3724
        %v3727 = vadd.f32 %v3712, %v3725
        %v3728 = vadd.f32 %v3713, %v3725
        %v3729 = vadd.f32 %v3714, %v3725
        %v3730 = vadd.f32 %v3715, %v3725
        %v3731 = vadd.f32 %v3716, %v3725
        %v3732 = vadd.f32 %v3717, %v3725
        %v3733 = vadd.f32 %v3718, %v3725
        %v3734 = vadd.f32 %v3719, %v3725
        %v3735 = vmax.f32 %v3727, 0.0
        %v3736 = vmax.f32 %v3728, 0.0
        %v3737 = vmax.f32 %v3729, 0.0
        %v3738 = vmax.f32 %v3730, 0.0
        %v3739 = vmax.f32 %v3731, 0.0
        %v3740 = vmax.f32 %v3732, 0.0
        %v3741 = vmax.f32 %v3733, 0.0
        %v3742 = vmax.f32 %v3734, 0.0
        %3743 = vst [vmem:[#allocation3] sm:$0xff] 0.0
        %3744 = vst [vmem:[#allocation3 + $0x8] sm:$0x3] 0.0
        %3745 = vst [vmem:[#allocation3 + $0x10] sm:$0xff] 0.0
        %3746 = vst [vmem:[#allocation3 + $0x18] sm:$0x3] 0.0
        %3747 = vst [vmem:[#allocation3 + $0x20] sm:$0xff] 0.0
        %3748 = vst [vmem:[#allocation3 + $0x28] sm:$0x3] 0.0
        %3749 = vst [vmem:[#allocation3 + $0x30] sm:$0xff] 0.0
        %3750 = vst [vmem:[#allocation3 + $0x38] sm:$0x3] 0.0
        %3751 = vst [vmem:[#allocation3 + $0x40] sm:$0xff] 0.0
        %3752 = vst [vmem:[#allocation3 + $0x48] sm:$0x3] 0.0
        %3753 = vst [vmem:[#allocation3 + $0x50] sm:$0xff] 0.0
        %3754 = vst [vmem:[#allocation3 + $0x58] sm:$0x3] 0.0
        %3755 = vst [vmem:[#allocation3 + $0x60] sm:$0xff] 0.0
        %3756 = vst [vmem:[#allocation3 + $0x68] sm:$0x3] 0.0
        %3757 = vst [vmem:[#allocation3 + $0x70] sm:$0xff] 0.0
        %3758 = vst [vmem:[#allocation3 + $0x78] sm:$0x3] 0.0
        %3759 = vst [vmem:[#allocation3 + $0x80] sm:$0xff] 0.0
        %3760 = vst [vmem:[#allocation3 + $0x88] sm:$0x3] 0.0
        %3761 = vst [vmem:[#allocation3 + $0x90] sm:$0xff] 0.0
        %3762 = vst [vmem:[#allocation3 + $0x98] sm:$0x3] 0.0
        %s3763 = scalar_lea.vmem [#allocation3], 16
        %3764 = vst [vmem:[%s3763 + $0x1] sm:$0xff] %v3735
        %3765 = vst [vmem:[%s3763 + $0x11] sm:$0xff] %v3736
        %3766 = vst [vmem:[%s3763 + $0x21] sm:$0xff] %v3737
        %3767 = vst [vmem:[%s3763 + $0x31] sm:$0xff] %v3738
        %3768 = vst [vmem:[%s3763 + $0x41] sm:$0xff] %v3739
        %3769 = vst [vmem:[%s3763 + $0x51] sm:$0xff] %v3740
        %3770 = vst [vmem:[%s3763 + $0x61] sm:$0xff] %v3741
        %3771 = vst [vmem:[%s3763 + $0x71] sm:$0xff] %v3742
        %v3772 = vld [vmem:[#allocation3] sm:$0xff]
        %v3773 = vld [vmem:[#allocation3 + $0x10] sm:$0xff]
        %v3774 = vld [vmem:[#allocation3 + $0x20] sm:$0xff]
        %v3775 = vld [vmem:[#allocation3 + $0x30] sm:$0xff]
        %v3776 = vld [vmem:[#allocation3 + $0x40] sm:$0xff]
        %v3777 = vld [vmem:[#allocation3 + $0x50] sm:$0xff]
        %v3778 = vld [vmem:[#allocation3 + $0x60] sm:$0xff]
        %v3779 = vld [vmem:[#allocation3 + $0x70] sm:$0xff]
        %v3780 = vpack.c.bf16 %v3772, %v3772
        %v3781 = vpack.c.bf16 %v3773, %v3773
        %v3782 = vpack.c.bf16 %v3774, %v3774
        %v3783 = vpack.c.bf16 %v3775, %v3775
        %v3784 = vpack.c.bf16 %v3776, %v3776
        %v3785 = vpack.c.bf16 %v3777, %v3777
        %v3786 = vpack.c.bf16 %v3778, %v3778
        %v3787 = vpack.c.bf16 %v3779, %v3779
        %v3788 = vld [vmem:[#allocation9] sm:$0xf]
        %v3789 = vld [vmem:[#allocation9 + $0x4] sm:$0xf]
        %v3790 = vld [vmem:[#allocation9 + $0x8] sm:$0xf]
        %v3791 = vld [vmem:[#allocation9 + $0xc] sm:$0xf]
        %v3792 = vld [vmem:[#allocation9 + $0x10] sm:$0xf]
        %v3793 = vld [vmem:[#allocation9 + $0x14] sm:$0xf]
        %v3794 = vld [vmem:[#allocation9 + $0x18] sm:$0xf]
        %v3795 = vld [vmem:[#allocation9 + $0x1c] sm:$0xf]
        %v3796 = vld [vmem:[#allocation9 + $0x20] sm:$0xf]
        %v3797 = vld [vmem:[#allocation9 + $0x24] sm:$0xf]
        %v3798 = vld [vmem:[#allocation9 + $0x28] sm:$0xf]
        %v3799 = vld [vmem:[#allocation9 + $0x2c] sm:$0xf]
        %v3800 = vld [vmem:[#allocation9 + $0x30] sm:$0xf]
        %v3801 = vld [vmem:[#allocation9 + $0x34] sm:$0xf]
        %v3802 = vld [vmem:[#allocation9 + $0x38] sm:$0xf]
        %v3803 = vld [vmem:[#allocation9 + $0x3c] sm:$0xf]
        %v3804 = vld [vmem:[#allocation3 + $0x1] sm:$0xff]
        %v3805 = vld [vmem:[#allocation3 + $0x11] sm:$0xff]
        %v3806 = vld [vmem:[#allocation3 + $0x21] sm:$0xff]
        %v3807 = vld [vmem:[#allocation3 + $0x31] sm:$0xff]
        %v3808 = vld [vmem:[#allocation3 + $0x41] sm:$0xff]
        %v3809 = vld [vmem:[#allocation3 + $0x51] sm:$0xff]
        %v3810 = vld [vmem:[#allocation3 + $0x61] sm:$0xff]
        %v3811 = vld [vmem:[#allocation3 + $0x71] sm:$0xff]
        %v3812 = vpack.c.bf16 %v3804, %v3804
        %v3813 = vpack.c.bf16 %v3805, %v3805
        %v3814 = vpack.c.bf16 %v3806, %v3806
        %v3815 = vpack.c.bf16 %v3807, %v3807
        %v3816 = vpack.c.bf16 %v3808, %v3808
        %v3817 = vpack.c.bf16 %v3809, %v3809
        %v3818 = vpack.c.bf16 %v3810, %v3810
        %v3819 = vpack.c.bf16 %v3811, %v3811
        %s3820 = scalar_lea.vmem [#allocation9], 64
        %v3821 = vld [vmem:[%s3820] sm:$0xf]
        %v3822 = vld [vmem:[%s3820 + $0x4] sm:$0xf]
        %v3823 = vld [vmem:[%s3820 + $0x8] sm:$0xf]
        %v3824 = vld [vmem:[%s3820 + $0xc] sm:$0xf]
        %v3825 = vld [vmem:[%s3820 + $0x10] sm:$0xf]
        %v3826 = vld [vmem:[%s3820 + $0x14] sm:$0xf]
        %v3827 = vld [vmem:[%s3820 + $0x18] sm:$0xf]
        %v3828 = vld [vmem:[%s3820 + $0x1c] sm:$0xf]
        %v3829 = vld [vmem:[%s3820 + $0x20] sm:$0xf]
        %v3830 = vld [vmem:[%s3820 + $0x24] sm:$0xf]
        %v3831 = vld [vmem:[%s3820 + $0x28] sm:$0xf]
        %v3832 = vld [vmem:[%s3820 + $0x2c] sm:$0xf]
        %v3833 = vld [vmem:[%s3820 + $0x30] sm:$0xf]
        %v3834 = vld [vmem:[%s3820 + $0x34] sm:$0xf]
        %v3835 = vld [vmem:[%s3820 + $0x38] sm:$0xf]
        %v3836 = vld [vmem:[%s3820 + $0x3c] sm:$0xf]
        %v3845 = vunpack.c.l.b16 %v3812
        %v3846 = vunpack.c.l.b16 %v3813
        %v3847 = vunpack.c.l.b16 %v3814
        %v3848 = vunpack.c.l.b16 %v3815
        %v3849 = vunpack.c.l.b16 %v3816
        %v3850 = vunpack.c.l.b16 %v3817
        %v3851 = vunpack.c.l.b16 %v3818
        %v3852 = vunpack.c.l.b16 %v3819
        %v3853 = vpack.c.b16 %v3846, %v3845
        %v3854 = vpack.c.b16 %v3848, %v3847
        %v3855 = vpack.c.b16 %v3850, %v3849
        %v3856 = vpack.c.b16 %v3852, %v3851
        %v3877 = vunpack.c.l.b16 %v3821
        %v3878 = vunpack.c.l.b16 %v3822
        %v3879 = vunpack.c.l.b16 %v3823
        %v3880 = vunpack.c.l.b16 %v3824
        %v3881 = vunpack.c.l.b16 %v3825
        %v3882 = vunpack.c.l.b16 %v3826
        %v3883 = vunpack.c.l.b16 %v3827
        %v3884 = vunpack.c.l.b16 %v3828
        %v3885 = vunpack.c.l.b16 %v3829
        %v3886 = vunpack.c.l.b16 %v3830
        %v3887 = vunpack.c.l.b16 %v3831
        %v3888 = vunpack.c.l.b16 %v3832
        %v3889 = vunpack.c.l.b16 %v3833
        %v3890 = vunpack.c.l.b16 %v3834
        %v3891 = vunpack.c.l.b16 %v3835
        %v3892 = vunpack.c.l.b16 %v3836
        %v3893 = vpack.c.b16 %v3878, %v3877
        %v3894 = vpack.c.b16 %v3880, %v3879
        %v3895 = vpack.c.b16 %v3882, %v3881
        %v3896 = vpack.c.b16 %v3884, %v3883
        %v3897 = vpack.c.b16 %v3886, %v3885
        %v3898 = vpack.c.b16 %v3888, %v3887
        %v3899 = vpack.c.b16 %v3890, %v3889
        %v3900 = vpack.c.b16 %v3892, %v3891
        %3909 = vmatprep.subr.bf16.mxu0 0
        %3910 = vmatpush1.bf16.msra.mxu0 %v3893
        %3911 = vmatprep.subr.bf16.mxu0 0
        %3912 = vmatpush1.bf16.msra.mxu0 %v3894
        %3913 = vmatprep.subr.bf16.mxu0 0
        %3914 = vmatpush1.bf16.msra.mxu0 %v3895
        %3915 = vmatprep.subr.bf16.mxu0 0
        %3916 = vmatpush1.bf16.msra.mxu0 %v3896
        %3917 = vmatprep.subr.bf16.mxu0 0
        %3918 = vmatpush1.bf16.msra.mxu0 %v3897
        %3919 = vmatprep.subr.bf16.mxu0 0
        %3920 = vmatpush1.bf16.msra.mxu0 %v3898
        %3921 = vmatprep.subr.bf16.mxu0 0
        %3922 = vmatpush1.bf16.msra.mxu0 %v3899
        %3923 = vmatprep.subr.bf16.mxu0 0
        %3924 = vmatpush1.bf16.msra.mxu0 %v3900
        %3925 = vmatprep.subr.bf16.mxu0 0
        %3926 = vmatpush1.bf16.msra.mxu0 0
        %3927 = vmatprep.subr.bf16.mxu0 0
        %3928 = vmatpush1.bf16.msra.mxu0 0
        %3929 = vmatprep.subr.bf16.mxu0 0
        %3930 = vmatpush1.bf16.msra.mxu0 0
        %3931 = vmatprep.subr.bf16.mxu0 0
        %3932 = vmatpush1.bf16.msra.mxu0 0
        %3933 = vmatprep.subr.bf16.mxu0 0
        %3934 = vmatpush1.bf16.msra.mxu0 0
        %3935 = vmatprep.subr.bf16.mxu0 0
        %3936 = vmatpush1.bf16.msra.mxu0 0
        %3937 = vmatprep.subr.bf16.mxu0 0
        %3938 = vmatpush1.bf16.msra.mxu0 0
        %3939 = vmatprep.subr.bf16.mxu0 0
        %3940 = vmatpush1.bf16.msra.mxu0 0
        %3941 = vmatprep.mubr.bf16.mxu0 0
        %3942 = vmatmul.mubr.bf16.gmra.mrb[0].mxu0 %v3853
        %v3943 = vpop.f32.mrb[0].mxu0
        %v3944 = vadd.f32 0.0, %v3943
        %v3945 = vpop.f32.mrb[0].mxu0
        %v3946 = vpop.f32.mrb[0].mxu0
        %v3947 = vadd.f32 0.0, %v3946
        %v3948 = vpop.f32.mrb[0].mxu0
        %3949 = vmatprep.mubr.bf16.mxu0 0
        %3950 = vmatmul.mubr.bf16.gmra.mrb[0].mxu0 %v3854
        %v3951 = vpop.f32.mrb[0].mxu0
        %v3952 = vadd.f32 0.0, %v3951
        %v3953 = vpop.f32.mrb[0].mxu0
        %v3954 = vpop.f32.mrb[0].mxu0
        %v3955 = vadd.f32 0.0, %v3954
        %v3956 = vpop.f32.mrb[0].mxu0
        %3957 = vmatprep.mubr.bf16.mxu0 0
        %3958 = vmatmul.mubr.bf16.gmra.mrb[0].mxu0 %v3855
        %v3959 = vpop.f32.mrb[0].mxu0
        %v3960 = vadd.f32 0.0, %v3959
        %v3961 = vpop.f32.mrb[0].mxu0
        %v3962 = vpop.f32.mrb[0].mxu0
        %v3963 = vadd.f32 0.0, %v3962
        %v3964 = vpop.f32.mrb[0].mxu0
        %3965 = vmatprep.mubr.bf16.mxu0 0
        %3966 = vmatmul.mubr.bf16.gmra.mrb[0].mxu0 %v3856
        %v3967 = vpop.f32.mrb[0].mxu0
        %v3968 = vadd.f32 0.0, %v3967
        %v3969 = vpop.f32.mrb[0].mxu0
        %v3970 = vpop.f32.mrb[0].mxu0
        %v3971 = vadd.f32 0.0, %v3970
        %v3972 = vpop.f32.mrb[0].mxu0
        %3973 = vdwg.mxu0
        %v3982 = vunpack.c.l.b16 %v3780
        %v3983 = vunpack.c.l.b16 %v3781
        %v3984 = vunpack.c.l.b16 %v3782
        %v3985 = vunpack.c.l.b16 %v3783
        %v3986 = vunpack.c.l.b16 %v3784
        %v3987 = vunpack.c.l.b16 %v3785
        %v3988 = vunpack.c.l.b16 %v3786
        %v3989 = vunpack.c.l.b16 %v3787
        %v3990 = vpack.c.b16 %v3983, %v3982
        %v3991 = vpack.c.b16 %v3985, %v3984
        %v3992 = vpack.c.b16 %v3987, %v3986
        %v3993 = vpack.c.b16 %v3989, %v3988
        %v4014 = vunpack.c.l.b16 %v3788
        %v4015 = vunpack.c.l.b16 %v3789
        %v4016 = vunpack.c.l.b16 %v3790
        %v4017 = vunpack.c.l.b16 %v3791
        %v4018 = vunpack.c.l.b16 %v3792
        %v4019 = vunpack.c.l.b16 %v3793
        %v4020 = vunpack.c.l.b16 %v3794
        %v4021 = vunpack.c.l.b16 %v3795
        %v4022 = vunpack.c.l.b16 %v3796
        %v4023 = vunpack.c.l.b16 %v3797
        %v4024 = vunpack.c.l.b16 %v3798
        %v4025 = vunpack.c.l.b16 %v3799
        %v4026 = vunpack.c.l.b16 %v3800
        %v4027 = vunpack.c.l.b16 %v3801
        %v4028 = vunpack.c.l.b16 %v3802
        %v4029 = vunpack.c.l.b16 %v3803
        %v4030 = vpack.c.b16 %v4015, %v4014
        %v4031 = vpack.c.b16 %v4017, %v4016
        %v4032 = vpack.c.b16 %v4019, %v4018
        %v4033 = vpack.c.b16 %v4021, %v4020
        %v4034 = vpack.c.b16 %v4023, %v4022
        %v4035 = vpack.c.b16 %v4025, %v4024
        %v4036 = vpack.c.b16 %v4027, %v4026
        %v4037 = vpack.c.b16 %v4029, %v4028
        %4046 = vmatprep.subr.bf16.mxu0 0
        %4047 = vmatpush1.bf16.msra.mxu0 %v4030
        %4048 = vmatprep.subr.bf16.mxu0 0
        %4049 = vmatpush1.bf16.msra.mxu0 %v4031
        %4050 = vmatprep.subr.bf16.mxu0 0
        %4051 = vmatpush1.bf16.msra.mxu0 %v4032
        %4052 = vmatprep.subr.bf16.mxu0 0
        %4053 = vmatpush1.bf16.msra.mxu0 %v4033
        %4054 = vmatprep.subr.bf16.mxu0 0
        %4055 = vmatpush1.bf16.msra.mxu0 %v4034
        %4056 = vmatprep.subr.bf16.mxu0 0
        %4057 = vmatpush1.bf16.msra.mxu0 %v4035
        %4058 = vmatprep.subr.bf16.mxu0 0
        %4059 = vmatpush1.bf16.msra.mxu0 %v4036
        %4060 = vmatprep.subr.bf16.mxu0 0
        %4061 = vmatpush1.bf16.msra.mxu0 %v4037
        %4062 = vmatprep.subr.bf16.mxu0 0
        %4063 = vmatpush1.bf16.msra.mxu0 0
        %4064 = vmatprep.subr.bf16.mxu0 0
        %4065 = vmatpush1.bf16.msra.mxu0 0
        %4066 = vmatprep.subr.bf16.mxu0 0
        %4067 = vmatpush1.bf16.msra.mxu0 0
        %4068 = vmatprep.subr.bf16.mxu0 0
        %4069 = vmatpush1.bf16.msra.mxu0 0
        %4070 = vmatprep.subr.bf16.mxu0 0
        %4071 = vmatpush1.bf16.msra.mxu0 0
        %4072 = vmatprep.subr.bf16.mxu0 0
        %4073 = vmatpush1.bf16.msra.mxu0 0
        %4074 = vmatprep.subr.bf16.mxu0 0
        %4075 = vmatpush1.bf16.msra.mxu0 0
        %4076 = vmatprep.subr.bf16.mxu0 0
        %4077 = vmatpush1.bf16.msra.mxu0 0
        %4078 = vmatprep.mubr.bf16.mxu0 0
        %4079 = vmatmul.mubr.bf16.gmra.mrb[0].mxu0 %v3990
        %v4080 = vpop.f32.mrb[0].mxu0
        %v4081 = vadd.f32 %v3944, %v4080
        %v4082 = vpop.f32.mrb[0].mxu0
        %v4083 = vpop.f32.mrb[0].mxu0
        %v4084 = vadd.f32 %v3947, %v4083
        %v4085 = vpop.f32.mrb[0].mxu0
        %4086 = vmatprep.mubr.bf16.mxu0 0
        %4087 = vmatmul.mubr.bf16.gmra.mrb[0].mxu0 %v3991
        %v4088 = vpop.f32.mrb[0].mxu0
        %v4089 = vadd.f32 %v3952, %v4088
        %v4090 = vpop.f32.mrb[0].mxu0
        %v4091 = vpop.f32.mrb[0].mxu0
        %v4092 = vadd.f32 %v3955, %v4091
        %v4093 = vpop.f32.mrb[0].mxu0
        %4094 = vmatprep.mubr.bf16.mxu0 0
        %4095 = vmatmul.mubr.bf16.gmra.mrb[0].mxu0 %v3992
        %v4096 = vpop.f32.mrb[0].mxu0
        %v4097 = vadd.f32 %v3960, %v4096
        %v4098 = vpop.f32.mrb[0].mxu0
        %v4099 = vpop.f32.mrb[0].mxu0
        %v4100 = vadd.f32 %v3963, %v4099
        %v4101 = vpop.f32.mrb[0].mxu0
        %4102 = vmatprep.mubr.bf16.mxu0 0
        %4103 = vmatmul.mubr.bf16.gmra.mrb[0].mxu0 %v3993
        %v4104 = vpop.f32.mrb[0].mxu0
        %v4105 = vadd.f32 %v3968, %v4104
        %v4106 = vpop.f32.mrb[0].mxu0
        %v4107 = vpop.f32.mrb[0].mxu0
        %v4108 = vadd.f32 %v3971, %v4107
        %v4109 = vpop.f32.mrb[0].mxu0
        %4110 = vdwg.mxu0
        %v4111 = vld [vmem:[#allocation3 + $0x2] sm:$0xff]
        %v4112 = vld [vmem:[#allocation3 + $0x12] sm:$0xff]
        %v4113 = vld [vmem:[#allocation3 + $0x22] sm:$0xff]
        %v4114 = vld [vmem:[#allocation3 + $0x32] sm:$0xff]
        %v4115 = vld [vmem:[#allocation3 + $0x42] sm:$0xff]
        %v4116 = vld [vmem:[#allocation3 + $0x52] sm:$0xff]
        %v4117 = vld [vmem:[#allocation3 + $0x62] sm:$0xff]
        %v4118 = vld [vmem:[#allocation3 + $0x72] sm:$0xff]
        %v4119 = vpack.c.bf16 %v4111, %v4111
        %v4120 = vpack.c.bf16 %v4112, %v4112
        %v4121 = vpack.c.bf16 %v4113, %v4113
        %v4122 = vpack.c.bf16 %v4114, %v4114
        %v4123 = vpack.c.bf16 %v4115, %v4115
        %v4124 = vpack.c.bf16 %v4116, %v4116
        %v4125 = vpack.c.bf16 %v4117, %v4117
        %v4126 = vpack.c.bf16 %v4118, %v4118
        %s4127 = scalar_lea.vmem [#allocation9], 128
        %v4128 = vld [vmem:[%s4127] sm:$0xf]
        %v4129 = vld [vmem:[%s4127 + $0x4] sm:$0xf]
        %v4130 = vld [vmem:[%s4127 + $0x8] sm:$0xf]
        %v4131 = vld [vmem:[%s4127 + $0xc] sm:$0xf]
        %v4132 = vld [vmem:[%s4127 + $0x10] sm:$0xf]
        %v4133 = vld [vmem:[%s4127 + $0x14] sm:$0xf]
        %v4134 = vld [vmem:[%s4127 + $0x18] sm:$0xf]
        %v4135 = vld [vmem:[%s4127 + $0x1c] sm:$0xf]
        %v4136 = vld [vmem:[%s4127 + $0x20] sm:$0xf]
        %v4137 = vld [vmem:[%s4127 + $0x24] sm:$0xf]
        %v4138 = vld [vmem:[%s4127 + $0x28] sm:$0xf]
        %v4139 = vld [vmem:[%s4127 + $0x2c] sm:$0xf]
        %v4140 = vld [vmem:[%s4127 + $0x30] sm:$0xf]
        %v4141 = vld [vmem:[%s4127 + $0x34] sm:$0xf]
        %v4142 = vld [vmem:[%s4127 + $0x38] sm:$0xf]
        %v4143 = vld [vmem:[%s4127 + $0x3c] sm:$0xf]
        %v4152 = vunpack.c.l.b16 %v4119
        %v4153 = vunpack.c.l.b16 %v4120
        %v4154 = vunpack.c.l.b16 %v4121
        %v4155 = vunpack.c.l.b16 %v4122
        %v4156 = vunpack.c.l.b16 %v4123
        %v4157 = vunpack.c.l.b16 %v4124
        %v4158 = vunpack.c.l.b16 %v4125
        %v4159 = vunpack.c.l.b16 %v4126
        %v4160 = vpack.c.b16 %v4153, %v4152
        %v4161 = vpack.c.b16 %v4155, %v4154
        %v4162 = vpack.c.b16 %v4157, %v4156
        %v4163 = vpack.c.b16 %v4159, %v4158
        %v4184 = vunpack.c.l.b16 %v4128
        %v4185 = vunpack.c.l.b16 %v4129
        %v4186 = vunpack.c.l.b16 %v4130
        %v4187 = vunpack.c.l.b16 %v4131
        %v4188 = vunpack.c.l.b16 %v4132
        %v4189 = vunpack.c.l.b16 %v4133
        %v4190 = vunpack.c.l.b16 %v4134
        %v4191 = vunpack.c.l.b16 %v4135
        %v4192 = vunpack.c.l.b16 %v4136
        %v4193 = vunpack.c.l.b16 %v4137
        %v4194 = vunpack.c.l.b16 %v4138
        %v4195 = vunpack.c.l.b16 %v4139
        %v4196 = vunpack.c.l.b16 %v4140
        %v4197 = vunpack.c.l.b16 %v4141
        %v4198 = vunpack.c.l.b16 %v4142
        %v4199 = vunpack.c.l.b16 %v4143
        %v4200 = vpack.c.b16 %v4185, %v4184
        %v4201 = vpack.c.b16 %v4187, %v4186
        %v4202 = vpack.c.b16 %v4189, %v4188
        %v4203 = vpack.c.b16 %v4191, %v4190
        %v4204 = vpack.c.b16 %v4193, %v4192
        %v4205 = vpack.c.b16 %v4195, %v4194
        %v4206 = vpack.c.b16 %v4197, %v4196
        %v4207 = vpack.c.b16 %v4199, %v4198
        %4216 = vmatprep.subr.bf16.mxu0 0
        %4217 = vmatpush1.bf16.msra.mxu0 %v4200
        %4218 = vmatprep.subr.bf16.mxu0 0
        %4219 = vmatpush1.bf16.msra.mxu0 %v4201
        %4220 = vmatprep.subr.bf16.mxu0 0
        %4221 = vmatpush1.bf16.msra.mxu0 %v4202
        %4222 = vmatprep.subr.bf16.mxu0 0
        %4223 = vmatpush1.bf16.msra.mxu0 %v4203
        %4224 = vmatprep.subr.bf16.mxu0 0
        %4225 = vmatpush1.bf16.msra.mxu0 %v4204
        %4226 = vmatprep.subr.bf16.mxu0 0
        %4227 = vmatpush1.bf16.msra.mxu0 %v4205
        %4228 = vmatprep.subr.bf16.mxu0 0
        %4229 = vmatpush1.bf16.msra.mxu0 %v4206
        %4230 = vmatprep.subr.bf16.mxu0 0
        %4231 = vmatpush1.bf16.msra.mxu0 %v4207
        %4232 = vmatprep.subr.bf16.mxu0 0
        %4233 = vmatpush1.bf16.msra.mxu0 0
        %4234 = vmatprep.subr.bf16.mxu0 0
        %4235 = vmatpush1.bf16.msra.mxu0 0
        %4236 = vmatprep.subr.bf16.mxu0 0
        %4237 = vmatpush1.bf16.msra.mxu0 0
        %4238 = vmatprep.subr.bf16.mxu0 0
        %4239 = vmatpush1.bf16.msra.mxu0 0
        %4240 = vmatprep.subr.bf16.mxu0 0
        %4241 = vmatpush1.bf16.msra.mxu0 0
        %4242 = vmatprep.subr.bf16.mxu0 0
        %4243 = vmatpush1.bf16.msra.mxu0 0
        %4244 = vmatprep.subr.bf16.mxu0 0
        %4245 = vmatpush1.bf16.msra.mxu0 0
        %4246 = vmatprep.subr.bf16.mxu0 0
        %4247 = vmatpush1.bf16.msra.mxu0 0
        %4248 = vmatprep.mubr.bf16.mxu0 0
        %4249 = vmatmul.mubr.bf16.gmra.mrb[0].mxu0 %v4160
        %v4250 = vpop.f32.mrb[0].mxu0
        %v4251 = vadd.f32 0.0, %v4250
        %v4252 = vpop.f32.mrb[0].mxu0
        %v4253 = vpop.f32.mrb[0].mxu0
        %v4254 = vadd.f32 0.0, %v4253
        %v4255 = vpop.f32.mrb[0].mxu0
        %4256 = vmatprep.mubr.bf16.mxu0 0
        %4257 = vmatmul.mubr.bf16.gmra.mrb[0].mxu0 %v4161
        %v4258 = vpop.f32.mrb[0].mxu0
        %v4259 = vadd.f32 0.0, %v4258
        %v4260 = vpop.f32.mrb[0].mxu0
        %v4261 = vpop.f32.mrb[0].mxu0
        %v4262 = vadd.f32 0.0, %v4261
        %v4263 = vpop.f32.mrb[0].mxu0
        %4264 = vmatprep.mubr.bf16.mxu0 0
        %4265 = vmatmul.mubr.bf16.gmra.mrb[0].mxu0 %v4162
        %v4266 = vpop.f32.mrb[0].mxu0
        %v4267 = vadd.f32 0.0, %v4266
        %v4268 = vpop.f32.mrb[0].mxu0
        %v4269 = vpop.f32.mrb[0].mxu0
        %v4270 = vadd.f32 0.0, %v4269
        %v4271 = vpop.f32.mrb[0].mxu0
        %4272 = vmatprep.mubr.bf16.mxu0 0
        %4273 = vmatmul.mubr.bf16.gmra.mrb[0].mxu0 %v4163
        %v4274 = vpop.f32.mrb[0].mxu0
        %v4275 = vadd.f32 0.0, %v4274
        %v4276 = vpop.f32.mrb[0].mxu0
        %v4277 = vpop.f32.mrb[0].mxu0
        %v4278 = vadd.f32 0.0, %v4277
        %v4279 = vpop.f32.mrb[0].mxu0
        %4280 = vdwg.mxu0
        %v4281 = vadd.f32 %v4081, %v4251
        %v4282 = vadd.f32 %v4084, %v4254
        %v4283 = vadd.f32 %v4089, %v4259
        %v4284 = vadd.f32 %v4092, %v4262
        %v4285 = vadd.f32 %v4097, %v4267
        %v4286 = vadd.f32 %v4100, %v4270
        %v4287 = vadd.f32 %v4105, %v4275
        %v4288 = vadd.f32 %v4108, %v4278
        %v4289 = vld [vmem:[%s3763] sm:$0xff]
        %v4290 = vld [vmem:[%s3763 + $0x10] sm:$0xff]
        %v4291 = vld [vmem:[%s3763 + $0x20] sm:$0xff]
        %v4292 = vld [vmem:[%s3763 + $0x30] sm:$0xff]
        %v4293 = vld [vmem:[%s3763 + $0x40] sm:$0xff]
        %v4294 = vld [vmem:[%s3763 + $0x50] sm:$0xff]
        %v4295 = vld [vmem:[%s3763 + $0x60] sm:$0xff]
        %v4296 = vld [vmem:[%s3763 + $0x70] sm:$0xff]
        %v4297 = vpack.c.bf16 %v4289, %v4289
        %v4298 = vpack.c.bf16 %v4290, %v4290
        %v4299 = vpack.c.bf16 %v4291, %v4291
        %v4300 = vpack.c.bf16 %v4292, %v4292
        %v4301 = vpack.c.bf16 %v4293, %v4293
        %v4302 = vpack.c.bf16 %v4294, %v4294
        %v4303 = vpack.c.bf16 %v4295, %v4295
        %v4304 = vpack.c.bf16 %v4296, %v4296
        %s4305 = scalar_lea.vmem [#allocation9], 192
        %v4306 = vld [vmem:[%s4305] sm:$0xf]
        %v4307 = vld [vmem:[%s4305 + $0x4] sm:$0xf]
        %v4308 = vld [vmem:[%s4305 + $0x8] sm:$0xf]
        %v4309 = vld [vmem:[%s4305 + $0xc] sm:$0xf]
        %v4310 = vld [vmem:[%s4305 + $0x10] sm:$0xf]
        %v4311 = vld [vmem:[%s4305 + $0x14] sm:$0xf]
        %v4312 = vld [vmem:[%s4305 + $0x18] sm:$0xf]
        %v4313 = vld [vmem:[%s4305 + $0x1c] sm:$0xf]
        %v4314 = vld [vmem:[%s4305 + $0x20] sm:$0xf]
        %v4315 = vld [vmem:[%s4305 + $0x24] sm:$0xf]
        %v4316 = vld [vmem:[%s4305 + $0x28] sm:$0xf]
        %v4317 = vld [vmem:[%s4305 + $0x2c] sm:$0xf]
        %v4318 = vld [vmem:[%s4305 + $0x30] sm:$0xf]
        %v4319 = vld [vmem:[%s4305 + $0x34] sm:$0xf]
        %v4320 = vld [vmem:[%s4305 + $0x38] sm:$0xf]
        %v4321 = vld [vmem:[%s4305 + $0x3c] sm:$0xf]
        %v4330 = vunpack.c.l.b16 %v4297
        %v4331 = vunpack.c.l.b16 %v4298
        %v4332 = vunpack.c.l.b16 %v4299
        %v4333 = vunpack.c.l.b16 %v4300
        %v4334 = vunpack.c.l.b16 %v4301
        %v4335 = vunpack.c.l.b16 %v4302
        %v4336 = vunpack.c.l.b16 %v4303
        %v4337 = vunpack.c.l.b16 %v4304
        %v4338 = vpack.c.b16 %v4331, %v4330
        %v4339 = vpack.c.b16 %v4333, %v4332
        %v4340 = vpack.c.b16 %v4335, %v4334
        %v4341 = vpack.c.b16 %v4337, %v4336
        %v4362 = vunpack.c.l.b16 %v4306
        %v4363 = vunpack.c.l.b16 %v4307
        %v4364 = vunpack.c.l.b16 %v4308
        %v4365 = vunpack.c.l.b16 %v4309
        %v4366 = vunpack.c.l.b16 %v4310
        %v4367 = vunpack.c.l.b16 %v4311
        %v4368 = vunpack.c.l.b16 %v4312
        %v4369 = vunpack.c.l.b16 %v4313
        %v4370 = vunpack.c.l.b16 %v4314
        %v4371 = vunpack.c.l.b16 %v4315
        %v4372 = vunpack.c.l.b16 %v4316
        %v4373 = vunpack.c.l.b16 %v4317
        %v4374 = vunpack.c.l.b16 %v4318
        %v4375 = vunpack.c.l.b16 %v4319
        %v4376 = vunpack.c.l.b16 %v4320
        %v4377 = vunpack.c.l.b16 %v4321
        %v4378 = vpack.c.b16 %v4363, %v4362
        %v4379 = vpack.c.b16 %v4365, %v4364
        %v4380 = vpack.c.b16 %v4367, %v4366
        %v4381 = vpack.c.b16 %v4369, %v4368
        %v4382 = vpack.c.b16 %v4371, %v4370
        %v4383 = vpack.c.b16 %v4373, %v4372
        %v4384 = vpack.c.b16 %v4375, %v4374
        %v4385 = vpack.c.b16 %v4377, %v4376
        %4394 = vmatprep.subr.bf16.mxu0 0
        %4395 = vmatpush1.bf16.msra.mxu0 %v4378
        %4396 = vmatprep.subr.bf16.mxu0 0
        %4397 = vmatpush1.bf16.msra.mxu0 %v4379
        %4398 = vmatprep.subr.bf16.mxu0 0
        %4399 = vmatpush1.bf16.msra.mxu0 %v4380
        %4400 = vmatprep.subr.bf16.mxu0 0
        %4401 = vmatpush1.bf16.msra.mxu0 %v4381
        %4402 = vmatprep.subr.bf16.mxu0 0
        %4403 = vmatpush1.bf16.msra.mxu0 %v4382
        %4404 = vmatprep.subr.bf16.mxu0 0
        %4405 = vmatpush1.bf16.msra.mxu0 %v4383
        %4406 = vmatprep.subr.bf16.mxu0 0
        %4407 = vmatpush1.bf16.msra.mxu0 %v4384
        %4408 = vmatprep.subr.bf16.mxu0 0
        %4409 = vmatpush1.bf16.msra.mxu0 %v4385
        %4410 = vmatprep.subr.bf16.mxu0 0
        %4411 = vmatpush1.bf16.msra.mxu0 0
        %4412 = vmatprep.subr.bf16.mxu0 0
        %4413 = vmatpush1.bf16.msra.mxu0 0
        %4414 = vmatprep.subr.bf16.mxu0 0
        %4415 = vmatpush1.bf16.msra.mxu0 0
        %4416 = vmatprep.subr.bf16.mxu0 0
        %4417 = vmatpush1.bf16.msra.mxu0 0
        %4418 = vmatprep.subr.bf16.mxu0 0
        %4419 = vmatpush1.bf16.msra.mxu0 0
        %4420 = vmatprep.subr.bf16.mxu0 0
        %4421 = vmatpush1.bf16.msra.mxu0 0
        %4422 = vmatprep.subr.bf16.mxu0 0
        %4423 = vmatpush1.bf16.msra.mxu0 0
        %4424 = vmatprep.subr.bf16.mxu0 0
        %4425 = vmatpush1.bf16.msra.mxu0 0
        %4426 = vmatprep.mubr.bf16.mxu0 0
        %4427 = vmatmul.mubr.bf16.gmra.mrb[0].mxu0 %v4338
        %v4428 = vpop.f32.mrb[0].mxu0
        %v4429 = vadd.f32 0.0, %v4428
        %v4430 = vpop.f32.mrb[0].mxu0
        %v4431 = vpop.f32.mrb[0].mxu0
        %v4432 = vadd.f32 0.0, %v4431
        %v4433 = vpop.f32.mrb[0].mxu0
        %4434 = vmatprep.mubr.bf16.mxu0 0
        %4435 = vmatmul.mubr.bf16.gmra.mrb[0].mxu0 %v4339
        %v4436 = vpop.f32.mrb[0].mxu0
        %v4437 = vadd.f32 0.0, %v4436
        %v4438 = vpop.f32.mrb[0].mxu0
        %v4439 = vpop.f32.mrb[0].mxu0
        %v4440 = vadd.f32 0.0, %v4439
        %v4441 = vpop.f32.mrb[0].mxu0
        %4442 = vmatprep.mubr.bf16.mxu0 0
        %4443 = vmatmul.mubr.bf16.gmra.mrb[0].mxu0 %v4340
        %v4444 = vpop.f32.mrb[0].mxu0
        %v4445 = vadd.f32 0.0, %v4444
        %v4446 = vpop.f32.mrb[0].mxu0
        %v4447 = vpop.f32.mrb[0].mxu0
        %v4448 = vadd.f32 0.0, %v4447
        %v4449 = vpop.f32.mrb[0].mxu0
        %4450 = vmatprep.mubr.bf16.mxu0 0
        %4451 = vmatmul.mubr.bf16.gmra.mrb[0].mxu0 %v4341
        %v4452 = vpop.f32.mrb[0].mxu0
        %v4453 = vadd.f32 0.0, %v4452
        %v4454 = vpop.f32.mrb[0].mxu0
        %v4455 = vpop.f32.mrb[0].mxu0
        %v4456 = vadd.f32 0.0, %v4455
        %v4457 = vpop.f32.mrb[0].mxu0
        %4458 = vdwg.mxu0
        %v4459 = vadd.f32 %v4281, %v4429
        %v4460 = vadd.f32 %v4282, %v4432
        %v4461 = vadd.f32 %v4283, %v4437
        %v4462 = vadd.f32 %v4284, %v4440
        %v4463 = vadd.f32 %v4285, %v4445
        %v4464 = vadd.f32 %v4286, %v4448
        %v4465 = vadd.f32 %v4287, %v4453
        %v4466 = vadd.f32 %v4288, %v4456
        %v4467 = vld [vmem:[%s3763 + $0x1] sm:$0xff]
        %v4468 = vld [vmem:[%s3763 + $0x11] sm:$0xff]
        %v4469 = vld [vmem:[%s3763 + $0x21] sm:$0xff]
        %v4470 = vld [vmem:[%s3763 + $0x31] sm:$0xff]
        %v4471 = vld [vmem:[%s3763 + $0x41] sm:$0xff]
        %v4472 = vld [vmem:[%s3763 + $0x51] sm:$0xff]
        %v4473 = vld [vmem:[%s3763 + $0x61] sm:$0xff]
        %v4474 = vld [vmem:[%s3763 + $0x71] sm:$0xff]
        %v4475 = vpack.c.bf16 %v4467, %v4467
        %v4476 = vpack.c.bf16 %v4468, %v4468
        %v4477 = vpack.c.bf16 %v4469, %v4469
        %v4478 = vpack.c.bf16 %v4470, %v4470
        %v4479 = vpack.c.bf16 %v4471, %v4471
        %v4480 = vpack.c.bf16 %v4472, %v4472
        %v4481 = vpack.c.bf16 %v4473, %v4473
        %v4482 = vpack.c.bf16 %v4474, %v4474
        %s4483 = scalar_lea.vmem [#allocation9], 256
        %v4484 = vld [vmem:[%s4483] sm:$0xf]
        %v4485 = vld [vmem:[%s4483 + $0x4] sm:$0xf]
        %v4486 = vld [vmem:[%s4483 + $0x8] sm:$0xf]
        %v4487 = vld [vmem:[%s4483 + $0xc] sm:$0xf]
        %v4488 = vld [vmem:[%s4483 + $0x10] sm:$0xf]
        %v4489 = vld [vmem:[%s4483 + $0x14] sm:$0xf]
        %v4490 = vld [vmem:[%s4483 + $0x18] sm:$0xf]
        %v4491 = vld [vmem:[%s4483 + $0x1c] sm:$0xf]
        %v4492 = vld [vmem:[%s4483 + $0x20] sm:$0xf]
        %v4493 = vld [vmem:[%s4483 + $0x24] sm:$0xf]
        %v4494 = vld [vmem:[%s4483 + $0x28] sm:$0xf]
        %v4495 = vld [vmem:[%s4483 + $0x2c] sm:$0xf]
        %v4496 = vld [vmem:[%s4483 + $0x30] sm:$0xf]
        %v4497 = vld [vmem:[%s4483 + $0x34] sm:$0xf]
        %v4498 = vld [vmem:[%s4483 + $0x38] sm:$0xf]
        %v4499 = vld [vmem:[%s4483 + $0x3c] sm:$0xf]
        %v4508 = vunpack.c.l.b16 %v4475
        %v4509 = vunpack.c.l.b16 %v4476
        %v4510 = vunpack.c.l.b16 %v4477
        %v4511 = vunpack.c.l.b16 %v4478
        %v4512 = vunpack.c.l.b16 %v4479
        %v4513 = vunpack.c.l.b16 %v4480
        %v4514 = vunpack.c.l.b16 %v4481
        %v4515 = vunpack.c.l.b16 %v4482
        %v4516 = vpack.c.b16 %v4509, %v4508
        %v4517 = vpack.c.b16 %v4511, %v4510
        %v4518 = vpack.c.b16 %v4513, %v4512
        %v4519 = vpack.c.b16 %v4515, %v4514
        %v4540 = vunpack.c.l.b16 %v4484
        %v4541 = vunpack.c.l.b16 %v4485
        %v4542 = vunpack.c.l.b16 %v4486
        %v4543 = vunpack.c.l.b16 %v4487
        %v4544 = vunpack.c.l.b16 %v4488
        %v4545 = vunpack.c.l.b16 %v4489
        %v4546 = vunpack.c.l.b16 %v4490
        %v4547 = vunpack.c.l.b16 %v4491
        %v4548 = vunpack.c.l.b16 %v4492
        %v4549 = vunpack.c.l.b16 %v4493
        %v4550 = vunpack.c.l.b16 %v4494
        %v4551 = vunpack.c.l.b16 %v4495
        %v4552 = vunpack.c.l.b16 %v4496
        %v4553 = vunpack.c.l.b16 %v4497
        %v4554 = vunpack.c.l.b16 %v4498
        %v4555 = vunpack.c.l.b16 %v4499
        %v4556 = vpack.c.b16 %v4541, %v4540
        %v4557 = vpack.c.b16 %v4543, %v4542
        %v4558 = vpack.c.b16 %v4545, %v4544
        %v4559 = vpack.c.b16 %v4547, %v4546
        %v4560 = vpack.c.b16 %v4549, %v4548
        %v4561 = vpack.c.b16 %v4551, %v4550
        %v4562 = vpack.c.b16 %v4553, %v4552
        %v4563 = vpack.c.b16 %v4555, %v4554
        %4572 = vmatprep.subr.bf16.mxu0 0
        %4573 = vmatpush1.bf16.msra.mxu0 %v4556
        %4574 = vmatprep.subr.bf16.mxu0 0
        %4575 = vmatpush1.bf16.msra.mxu0 %v4557
        %4576 = vmatprep.subr.bf16.mxu0 0
        %4577 = vmatpush1.bf16.msra.mxu0 %v4558
        %4578 = vmatprep.subr.bf16.mxu0 0
        %4579 = vmatpush1.bf16.msra.mxu0 %v4559
        %4580 = vmatprep.subr.bf16.mxu0 0
        %4581 = vmatpush1.bf16.msra.mxu0 %v4560
        %4582 = vmatprep.subr.bf16.mxu0 0
        %4583 = vmatpush1.bf16.msra.mxu0 %v4561
        %4584 = vmatprep.subr.bf16.mxu0 0
        %4585 = vmatpush1.bf16.msra.mxu0 %v4562
        %4586 = vmatprep.subr.bf16.mxu0 0
        %4587 = vmatpush1.bf16.msra.mxu0 %v4563
        %4588 = vmatprep.subr.bf16.mxu0 0
        %4589 = vmatpush1.bf16.msra.mxu0 0
        %4590 = vmatprep.subr.bf16.mxu0 0
        %4591 = vmatpush1.bf16.msra.mxu0 0
        %4592 = vmatprep.subr.bf16.mxu0 0
        %4593 = vmatpush1.bf16.msra.mxu0 0
        %4594 = vmatprep.subr.bf16.mxu0 0
        %4595 = vmatpush1.bf16.msra.mxu0 0
        %4596 = vmatprep.subr.bf16.mxu0 0
        %4597 = vmatpush1.bf16.msra.mxu0 0
        %4598 = vmatprep.subr.bf16.mxu0 0
        %4599 = vmatpush1.bf16.msra.mxu0 0
        %4600 = vmatprep.subr.bf16.mxu0 0
        %4601 = vmatpush1.bf16.msra.mxu0 0
        %4602 = vmatprep.subr.bf16.mxu0 0
        %4603 = vmatpush1.bf16.msra.mxu0 0
        %4604 = vmatprep.mubr.bf16.mxu0 0
        %4605 = vmatmul.mubr.bf16.gmra.mrb[0].mxu0 %v4516
        %v4606 = vpop.f32.mrb[0].mxu0
        %v4607 = vadd.f32 0.0, %v4606
        %v4608 = vpop.f32.mrb[0].mxu0
        %v4609 = vpop.f32.mrb[0].mxu0
        %v4610 = vadd.f32 0.0, %v4609
        %v4611 = vpop.f32.mrb[0].mxu0
        %4612 = vmatprep.mubr.bf16.mxu0 0
        %4613 = vmatmul.mubr.bf16.gmra.mrb[0].mxu0 %v4517
        %v4614 = vpop.f32.mrb[0].mxu0
        %v4615 = vadd.f32 0.0, %v4614
        %v4616 = vpop.f32.mrb[0].mxu0
        %v4617 = vpop.f32.mrb[0].mxu0
        %v4618 = vadd.f32 0.0, %v4617
        %v4619 = vpop.f32.mrb[0].mxu0
        %4620 = vmatprep.mubr.bf16.mxu0 0
        %4621 = vmatmul.mubr.bf16.gmra.mrb[0].mxu0 %v4518
        %v4622 = vpop.f32.mrb[0].mxu0
        %v4623 = vadd.f32 0.0, %v4622
        %v4624 = vpop.f32.mrb[0].mxu0
        %v4625 = vpop.f32.mrb[0].mxu0
        %v4626 = vadd.f32 0.0, %v4625
        %v4627 = vpop.f32.mrb[0].mxu0
        %4628 = vmatprep.mubr.bf16.mxu0 0
        %4629 = vmatmul.mubr.bf16.gmra.mrb[0].mxu0 %v4519
        %v4630 = vpop.f32.mrb[0].mxu0
        %v4631 = vadd.f32 0.0, %v4630
        %v4632 = vpop.f32.mrb[0].mxu0
        %v4633 = vpop.f32.mrb[0].mxu0
        %v4634 = vadd.f32 0.0, %v4633
        %v4635 = vpop.f32.mrb[0].mxu0
        %4636 = vdwg.mxu0
        %v4637 = vadd.f32 %v4459, %v4607
        %v4638 = vadd.f32 %v4460, %v4610
        %v4639 = vadd.f32 %v4461, %v4615
        %v4640 = vadd.f32 %v4462, %v4618
        %v4641 = vadd.f32 %v4463, %v4623
        %v4642 = vadd.f32 %v4464, %v4626
        %v4643 = vadd.f32 %v4465, %v4631
        %v4644 = vadd.f32 %v4466, %v4634
        %v4645 = vld [vmem:[%s3763 + $0x2] sm:$0xff]
        %v4646 = vld [vmem:[%s3763 + $0x12] sm:$0xff]
        %v4647 = vld [vmem:[%s3763 + $0x22] sm:$0xff]
        %v4648 = vld [vmem:[%s3763 + $0x32] sm:$0xff]
        %v4649 = vld [vmem:[%s3763 + $0x42] sm:$0xff]
        %v4650 = vld [vmem:[%s3763 + $0x52] sm:$0xff]
        %v4651 = vld [vmem:[%s3763 + $0x62] sm:$0xff]
        %v4652 = vld [vmem:[%s3763 + $0x72] sm:$0xff]
        %v4653 = vpack.c.bf16 %v4645, %v4645
        %v4654 = vpack.c.bf16 %v4646, %v4646
        %v4655 = vpack.c.bf16 %v4647, %v4647
        %v4656 = vpack.c.bf16 %v4648, %v4648
        %v4657 = vpack.c.bf16 %v4649, %v4649
        %v4658 = vpack.c.bf16 %v4650, %v4650
        %v4659 = vpack.c.bf16 %v4651, %v4651
        %v4660 = vpack.c.bf16 %v4652, %v4652
        %s4661 = scalar_lea.vmem [#allocation9], 320
        %v4662 = vld [vmem:[%s4661] sm:$0xf]
        %v4663 = vld [vmem:[%s4661 + $0x4] sm:$0xf]
        %v4664 = vld [vmem:[%s4661 + $0x8] sm:$0xf]
        %v4665 = vld [vmem:[%s4661 + $0xc] sm:$0xf]
        %v4666 = vld [vmem:[%s4661 + $0x10] sm:$0xf]
        %v4667 = vld [vmem:[%s4661 + $0x14] sm:$0xf]
        %v4668 = vld [vmem:[%s4661 + $0x18] sm:$0xf]
        %v4669 = vld [vmem:[%s4661 + $0x1c] sm:$0xf]
        %v4670 = vld [vmem:[%s4661 + $0x20] sm:$0xf]
        %v4671 = vld [vmem:[%s4661 + $0x24] sm:$0xf]
        %v4672 = vld [vmem:[%s4661 + $0x28] sm:$0xf]
        %v4673 = vld [vmem:[%s4661 + $0x2c] sm:$0xf]
        %v4674 = vld [vmem:[%s4661 + $0x30] sm:$0xf]
        %v4675 = vld [vmem:[%s4661 + $0x34] sm:$0xf]
        %v4676 = vld [vmem:[%s4661 + $0x38] sm:$0xf]
        %v4677 = vld [vmem:[%s4661 + $0x3c] sm:$0xf]
        %v4686 = vunpack.c.l.b16 %v4653
        %v4687 = vunpack.c.l.b16 %v4654
        %v4688 = vunpack.c.l.b16 %v4655
        %v4689 = vunpack.c.l.b16 %v4656
        %v4690 = vunpack.c.l.b16 %v4657
        %v4691 = vunpack.c.l.b16 %v4658
        %v4692 = vunpack.c.l.b16 %v4659
        %v4693 = vunpack.c.l.b16 %v4660
        %v4694 = vpack.c.b16 %v4687, %v4686
        %v4695 = vpack.c.b16 %v4689, %v4688
        %v4696 = vpack.c.b16 %v4691, %v4690
        %v4697 = vpack.c.b16 %v4693, %v4692
        %v4718 = vunpack.c.l.b16 %v4662
        %v4719 = vunpack.c.l.b16 %v4663
        %v4720 = vunpack.c.l.b16 %v4664
        %v4721 = vunpack.c.l.b16 %v4665
        %v4722 = vunpack.c.l.b16 %v4666
        %v4723 = vunpack.c.l.b16 %v4667
        %v4724 = vunpack.c.l.b16 %v4668
        %v4725 = vunpack.c.l.b16 %v4669
        %v4726 = vunpack.c.l.b16 %v4670
        %v4727 = vunpack.c.l.b16 %v4671
        %v4728 = vunpack.c.l.b16 %v4672
        %v4729 = vunpack.c.l.b16 %v4673
        %v4730 = vunpack.c.l.b16 %v4674
        %v4731 = vunpack.c.l.b16 %v4675
        %v4732 = vunpack.c.l.b16 %v4676
        %v4733 = vunpack.c.l.b16 %v4677
        %v4734 = vpack.c.b16 %v4719, %v4718
        %v4735 = vpack.c.b16 %v4721, %v4720
        %v4736 = vpack.c.b16 %v4723, %v4722
        %v4737 = vpack.c.b16 %v4725, %v4724
        %v4738 = vpack.c.b16 %v4727, %v4726
        %v4739 = vpack.c.b16 %v4729, %v4728
        %v4740 = vpack.c.b16 %v4731, %v4730
        %v4741 = vpack.c.b16 %v4733, %v4732
        %4750 = vmatprep.subr.bf16.mxu0 0
        %4751 = vmatpush1.bf16.msra.mxu0 %v4734
        %4752 = vmatprep.subr.bf16.mxu0 0
        %4753 = vmatpush1.bf16.msra.mxu0 %v4735
        %4754 = vmatprep.subr.bf16.mxu0 0
        %4755 = vmatpush1.bf16.msra.mxu0 %v4736
        %4756 = vmatprep.subr.bf16.mxu0 0
        %4757 = vmatpush1.bf16.msra.mxu0 %v4737
        %4758 = vmatprep.subr.bf16.mxu0 0
        %4759 = vmatpush1.bf16.msra.mxu0 %v4738
        %4760 = vmatprep.subr.bf16.mxu0 0
        %4761 = vmatpush1.bf16.msra.mxu0 %v4739
        %4762 = vmatprep.subr.bf16.mxu0 0
        %4763 = vmatpush1.bf16.msra.mxu0 %v4740
        %4764 = vmatprep.subr.bf16.mxu0 0
        %4765 = vmatpush1.bf16.msra.mxu0 %v4741
        %4766 = vmatprep.subr.bf16.mxu0 0
        %4767 = vmatpush1.bf16.msra.mxu0 0
        %4768 = vmatprep.subr.bf16.mxu0 0
        %4769 = vmatpush1.bf16.msra.mxu0 0
        %4770 = vmatprep.subr.bf16.mxu0 0
        %4771 = vmatpush1.bf16.msra.mxu0 0
        %4772 = vmatprep.subr.bf16.mxu0 0
        %4773 = vmatpush1.bf16.msra.mxu0 0
        %4774 = vmatprep.subr.bf16.mxu0 0
        %4775 = vmatpush1.bf16.msra.mxu0 0
        %4776 = vmatprep.subr.bf16.mxu0 0
        %4777 = vmatpush1.bf16.msra.mxu0 0
        %4778 = vmatprep.subr.bf16.mxu0 0
        %4779 = vmatpush1.bf16.msra.mxu0 0
        %4780 = vmatprep.subr.bf16.mxu0 0
        %4781 = vmatpush1.bf16.msra.mxu0 0
        %4782 = vmatprep.mubr.bf16.mxu0 0
        %4783 = vmatmul.mubr.bf16.gmra.mrb[0].mxu0 %v4694
        %v4784 = vpop.f32.mrb[0].mxu0
        %v4785 = vadd.f32 0.0, %v4784
        %v4786 = vpop.f32.mrb[0].mxu0
        %v4787 = vpop.f32.mrb[0].mxu0
        %v4788 = vadd.f32 0.0, %v4787
        %v4789 = vpop.f32.mrb[0].mxu0
        %4790 = vmatprep.mubr.bf16.mxu0 0
        %4791 = vmatmul.mubr.bf16.gmra.mrb[0].mxu0 %v4695
        %v4792 = vpop.f32.mrb[0].mxu0
        %v4793 = vadd.f32 0.0, %v4792
        %v4794 = vpop.f32.mrb[0].mxu0
        %v4795 = vpop.f32.mrb[0].mxu0
        %v4796 = vadd.f32 0.0, %v4795
        %v4797 = vpop.f32.mrb[0].mxu0
        %4798 = vmatprep.mubr.bf16.mxu0 0
        %4799 = vmatmul.mubr.bf16.gmra.mrb[0].mxu0 %v4696
        %v4800 = vpop.f32.mrb[0].mxu0
        %v4801 = vadd.f32 0.0, %v4800
        %v4802 = vpop.f32.mrb[0].mxu0
        %v4803 = vpop.f32.mrb[0].mxu0
        %v4804 = vadd.f32 0.0, %v4803
        %v4805 = vpop.f32.mrb[0].mxu0
        %4806 = vmatprep.mubr.bf16.mxu0 0
        %4807 = vmatmul.mubr.bf16.gmra.mrb[0].mxu0 %v4697
        %v4808 = vpop.f32.mrb[0].mxu0
        %v4809 = vadd.f32 0.0, %v4808
        %v4810 = vpop.f32.mrb[0].mxu0
        %v4811 = vpop.f32.mrb[0].mxu0
        %v4812 = vadd.f32 0.0, %v4811
        %v4813 = vpop.f32.mrb[0].mxu0
        %4814 = vdwg.mxu0
        %v4815 = vadd.f32 %v4637, %v4785
        %v4816 = vadd.f32 %v4638, %v4788
        %v4817 = vadd.f32 %v4639, %v4793
        %v4818 = vadd.f32 %v4640, %v4796
        %v4819 = vadd.f32 %v4641, %v4801
        %v4820 = vadd.f32 %v4642, %v4804
        %v4821 = vadd.f32 %v4643, %v4809
        %v4822 = vadd.f32 %v4644, %v4812
        %s4823 = scalar_lea.vmem [#allocation3], 32
        %v4824 = vld [vmem:[%s4823] sm:$0xff]
        %v4825 = vld [vmem:[%s4823 + $0x10] sm:$0xff]
        %v4826 = vld [vmem:[%s4823 + $0x20] sm:$0xff]
        %v4827 = vld [vmem:[%s4823 + $0x30] sm:$0xff]
        %v4828 = vld [vmem:[%s4823 + $0x40] sm:$0xff]
        %v4829 = vld [vmem:[%s4823 + $0x50] sm:$0xff]
        %v4830 = vld [vmem:[%s4823 + $0x60] sm:$0xff]
        %v4831 = vld [vmem:[%s4823 + $0x70] sm:$0xff]
        %v4832 = vpack.c.bf16 %v4824, %v4824
        %v4833 = vpack.c.bf16 %v4825, %v4825
        %v4834 = vpack.c.bf16 %v4826, %v4826
        %v4835 = vpack.c.bf16 %v4827, %v4827
        %v4836 = vpack.c.bf16 %v4828, %v4828
        %v4837 = vpack.c.bf16 %v4829, %v4829
        %v4838 = vpack.c.bf16 %v4830, %v4830
        %v4839 = vpack.c.bf16 %v4831, %v4831
        %s4840 = scalar_lea.vmem [#allocation9], 384
        %v4841 = vld [vmem:[%s4840] sm:$0xf]
        %v4842 = vld [vmem:[%s4840 + $0x4] sm:$0xf]
        %v4843 = vld [vmem:[%s4840 + $0x8] sm:$0xf]
        %v4844 = vld [vmem:[%s4840 + $0xc] sm:$0xf]
        %v4845 = vld [vmem:[%s4840 + $0x10] sm:$0xf]
        %v4846 = vld [vmem:[%s4840 + $0x14] sm:$0xf]
        %v4847 = vld [vmem:[%s4840 + $0x18] sm:$0xf]
        %v4848 = vld [vmem:[%s4840 + $0x1c] sm:$0xf]
        %v4849 = vld [vmem:[%s4840 + $0x20] sm:$0xf]
        %v4850 = vld [vmem:[%s4840 + $0x24] sm:$0xf]
        %v4851 = vld [vmem:[%s4840 + $0x28] sm:$0xf]
        %v4852 = vld [vmem:[%s4840 + $0x2c] sm:$0xf]
        %v4853 = vld [vmem:[%s4840 + $0x30] sm:$0xf]
        %v4854 = vld [vmem:[%s4840 + $0x34] sm:$0xf]
        %v4855 = vld [vmem:[%s4840 + $0x38] sm:$0xf]
        %v4856 = vld [vmem:[%s4840 + $0x3c] sm:$0xf]
        %v4865 = vunpack.c.l.b16 %v4832
        %v4866 = vunpack.c.l.b16 %v4833
        %v4867 = vunpack.c.l.b16 %v4834
        %v4868 = vunpack.c.l.b16 %v4835
        %v4869 = vunpack.c.l.b16 %v4836
        %v4870 = vunpack.c.l.b16 %v4837
        %v4871 = vunpack.c.l.b16 %v4838
        %v4872 = vunpack.c.l.b16 %v4839
        %v4873 = vpack.c.b16 %v4866, %v4865
        %v4874 = vpack.c.b16 %v4868, %v4867
        %v4875 = vpack.c.b16 %v4870, %v4869
        %v4876 = vpack.c.b16 %v4872, %v4871
        %v4897 = vunpack.c.l.b16 %v4841
        %v4898 = vunpack.c.l.b16 %v4842
        %v4899 = vunpack.c.l.b16 %v4843
        %v4900 = vunpack.c.l.b16 %v4844
        %v4901 = vunpack.c.l.b16 %v4845
        %v4902 = vunpack.c.l.b16 %v4846
        %v4903 = vunpack.c.l.b16 %v4847
        %v4904 = vunpack.c.l.b16 %v4848
        %v4905 = vunpack.c.l.b16 %v4849
        %v4906 = vunpack.c.l.b16 %v4850
        %v4907 = vunpack.c.l.b16 %v4851
        %v4908 = vunpack.c.l.b16 %v4852
        %v4909 = vunpack.c.l.b16 %v4853
        %v4910 = vunpack.c.l.b16 %v4854
        %v4911 = vunpack.c.l.b16 %v4855
        %v4912 = vunpack.c.l.b16 %v4856
        %v4913 = vpack.c.b16 %v4898, %v4897
        %v4914 = vpack.c.b16 %v4900, %v4899
        %v4915 = vpack.c.b16 %v4902, %v4901
        %v4916 = vpack.c.b16 %v4904, %v4903
        %v4917 = vpack.c.b16 %v4906, %v4905
        %v4918 = vpack.c.b16 %v4908, %v4907
        %v4919 = vpack.c.b16 %v4910, %v4909
        %v4920 = vpack.c.b16 %v4912, %v4911
        %4929 = vmatprep.subr.bf16.mxu0 0
        %4930 = vmatpush1.bf16.msra.mxu0 %v4913
        %4931 = vmatprep.subr.bf16.mxu0 0
        %4932 = vmatpush1.bf16.msra.mxu0 %v4914
        %4933 = vmatprep.subr.bf16.mxu0 0
        %4934 = vmatpush1.bf16.msra.mxu0 %v4915
        %4935 = vmatprep.subr.bf16.mxu0 0
        %4936 = vmatpush1.bf16.msra.mxu0 %v4916
        %4937 = vmatprep.subr.bf16.mxu0 0
        %4938 = vmatpush1.bf16.msra.mxu0 %v4917
        %4939 = vmatprep.subr.bf16.mxu0 0
        %4940 = vmatpush1.bf16.msra.mxu0 %v4918
        %4941 = vmatprep.subr.bf16.mxu0 0
        %4942 = vmatpush1.bf16.msra.mxu0 %v4919
        %4943 = vmatprep.subr.bf16.mxu0 0
        %4944 = vmatpush1.bf16.msra.mxu0 %v4920
        %4945 = vmatprep.subr.bf16.mxu0 0
        %4946 = vmatpush1.bf16.msra.mxu0 0
        %4947 = vmatprep.subr.bf16.mxu0 0
        %4948 = vmatpush1.bf16.msra.mxu0 0
        %4949 = vmatprep.subr.bf16.mxu0 0
        %4950 = vmatpush1.bf16.msra.mxu0 0
        %4951 = vmatprep.subr.bf16.mxu0 0
        %4952 = vmatpush1.bf16.msra.mxu0 0
        %4953 = vmatprep.subr.bf16.mxu0 0
        %4954 = vmatpush1.bf16.msra.mxu0 0
        %4955 = vmatprep.subr.bf16.mxu0 0
        %4956 = vmatpush1.bf16.msra.mxu0 0
        %4957 = vmatprep.subr.bf16.mxu0 0
        %4958 = vmatpush1.bf16.msra.mxu0 0
        %4959 = vmatprep.subr.bf16.mxu0 0
        %4960 = vmatpush1.bf16.msra.mxu0 0
        %4961 = vmatprep.mubr.bf16.mxu0 0
        %4962 = vmatmul.mubr.bf16.gmra.mrb[0].mxu0 %v4873
        %v4963 = vpop.f32.mrb[0].mxu0
        %v4964 = vadd.f32 0.0, %v4963
        %v4965 = vpop.f32.mrb[0].mxu0
        %v4966 = vpop.f32.mrb[0].mxu0
        %v4967 = vadd.f32 0.0, %v4966
        %v4968 = vpop.f32.mrb[0].mxu0
        %4969 = vmatprep.mubr.bf16.mxu0 0
        %4970 = vmatmul.mubr.bf16.gmra.mrb[0].mxu0 %v4874
        %v4971 = vpop.f32.mrb[0].mxu0
        %v4972 = vadd.f32 0.0, %v4971
        %v4973 = vpop.f32.mrb[0].mxu0
        %v4974 = vpop.f32.mrb[0].mxu0
        %v4975 = vadd.f32 0.0, %v4974
        %v4976 = vpop.f32.mrb[0].mxu0
        %4977 = vmatprep.mubr.bf16.mxu0 0
        %4978 = vmatmul.mubr.bf16.gmra.mrb[0].mxu0 %v4875
        %v4979 = vpop.f32.mrb[0].mxu0
        %v4980 = vadd.f32 0.0, %v4979
        %v4981 = vpop.f32.mrb[0].mxu0
        %v4982 = vpop.f32.mrb[0].mxu0
        %v4983 = vadd.f32 0.0, %v4982
        %v4984 = vpop.f32.mrb[0].mxu0
        %4985 = vmatprep.mubr.bf16.mxu0 0
        %4986 = vmatmul.mubr.bf16.gmra.mrb[0].mxu0 %v4876
        %v4987 = vpop.f32.mrb[0].mxu0
        %v4988 = vadd.f32 0.0, %v4987
        %v4989 = vpop.f32.mrb[0].mxu0
        %v4990 = vpop.f32.mrb[0].mxu0
        %v4991 = vadd.f32 0.0, %v4990
        %v4992 = vpop.f32.mrb[0].mxu0
        %4993 = vdwg.mxu0
        %v4994 = vadd.f32 %v4815, %v4964
        %v4995 = vadd.f32 %v4816, %v4967
        %v4996 = vadd.f32 %v4817, %v4972
        %v4997 = vadd.f32 %v4818, %v4975
        %v4998 = vadd.f32 %v4819, %v4980
        %v4999 = vadd.f32 %v4820, %v4983
        %v5000 = vadd.f32 %v4821, %v4988
        %v5001 = vadd.f32 %v4822, %v4991
        %v5002 = vld [vmem:[%s4823 + $0x1] sm:$0xff]
        %v5003 = vld [vmem:[%s4823 + $0x11] sm:$0xff]
        %v5004 = vld [vmem:[%s4823 + $0x21] sm:$0xff]
        %v5005 = vld [vmem:[%s4823 + $0x31] sm:$0xff]
        %v5006 = vld [vmem:[%s4823 + $0x41] sm:$0xff]
        %v5007 = vld [vmem:[%s4823 + $0x51] sm:$0xff]
        %v5008 = vld [vmem:[%s4823 + $0x61] sm:$0xff]
        %v5009 = vld [vmem:[%s4823 + $0x71] sm:$0xff]
        %v5010 = vpack.c.bf16 %v5002, %v5002
        %v5011 = vpack.c.bf16 %v5003, %v5003
        %v5012 = vpack.c.bf16 %v5004, %v5004
        %v5013 = vpack.c.bf16 %v5005, %v5005
        %v5014 = vpack.c.bf16 %v5006, %v5006
        %v5015 = vpack.c.bf16 %v5007, %v5007
        %v5016 = vpack.c.bf16 %v5008, %v5008
        %v5017 = vpack.c.bf16 %v5009, %v5009
        %s5018 = scalar_lea.vmem [#allocation9], 448
        %v5019 = vld [vmem:[%s5018] sm:$0xf]
        %v5020 = vld [vmem:[%s5018 + $0x4] sm:$0xf]
        %v5021 = vld [vmem:[%s5018 + $0x8] sm:$0xf]
        %v5022 = vld [vmem:[%s5018 + $0xc] sm:$0xf]
        %v5023 = vld [vmem:[%s5018 + $0x10] sm:$0xf]
        %v5024 = vld [vmem:[%s5018 + $0x14] sm:$0xf]
        %v5025 = vld [vmem:[%s5018 + $0x18] sm:$0xf]
        %v5026 = vld [vmem:[%s5018 + $0x1c] sm:$0xf]
        %v5027 = vld [vmem:[%s5018 + $0x20] sm:$0xf]
        %v5028 = vld [vmem:[%s5018 + $0x24] sm:$0xf]
        %v5029 = vld [vmem:[%s5018 + $0x28] sm:$0xf]
        %v5030 = vld [vmem:[%s5018 + $0x2c] sm:$0xf]
        %v5031 = vld [vmem:[%s5018 + $0x30] sm:$0xf]
        %v5032 = vld [vmem:[%s5018 + $0x34] sm:$0xf]
        %v5033 = vld [vmem:[%s5018 + $0x38] sm:$0xf]
        %v5034 = vld [vmem:[%s5018 + $0x3c] sm:$0xf]
        %v5043 = vunpack.c.l.b16 %v5010
        %v5044 = vunpack.c.l.b16 %v5011
        %v5045 = vunpack.c.l.b16 %v5012
        %v5046 = vunpack.c.l.b16 %v5013
        %v5047 = vunpack.c.l.b16 %v5014
        %v5048 = vunpack.c.l.b16 %v5015
        %v5049 = vunpack.c.l.b16 %v5016
        %v5050 = vunpack.c.l.b16 %v5017
        %v5051 = vpack.c.b16 %v5044, %v5043
        %v5052 = vpack.c.b16 %v5046, %v5045
        %v5053 = vpack.c.b16 %v5048, %v5047
        %v5054 = vpack.c.b16 %v5050, %v5049
        %v5075 = vunpack.c.l.b16 %v5019
        %v5076 = vunpack.c.l.b16 %v5020
        %v5077 = vunpack.c.l.b16 %v5021
        %v5078 = vunpack.c.l.b16 %v5022
        %v5079 = vunpack.c.l.b16 %v5023
        %v5080 = vunpack.c.l.b16 %v5024
        %v5081 = vunpack.c.l.b16 %v5025
        %v5082 = vunpack.c.l.b16 %v5026
        %v5083 = vunpack.c.l.b16 %v5027
        %v5084 = vunpack.c.l.b16 %v5028
        %v5085 = vunpack.c.l.b16 %v5029
        %v5086 = vunpack.c.l.b16 %v5030
        %v5087 = vunpack.c.l.b16 %v5031
        %v5088 = vunpack.c.l.b16 %v5032
        %v5089 = vunpack.c.l.b16 %v5033
        %v5090 = vunpack.c.l.b16 %v5034
        %v5091 = vpack.c.b16 %v5076, %v5075
        %v5092 = vpack.c.b16 %v5078, %v5077
        %v5093 = vpack.c.b16 %v5080, %v5079
        %v5094 = vpack.c.b16 %v5082, %v5081
        %v5095 = vpack.c.b16 %v5084, %v5083
        %v5096 = vpack.c.b16 %v5086, %v5085
        %v5097 = vpack.c.b16 %v5088, %v5087
        %v5098 = vpack.c.b16 %v5090, %v5089
        %5107 = vmatprep.subr.bf16.mxu0 0
        %5108 = vmatpush1.bf16.msra.mxu0 %v5091
        %5109 = vmatprep.subr.bf16.mxu0 0
        %5110 = vmatpush1.bf16.msra.mxu0 %v5092
        %5111 = vmatprep.subr.bf16.mxu0 0
        %5112 = vmatpush1.bf16.msra.mxu0 %v5093
        %5113 = vmatprep.subr.bf16.mxu0 0
        %5114 = vmatpush1.bf16.msra.mxu0 %v5094
        %5115 = vmatprep.subr.bf16.mxu0 0
        %5116 = vmatpush1.bf16.msra.mxu0 %v5095
        %5117 = vmatprep.subr.bf16.mxu0 0
        %5118 = vmatpush1.bf16.msra.mxu0 %v5096
        %5119 = vmatprep.subr.bf16.mxu0 0
        %5120 = vmatpush1.bf16.msra.mxu0 %v5097
        %5121 = vmatprep.subr.bf16.mxu0 0
        %5122 = vmatpush1.bf16.msra.mxu0 %v5098
        %5123 = vmatprep.subr.bf16.mxu0 0
        %5124 = vmatpush1.bf16.msra.mxu0 0
        %5125 = vmatprep.subr.bf16.mxu0 0
        %5126 = vmatpush1.bf16.msra.mxu0 0
        %5127 = vmatprep.subr.bf16.mxu0 0
        %5128 = vmatpush1.bf16.msra.mxu0 0
        %5129 = vmatprep.subr.bf16.mxu0 0
        %5130 = vmatpush1.bf16.msra.mxu0 0
        %5131 = vmatprep.subr.bf16.mxu0 0
        %5132 = vmatpush1.bf16.msra.mxu0 0
        %5133 = vmatprep.subr.bf16.mxu0 0
        %5134 = vmatpush1.bf16.msra.mxu0 0
        %5135 = vmatprep.subr.bf16.mxu0 0
        %5136 = vmatpush1.bf16.msra.mxu0 0
        %5137 = vmatprep.subr.bf16.mxu0 0
        %5138 = vmatpush1.bf16.msra.mxu0 0
        %5139 = vmatprep.mubr.bf16.mxu0 0
        %5140 = vmatmul.mubr.bf16.gmra.mrb[0].mxu0 %v5051
        %v5141 = vpop.f32.mrb[0].mxu0
        %v5142 = vadd.f32 0.0, %v5141
        %v5143 = vpop.f32.mrb[0].mxu0
        %v5144 = vpop.f32.mrb[0].mxu0
        %v5145 = vadd.f32 0.0, %v5144
        %v5146 = vpop.f32.mrb[0].mxu0
        %5147 = vmatprep.mubr.bf16.mxu0 0
        %5148 = vmatmul.mubr.bf16.gmra.mrb[0].mxu0 %v5052
        %v5149 = vpop.f32.mrb[0].mxu0
        %v5150 = vadd.f32 0.0, %v5149
        %v5151 = vpop.f32.mrb[0].mxu0
        %v5152 = vpop.f32.mrb[0].mxu0
        %v5153 = vadd.f32 0.0, %v5152
        %v5154 = vpop.f32.mrb[0].mxu0
        %5155 = vmatprep.mubr.bf16.mxu0 0
        %5156 = vmatmul.mubr.bf16.gmra.mrb[0].mxu0 %v5053
        %v5157 = vpop.f32.mrb[0].mxu0
        %v5158 = vadd.f32 0.0, %v5157
        %v5159 = vpop.f32.mrb[0].mxu0
        %v5160 = vpop.f32.mrb[0].mxu0
        %v5161 = vadd.f32 0.0, %v5160
        %v5162 = vpop.f32.mrb[0].mxu0
        %5163 = vmatprep.mubr.bf16.mxu0 0
        %5164 = vmatmul.mubr.bf16.gmra.mrb[0].mxu0 %v5054
        %v5165 = vpop.f32.mrb[0].mxu0
        %v5166 = vadd.f32 0.0, %v5165
        %v5167 = vpop.f32.mrb[0].mxu0
        %v5168 = vpop.f32.mrb[0].mxu0
        %v5169 = vadd.f32 0.0, %v5168
        %v5170 = vpop.f32.mrb[0].mxu0
        %5171 = vdwg.mxu0
        %v5172 = vadd.f32 %v4994, %v5142
        %v5173 = vadd.f32 %v4995, %v5145
        %v5174 = vadd.f32 %v4996, %v5150
        %v5175 = vadd.f32 %v4997, %v5153
        %v5176 = vadd.f32 %v4998, %v5158
        %v5177 = vadd.f32 %v4999, %v5161
        %v5178 = vadd.f32 %v5000, %v5166
        %v5179 = vadd.f32 %v5001, %v5169
        %v5180 = vld [vmem:[%s4823 + $0x2] sm:$0xff]
        %v5181 = vld [vmem:[%s4823 + $0x12] sm:$0xff]
        %v5182 = vld [vmem:[%s4823 + $0x22] sm:$0xff]
        %v5183 = vld [vmem:[%s4823 + $0x32] sm:$0xff]
        %v5184 = vld [vmem:[%s4823 + $0x42] sm:$0xff]
        %v5185 = vld [vmem:[%s4823 + $0x52] sm:$0xff]
        %v5186 = vld [vmem:[%s4823 + $0x62] sm:$0xff]
        %v5187 = vld [vmem:[%s4823 + $0x72] sm:$0xff]
        %v5188 = vpack.c.bf16 %v5180, %v5180
        %v5189 = vpack.c.bf16 %v5181, %v5181
        %v5190 = vpack.c.bf16 %v5182, %v5182
        %v5191 = vpack.c.bf16 %v5183, %v5183
        %v5192 = vpack.c.bf16 %v5184, %v5184
        %v5193 = vpack.c.bf16 %v5185, %v5185
        %v5194 = vpack.c.bf16 %v5186, %v5186
        %v5195 = vpack.c.bf16 %v5187, %v5187
        %s5196 = scalar_lea.vmem [#allocation9], 512
        %v5197 = vld [vmem:[%s5196] sm:$0xf]
        %v5198 = vld [vmem:[%s5196 + $0x4] sm:$0xf]
        %v5199 = vld [vmem:[%s5196 + $0x8] sm:$0xf]
        %v5200 = vld [vmem:[%s5196 + $0xc] sm:$0xf]
        %v5201 = vld [vmem:[%s5196 + $0x10] sm:$0xf]
        %v5202 = vld [vmem:[%s5196 + $0x14] sm:$0xf]
        %v5203 = vld [vmem:[%s5196 + $0x18] sm:$0xf]
        %v5204 = vld [vmem:[%s5196 + $0x1c] sm:$0xf]
        %v5205 = vld [vmem:[%s5196 + $0x20] sm:$0xf]
        %v5206 = vld [vmem:[%s5196 + $0x24] sm:$0xf]
        %v5207 = vld [vmem:[%s5196 + $0x28] sm:$0xf]
        %v5208 = vld [vmem:[%s5196 + $0x2c] sm:$0xf]
        %v5209 = vld [vmem:[%s5196 + $0x30] sm:$0xf]
        %v5210 = vld [vmem:[%s5196 + $0x34] sm:$0xf]
        %v5211 = vld [vmem:[%s5196 + $0x38] sm:$0xf]
        %v5212 = vld [vmem:[%s5196 + $0x3c] sm:$0xf]
        %v5221 = vunpack.c.l.b16 %v5188
        %v5222 = vunpack.c.l.b16 %v5189
        %v5223 = vunpack.c.l.b16 %v5190
        %v5224 = vunpack.c.l.b16 %v5191
        %v5225 = vunpack.c.l.b16 %v5192
        %v5226 = vunpack.c.l.b16 %v5193
        %v5227 = vunpack.c.l.b16 %v5194
        %v5228 = vunpack.c.l.b16 %v5195
        %v5229 = vpack.c.b16 %v5222, %v5221
        %v5230 = vpack.c.b16 %v5224, %v5223
        %v5231 = vpack.c.b16 %v5226, %v5225
        %v5232 = vpack.c.b16 %v5228, %v5227
        %v5253 = vunpack.c.l.b16 %v5197
        %v5254 = vunpack.c.l.b16 %v5198
        %v5255 = vunpack.c.l.b16 %v5199
        %v5256 = vunpack.c.l.b16 %v5200
        %v5257 = vunpack.c.l.b16 %v5201
        %v5258 = vunpack.c.l.b16 %v5202
        %v5259 = vunpack.c.l.b16 %v5203
        %v5260 = vunpack.c.l.b16 %v5204
        %v5261 = vunpack.c.l.b16 %v5205
        %v5262 = vunpack.c.l.b16 %v5206
        %v5263 = vunpack.c.l.b16 %v5207
        %v5264 = vunpack.c.l.b16 %v5208
        %v5265 = vunpack.c.l.b16 %v5209
        %v5266 = vunpack.c.l.b16 %v5210
        %v5267 = vunpack.c.l.b16 %v5211
        %v5268 = vunpack.c.l.b16 %v5212
        %v5269 = vpack.c.b16 %v5254, %v5253
        %v5270 = vpack.c.b16 %v5256, %v5255
        %v5271 = vpack.c.b16 %v5258, %v5257
        %v5272 = vpack.c.b16 %v5260, %v5259
        %v5273 = vpack.c.b16 %v5262, %v5261
        %v5274 = vpack.c.b16 %v5264, %v5263
        %v5275 = vpack.c.b16 %v5266, %v5265
        %v5276 = vpack.c.b16 %v5268, %v5267
        %5285 = vmatprep.subr.bf16.mxu0 0
        %5286 = vmatpush1.bf16.msra.mxu0 %v5269
        %5287 = vmatprep.subr.bf16.mxu0 0
        %5288 = vmatpush1.bf16.msra.mxu0 %v5270
        %5289 = vmatprep.subr.bf16.mxu0 0
        %5290 = vmatpush1.bf16.msra.mxu0 %v5271
        %5291 = vmatprep.subr.bf16.mxu0 0
        %5292 = vmatpush1.bf16.msra.mxu0 %v5272
        %5293 = vmatprep.subr.bf16.mxu0 0
        %5294 = vmatpush1.bf16.msra.mxu0 %v5273
        %5295 = vmatprep.subr.bf16.mxu0 0
        %5296 = vmatpush1.bf16.msra.mxu0 %v5274
        %5297 = vmatprep.subr.bf16.mxu0 0
        %5298 = vmatpush1.bf16.msra.mxu0 %v5275
        %5299 = vmatprep.subr.bf16.mxu0 0
        %5300 = vmatpush1.bf16.msra.mxu0 %v5276
        %5301 = vmatprep.subr.bf16.mxu0 0
        %5302 = vmatpush1.bf16.msra.mxu0 0
        %5303 = vmatprep.subr.bf16.mxu0 0
        %5304 = vmatpush1.bf16.msra.mxu0 0
        %5305 = vmatprep.subr.bf16.mxu0 0
        %5306 = vmatpush1.bf16.msra.mxu0 0
        %5307 = vmatprep.subr.bf16.mxu0 0
        %5308 = vmatpush1.bf16.msra.mxu0 0
        %5309 = vmatprep.subr.bf16.mxu0 0
        %5310 = vmatpush1.bf16.msra.mxu0 0
        %5311 = vmatprep.subr.bf16.mxu0 0
        %5312 = vmatpush1.bf16.msra.mxu0 0
        %5313 = vmatprep.subr.bf16.mxu0 0
        %5314 = vmatpush1.bf16.msra.mxu0 0
        %5315 = vmatprep.subr.bf16.mxu0 0
        %5316 = vmatpush1.bf16.msra.mxu0 0
        %5317 = vmatprep.mubr.bf16.mxu0 0
        %5318 = vmatmul.mubr.bf16.gmra.mrb[0].mxu0 %v5229
        %v5319 = vpop.f32.mrb[0].mxu0
        %v5320 = vadd.f32 0.0, %v5319
        %v5321 = vpop.f32.mrb[0].mxu0
        %v5322 = vpop.f32.mrb[0].mxu0
        %v5323 = vadd.f32 0.0, %v5322
        %v5324 = vpop.f32.mrb[0].mxu0
        %5325 = vmatprep.mubr.bf16.mxu0 0
        %5326 = vmatmul.mubr.bf16.gmra.mrb[0].mxu0 %v5230
        %v5327 = vpop.f32.mrb[0].mxu0
        %v5328 = vadd.f32 0.0, %v5327
        %v5329 = vpop.f32.mrb[0].mxu0
        %v5330 = vpop.f32.mrb[0].mxu0
        %v5331 = vadd.f32 0.0, %v5330
        %v5332 = vpop.f32.mrb[0].mxu0
        %5333 = vmatprep.mubr.bf16.mxu0 0
        %5334 = vmatmul.mubr.bf16.gmra.mrb[0].mxu0 %v5231
        %v5335 = vpop.f32.mrb[0].mxu0
        %v5336 = vadd.f32 0.0, %v5335
        %v5337 = vpop.f32.mrb[0].mxu0
        %v5338 = vpop.f32.mrb[0].mxu0
        %v5339 = vadd.f32 0.0, %v5338
        %v5340 = vpop.f32.mrb[0].mxu0
        %5341 = vmatprep.mubr.bf16.mxu0 0
        %5342 = vmatmul.mubr.bf16.gmra.mrb[0].mxu0 %v5232
        %v5343 = vpop.f32.mrb[0].mxu0
        %v5344 = vadd.f32 0.0, %v5343
        %v5345 = vpop.f32.mrb[0].mxu0
        %v5346 = vpop.f32.mrb[0].mxu0
        %v5347 = vadd.f32 0.0, %v5346
        %v5348 = vpop.f32.mrb[0].mxu0
        %5349 = vdwg.mxu0
        %v5350 = vadd.f32 %v5172, %v5320
        %v5351 = vadd.f32 %v5173, %v5323
        %v5352 = vadd.f32 %v5174, %v5328
        %v5353 = vadd.f32 %v5175, %v5331
        %v5354 = vadd.f32 %v5176, %v5336
        %v5355 = vadd.f32 %v5177, %v5339
        %v5356 = vadd.f32 %v5178, %v5344
        %v5357 = vadd.f32 %v5179, %v5347
        %v5358 = vld [vmem:[%s4] sm:$0x1]
        %v5360 = vlaneseq
        %v5361 = vshrl.u32 %v5360, 7
        %v5362 = vsub.s32 0, %v5361
        %v5363 = vrot.slane %v5358, %v5362
        %v5365 = vadd.f32 %v5350, %v5363
        %v5366 = vadd.f32 %v5351, %v5363
        %v5367 = vadd.f32 %v5352, %v5363
        %v5368 = vadd.f32 %v5353, %v5363
        %v5369 = vadd.f32 %v5354, %v5363
        %v5370 = vadd.f32 %v5355, %v5363
        %v5371 = vadd.f32 %v5356, %v5363
        %v5372 = vadd.f32 %v5357, %v5363
        %v5373 = vmax.f32 %v5365, 0.0
        %v5374 = vmax.f32 %v5366, 0.0
        %v5375 = vmax.f32 %v5367, 0.0
        %v5376 = vmax.f32 %v5368, 0.0
        %v5377 = vmax.f32 %v5369, 0.0
        %v5378 = vmax.f32 %v5370, 0.0
        %v5379 = vmax.f32 %v5371, 0.0
        %v5380 = vmax.f32 %v5372, 0.0
        %5381 = vst [vmem:[%s271] sm:$0xff] %v5373
        %5382 = vst [vmem:[%s271 + $0x8] sm:$0xff] %v5374
        %5383 = vst [vmem:[%s271 + $0x10] sm:$0xff] %v5375
        %5384 = vst [vmem:[%s271 + $0x18] sm:$0xff] %v5376
        %5385 = vst [vmem:[%s271 + $0x20] sm:$0xff] %v5377
        %5386 = vst [vmem:[%s271 + $0x28] sm:$0xff] %v5378
        %5387 = vst [vmem:[%s271 + $0x30] sm:$0xff] %v5379
        %5388 = vst [vmem:[%s271 + $0x38] sm:$0xff] %v5380
        %s5389 = sand.u32 %s141, 1
        %s5390 = scalar_lea.sflag [#allocation6], %s5389
        %s5391 = sand.u32 %s141, 1
        %s5392 = smul.addr %s5391, 64
        %s5393 = scalar_lea.vmem [#allocation10], %s5392
        // Predicated region
        $region53: #{tpu_custom_call.1} parent=39 // pred_check
          %p5394 = pneg %p151
        $region54: #{tpu_custom_call.1} parent=39 // pred_check_branch
          %5396 = sbr.rel (%p5394) target = $region56
        $region55: #{tpu_custom_call.1} parent=39 // pred_region
          %s5398 = ssub.s32 1024, 1024
          %5399 = vsyncadd %s5390, %s5398
          %s5400 = smul.addr %s23, 8
          %s5401 = smul.addr %s5400, 128
          %s5402 = scalar_lea.hbm %s5, %s5401
          %s5403 = sshll.u32 %s5393, 4
          %s5404 = int_to_ptr.vmem [resolvable:$true] %s5403
          %5409 = dma.vmem_to_hbm [thread:$0]  %s5404, 1024, %s5402, %s5390, 128, 128, 8
        $region56: #{tpu_custom_call.1} parent=39 // pred_fallthru
          _
      $region40: #{tpu_custom_call.1} parent=5 // pred_fallthru
        _
      %p5410 = scmp.le.s32.totalorder 2, %s18
      // Predicated region
      $region57: #{tpu_custom_call.1} parent=5 // pred_check
        %p5411 = pneg %p5410
      $region58: #{tpu_custom_call.1} parent=5 // pred_check_branch
        %5413 = sbr.rel (%p5411) target = $region60
      $region59: #{tpu_custom_call.1} parent=5 // pred_region
        %s5414 = ssub.s32 %s18, 2
        // Predicated region
        $region61: #{tpu_custom_call.1} parent=59 // pred_check
          %p5415 = pneg %p157
        $region62: #{tpu_custom_call.1} parent=59 // pred_check_branch
          %5417 = sbr.rel (%p5415) target = $region64
        $region63: #{tpu_custom_call.1} parent=59 // pred_region
          %s5418 = sand.u32 %s142, 1
          %s5419 = scalar_lea.sflag [#allocation6], %s5418
          %s5420 = sand.u32 %s142, 1
          %s5421 = smul.addr %s5420, 64
          %s5422 = scalar_lea.vmem [#allocation10], %s5421
          %5423 = dma.done %s5419, 1024
        $region64: #{tpu_custom_call.1} parent=59 // pred_fallthru
          _
      $region60: #{tpu_custom_call.1} parent=5 // pred_fallthru
        _
    $region6: #{tpu_custom_call.1} parent=1 // loop_footer
      %s22 = sadd.s32 1, %s18
    $region7: #{tpu_custom_call.1} parent=1 // loop_footer_branch
      %17 = sbr.rel target = $region3
    $region8: #{tpu_custom_call.1} parent=1 // loop_exit
      _
    %5424 = vsyncpa [#allocation5], 1
    %s5425 = scalar_lea.sflag [#allocation5], 1
    %5426 = vsyncpa %s5425, 1
    %5427 = vsyncpa [#allocation8], 1
    %5428 = vsyncpa [#allocation6], 1
    %s5429 = scalar_lea.sflag [#allocation6], 1
    %5430 = vsyncpa %s5429, 1

</llo_original>
